<compile_context>
chip_gen: v6e
topology: v6e:2x2x1
jax: 0.10.0
libtpu: 0.0.40
codegen_flags: <defaults>
</compile_context>

<pallas_src>
import functools

import jax
import jax.numpy as jnp
from jax.experimental import pallas as pl
from jax.experimental.pallas import tpu as pltpu

EPS = 1e-5          # PyTorch nn.LayerNorm default eps
NEG_INF = -1e30


def _layernorm(x, g, b):
    x = x.astype(jnp.float32)
    mu = jnp.mean(x, axis=-1, keepdims=True)
    var = jnp.mean((x - mu) ** 2, axis=-1, keepdims=True)
    return (x - mu) * jax.lax.rsqrt(var + EPS) * g + b


def _gelu(x):
    # TODO(synk): PyTorch nn.GELU defaults to the exact erf form; tanh approximation
    # used here for a guaranteed Mosaic lowering (max abs diff ~1e-3).
    c = jnp.float32(0.7978845608028654)  # sqrt(2/pi)
    return 0.5 * x * (1.0 + jnp.tanh(c * (x + 0.044715 * x * x * x)))


# ----------------------------- kernels ------------------------------------ #

def encoder_stack_kernel(patch_ref, wp_ref, add_ref,
                         ln1g_ref, ln1b_ref, wqkv_ref, wo_ref, bo_ref,
                         ln2g_ref, ln2b_ref, w1_ref, b1_ref, w2_ref, b2_ref,
                         out_ref, qkv_scr, oc_scr,
                         *, num_heads, n_real, n_pad, tb):
    layer = pl.program_id(1)

    # ---- layer 0: fused patch-embed (stride-P conv as matmul) + cls/pos/bias ----
    @pl.when(layer == 0)
    def _():
        out_ref[...] = (jnp.dot(patch_ref[...], wp_ref[...],
                                preferred_element_type=jnp.float32)
                        + add_ref[...])

    # Tokens stay resident in the output VMEM block across the (arbitrary) layer axis.
    z = out_ref[...]                                       # (TB*n_pad, D) f32
    _, emb_dim = z.shape
    dh = emb_dim // num_heads

    # ---- MHSA branch: z + MSA(LN1(z)) ----
    y = _layernorm(z, ln1g_ref[0], ln1b_ref[0]).astype(jnp.bfloat16)
    # Fused QKV projection (1/sqrt(dh) pre-folded into the Q columns), staged in a
    # bf16 VMEM scratch so per-head slices bound the vreg live ranges.
    qkv_scr[...] = jnp.dot(y, wqkv_ref[0],
                           preferred_element_type=jnp.float32).astype(jnp.bfloat16)

    if n_real < n_pad:  # static shapes -> static branch; mask padded key columns
        key_live = jax.lax.broadcasted_iota(jnp.int32, (n_pad, n_pad), 1) < n_real
    else:
        key_live = None

    # Per-(batch, head) attention; each head's output lands in its contiguous lane
    # slice of the concat scratch -> single K=D output-projection matmul below.
    for bi in range(tb):                                   # static unroll
        r0 = bi * n_pad
        for h in range(num_heads):                         # static unroll
            qh = qkv_scr[pl.ds(r0, n_pad), pl.ds(h * dh, dh)]
            kh = qkv_scr[pl.ds(r0, n_pad), pl.ds(emb_dim + h * dh, dh)]
            vh = qkv_scr[pl.ds(r0, n_pad), pl.ds(2 * emb_dim + h * dh, dh)]
            s = jnp.einsum('qd,kd->qk', qh, kh,
                           preferred_element_type=jnp.float32)    # (n_pad, n_pad)
            if key_live is not None:
                s = jnp.where(key_live, s, NEG_INF)
            s = s - jnp.max(s, axis=-1, keepdims=True)
            p = jnp.exp(s)
            p = p * pl.reciprocal(jnp.sum(p, axis=-1, keepdims=True), approx=True)
            oh = jnp.dot(p.astype(jnp.bfloat16), vh,
                         preferred_element_type=jnp.float32)      # (n_pad, dh)
            oc_scr[pl.ds(r0, n_pad), pl.ds(h * dh, dh)] = oh.astype(jnp.bfloat16)

    attn = jnp.dot(oc_scr[...], wo_ref[0], preferred_element_type=jnp.float32)
    z1 = z + attn + bo_ref[0]

    # ---- MLP branch: z1 + MLP(LN2(z1)) ----  (dropout p=0.0 -> identity)
    y2 = _layernorm(z1, ln2g_ref[0], ln2b_ref[0]).astype(jnp.bfloat16)
    h1 = _gelu(jnp.dot(y2, w1_ref[0], preferred_element_type=jnp.float32) + b1_ref[0])
    mlp = jnp.dot(h1.astype(jnp.bfloat16), w2_ref[0],
                  preferred_element_type=jnp.float32) + b2_ref[0]
    out_ref[...] = z1 + mlp


def mlp_head_kernel(x_ref, g_ref, b_ref, w_ref, bias_ref, out_ref):
    y = _layernorm(x_ref[...], g_ref[...], b_ref[...]).astype(jnp.bfloat16)
    out_ref[...] = (jnp.dot(y, w_ref[...], preferred_element_type=jnp.float32)
                    + bias_ref[...])


# ----------------------------- wrappers ------------------------------------ #

def _vmem_budget_bytes():
    """Generation-aware scoped-VMEM budget: ~72% of physical per-core VMEM
    (~46 MiB on v7x's 64 MiB, ~92 MiB on v5e/v6e's 128 MiB)."""
    cap = 128 << 20
    try:
        cap = int(getattr(pltpu.get_tpu_info(), "vmem_capacity_bytes", cap))
    except Exception:
        pass
    return int(cap * 0.72)


def vit_encoder_stack(patches_flat, wp_bf16, add, stacked, *,
                      num_heads, n_real, n_pad, batch):
    BN, K = patches_flat.shape
    D = wp_bf16.shape[1]
    L = stacked[0].shape[0]
    hidden = stacked[7].shape[-1]
    per_layer_bytes = sum(int(a.nbytes) // L for a in stacked)
    vmem_cap = _vmem_budget_bytes()

    def step_bytes(tb):
        m = tb * n_pad
        tok = m * D * 4
        return (2 * per_layer_bytes           # double-buffered layer weights
                + 2 * m * K * 2               # double-buffered bf16 patch block
                + 3 * tok                     # resident + writeback token blocks
                + m * (4 * D) * 2             # qkv + head-concat bf16 scratch
                + m * (hidden + 3 * D) * 4    # live f32 activations (MLP hidden, ...)
                + (4 << 20))                  # Mosaic internal scratch slack

    # Largest batch tile that fits the VMEM budget (M = TB*n_pad fills the MXU and
    # divides per-layer weight DMA traffic by TB).
    tb = 1
    for cand in range(1, batch + 1):
        if batch % cand != 0 or cand * n_pad > 2048:
            continue
        if step_bytes(cand) <= vmem_cap:
            tb = cand
    # v7x megacore: keep the parallel (batch-tile) axis >= 2 when the MXU stays fed.
    if tb == batch and batch % 2 == 0 and (tb // 2) * n_pad >= 512:
        tb //= 2

    vmem_limit = int(min(max(step_bytes(tb), 32 << 20), vmem_cap))
    add_full = jnp.tile(add, (tb, 1))                      # (TB*n_pad, D)

    def layer_spec(arr):
        return pl.BlockSpec((1,) + arr.shape[1:], lambda b, l: (l, 0, 0))

    tok_spec = pl.BlockSpec((tb * n_pad, D), lambda b, l: (b, 0))

    kern = functools.partial(encoder_stack_kernel, num_heads=num_heads,
                             n_real=n_real, n_pad=n_pad, tb=tb)
    return pl.pallas_call(
        kern,
        out_shape=jax.ShapeDtypeStruct((BN, D), jnp.float32),
        grid=(batch // tb, L),
        in_specs=[pl.BlockSpec((tb * n_pad, K), lambda b, l: (b, 0)),
                  pl.BlockSpec((K, D), lambda b, l: (0, 0)),
                  pl.BlockSpec((tb * n_pad, D), lambda b, l: (0, 0))]
                 + [layer_spec(a) for a in stacked],
        out_specs=tok_spec,
        scratch_shapes=[pltpu.VMEM((tb * n_pad, 3 * D), jnp.bfloat16),
                        pltpu.VMEM((tb * n_pad, D), jnp.bfloat16)],
        compiler_params=pltpu.CompilerParams(
            dimension_semantics=("parallel", "arbitrary"),
            vmem_limit_bytes=vmem_limit),
    )(patches_flat, wp_bf16, add_full, *stacked)


def vit_mlp_head(cls_tok, g, b, w_pad_bf16, bias_pad, num_classes):
    B, D = cls_tok.shape
    Mp = w_pad_bf16.shape[1]                       # lane-dense padded class dim
    out = pl.pallas_call(
        mlp_head_kernel,
        out_shape=jax.ShapeDtypeStruct((B, Mp), jnp.float32),
        grid=(1,),
        in_specs=[pl.BlockSpec((B, D), lambda i: (0, 0)),
                  pl.BlockSpec((1, D), lambda i: (0, 0)),
                  pl.BlockSpec((1, D), lambda i: (0, 0)),
                  pl.BlockSpec((D, Mp), lambda i: (0, 0)),
                  pl.BlockSpec((1, Mp), lambda i: (0, 0))],
        out_specs=pl.BlockSpec((B, Mp), lambda i: (0, 0)),
    )(cls_tok, g, b, w_pad_bf16, bias_pad)
    return out[:, :num_classes]


# ----------------------------- params & forward ---------------------------- #

def init_params(key, *, in_channels, emb_dim, num_patch_row, image_size,
                num_blocks, hidden_dim, num_classes, num_heads):
    patch = image_size // num_patch_row
    K = in_channels * patch * patch
    Np = num_patch_row ** 2
    N = Np + 1
    n_pad = max(8, ((N + 7) // 8) * 8)
    ncls_pad = max(128, ((num_classes + 127) // 128) * 128)
    dh = emb_dim // num_heads
    scale = 1.0 / (dh ** 0.5)

    keys = iter(jax.random.split(key, 8 + 8 * num_blocks))

    def nrm(shape, s=0.02):
        return s * jax.random.normal(next(keys), shape, jnp.float32)

    params = {
        "wp": nrm((K, emb_dim)).astype(jnp.bfloat16),   # patch-embed conv as matmul
        "bp": jnp.zeros((1, emb_dim), jnp.float32),
        "cls": nrm((1, emb_dim), 1.0),
        "pos": nrm((N, emb_dim), 1.0),
        "head_g": jnp.ones((1, emb_dim), jnp.float32),
        "head_b": jnp.zeros((1, emb_dim), jnp.float32),
        "head_w": jnp.pad(nrm((emb_dim, num_classes)),
                          ((0, 0), (0, ncls_pad - num_classes))).astype(jnp.bfloat16),
        "head_bias": jnp.zeros((1, ncls_pad), jnp.float32),
        "n_real": N, "n_pad": n_pad,
        "num_classes": num_classes, "num_heads": num_heads,
    }

    ln1g, ln1b, wqkv, wo, bo, ln2g, ln2b, w1, b1, w2, b2 = ([] for _ in range(11))
    for _ in range(num_blocks):
        ln1g.append(jnp.ones((1, emb_dim), jnp.float32))
        ln1b.append(jnp.zeros((1, emb_dim), jnp.float32))
        wq = nrm((emb_dim, emb_dim)) * scale            # attention scale folded into W_q
        wk = nrm((emb_dim, emb_dim))
        wv = nrm((emb_dim, emb_dim))
        wqkv.append(jnp.concatenate([wq, wk, wv], axis=1).astype(jnp.bfloat16))
        wo.append(nrm((emb_dim, emb_dim)).astype(jnp.bfloat16))
        bo.append(jnp.zeros((1, emb_dim), jnp.float32))
        ln2g.append(jnp.ones((1, emb_dim), jnp.float32))
        ln2b.append(jnp.zeros((1, emb_dim), jnp.float32))
        w1.append(nrm((emb_dim, hidden_dim)).astype(jnp.bfloat16))
        b1.append(jnp.zeros((1, hidden_dim), jnp.float32))
        w2.append(nrm((hidden_dim, emb_dim)).astype(jnp.bfloat16))
        b2.append(jnp.zeros((1, emb_dim), jnp.float32))
    params["blocks"] = tuple(jnp.stack(lst) for lst in
                             (ln1g, ln1b, wqkv, wo, bo, ln2g, ln2b, w1, b1, w2, b2))
    return params


def vit_forward(x_nchw, params, *, num_patch_row):
    B, C, H, W = x_nchw.shape
    P = H // num_patch_row
    Np = num_patch_row ** 2
    K = C * P * P
    n_real, n_pad = params["n_real"], params["n_pad"]
    D = params["pos"].shape[1]

    # im2col for the stride-P / kernel-P conv: (B, Np, C*P*P), inner order (c, ph, pw).
    patches = x_nchw.reshape(B, C, num_patch_row, P, num_patch_row, P)
    patches = patches.transpose(0, 2, 4, 1, 3, 5).reshape(B, Np, K)
    # row 0 is the cls slot, trailing rows are sequence padding -> zeros.
    patches = jnp.pad(patches, ((0, 0), (1, n_pad - Np - 1), (0, 0)))
    patches_flat = patches.reshape(B * n_pad, K).astype(jnp.bfloat16)

    # per-token additive slab: cls+pos[0] | conv bias + pos[1..Np] | zeros (pad rows)
    add = jnp.zeros((n_pad, D), jnp.float32)
    add = add.at[0].set(params["cls"][0] + params["pos"][0])
    add = add.at[1:n_real].set(params["pos"][1:] + params["bp"])

    z = vit_encoder_stack(patches_flat, params["wp"], add, params["blocks"],
                          num_heads=params["num_heads"], n_real=n_real,
                          n_pad=n_pad, batch=B)
    cls_tok = z.reshape(B, n_pad, D)[:, 0]              # (B, D)
    return vit_mlp_head(cls_tok, params["head_g"], params["head_b"],
                        params["head_w"], params["head_bias"], params["num_classes"])


if __name__ == "__main__":
    # Small, tile-aligned config consistent with the module's structure.
    B, C, IMG = 2, 1, 16
    EMB, HEADS, HID, NBLK, NCLS, NPR = 128, 4, 256, 2, 10, 2

    key = jax.random.PRNGKey(0)
    kx, kp = jax.random.split(key)
    x = jax.random.normal(kx, (B, C, IMG, IMG), jnp.float32)
    params = init_params(kp, in_channels=C, emb_dim=EMB, num_patch_row=NPR,
                         image_size=IMG, num_blocks=NBLK, hidden_dim=HID,
                         num_classes=NCLS, num_heads=HEADS)

    out = vit_forward(x, params, num_patch_row=NPR)
    jax.block_until_ready(out)
    assert out.shape == (B, NCLS) and out.dtype == jnp.float32
    assert bool(jnp.all(jnp.isfinite(out)))
    print("KERNEL_OK")
</pallas_src>

<mosaic_0001>
module attributes {stable_mosaic.version = 11 : i64} {
  func.func @encoder_stack_kernel(%arg0: i32, %arg1: i32, %arg2: memref<16x64xbf16, #tpu.memory_space<vmem>>, %arg3: memref<64x128xbf16, #tpu.memory_space<vmem>>, %arg4: memref<16x128xf32, #tpu.memory_space<vmem>>, %arg5: memref<1x1x128xf32, #tpu.memory_space<vmem>>, %arg6: memref<1x1x128xf32, #tpu.memory_space<vmem>>, %arg7: memref<1x128x384xbf16, #tpu.memory_space<vmem>>, %arg8: memref<1x128x128xbf16, #tpu.memory_space<vmem>>, %arg9: memref<1x1x128xf32, #tpu.memory_space<vmem>>, %arg10: memref<1x1x128xf32, #tpu.memory_space<vmem>>, %arg11: memref<1x1x128xf32, #tpu.memory_space<vmem>>, %arg12: memref<1x128x256xbf16, #tpu.memory_space<vmem>>, %arg13: memref<1x1x256xf32, #tpu.memory_space<vmem>>, %arg14: memref<1x256x128xbf16, #tpu.memory_space<vmem>>, %arg15: memref<1x1x128xf32, #tpu.memory_space<vmem>>, %arg16: memref<16x128xf32, #tpu.memory_space<vmem>>, %arg17: memref<16x384xbf16, #tpu.memory_space<vmem>>, %arg18: memref<16x128xbf16, #tpu.memory_space<vmem>>) attributes {dimension_semantics = [#tpu.dimension_semantics<parallel>, #tpu.dimension_semantics<arbitrary>], iteration_bounds = array<i64: 1, 2>, scalar_prefetch = 0 : i64, scratch_operands = 2 : i64, tpu.core_type = #tpu.core_type<tc>, window_params = [{transform_indices = @transform_0, window_bounds = array<i64: 16, 64>}, {pipeline_mode = #tpu.pipeline_mode<synchronous>, transform_indices = @transform_1, window_bounds = array<i64: 64, 128>}, {pipeline_mode = #tpu.pipeline_mode<synchronous>, transform_indices = @transform_2, window_bounds = array<i64: 16, 128>}, {transform_indices = @transform_3, window_bounds = array<i64: 1, 1, 128>}, {transform_indices = @transform_4, window_bounds = array<i64: 1, 1, 128>}, {transform_indices = @transform_5, window_bounds = array<i64: 1, 128, 384>}, {transform_indices = @transform_6, window_bounds = array<i64: 1, 128, 128>}, {transform_indices = @transform_7, window_bounds = array<i64: 1, 1, 128>}, {transform_indices = @transform_8, window_bounds = array<i64: 1, 1, 128>}, {transform_indices = @transform_9, window_bounds = array<i64: 1, 1, 128>}, {transform_indices = @transform_10, window_bounds = array<i64: 1, 128, 256>}, {transform_indices = @transform_11, window_bounds = array<i64: 1, 1, 256>}, {transform_indices = @transform_12, window_bounds = array<i64: 1, 256, 128>}, {transform_indices = @transform_13, window_bounds = array<i64: 1, 1, 128>}, {transform_indices = @transform_14, window_bounds = array<i64: 16, 128>}]} {
    %c0_i32 = arith.constant 0 : i32
    %0 = arith.cmpi eq, %arg1, %c0_i32 : i32
    %1 = arith.extui %0 : i1 to i32
    %c0_i32_0 = arith.constant 0 : i32
    %2 = arith.cmpi ne, %1, %c0_i32_0 : i32
    scf.if %2 {
      %c0_150 = arith.constant 0 : index
      %c0_151 = arith.constant 0 : index
      %265 = vector.load %arg2[%c0_150, %c0_151] : memref<16x64xbf16, #tpu.memory_space<vmem>>, vector<16x64xbf16>
      %c0_152 = arith.constant 0 : index
      %c0_153 = arith.constant 0 : index
      %266 = vector.load %arg3[%c0_152, %c0_153] : memref<64x128xbf16, #tpu.memory_space<vmem>>, vector<64x128xbf16>
      %cst_154 = arith.constant dense<0.000000e+00> : vector<16x128xf32>
      %267 = tpu.matmul %265, %266, %cst_154 {dimension_numbers = #tpu.dot_dimension_numbers<[1], [0], [0], [1], [0, 0, 1, 1], [], []>} : vector<16x64xbf16>, vector<64x128xbf16>, vector<16x128xf32> -> vector<16x128xf32>
      %c0_155 = arith.constant 0 : index
      %c0_156 = arith.constant 0 : index
      %268 = vector.load %arg4[%c0_155, %c0_156] : memref<16x128xf32, #tpu.memory_space<vmem>>, vector<16x128xf32>
      %269 = arith.addf %267, %268 : vector<16x128xf32>
      %c0_157 = arith.constant 0 : index
      %c0_158 = arith.constant 0 : index
      %270 = vector.load %arg16[%c0_157, %c0_158] : memref<16x128xf32, #tpu.memory_space<vmem>>, vector<16x128xf32>
      tpu.vector_store %arg16[%c0_157, %c0_158], %269 {strides = array<i32>} : memref<16x128xf32, #tpu.memory_space<vmem>>, vector<16x128xf32>,
    } else {
    }
    %c0 = arith.constant 0 : index
    %c0_1 = arith.constant 0 : index
    %3 = vector.load %arg16[%c0, %c0_1] : memref<16x128xf32, #tpu.memory_space<vmem>>, vector<16x128xf32>
    %c0_2 = arith.constant 0 : index
    %c0_3 = arith.constant 0 : index
    %c0_4 = arith.constant 0 : index
    %4 = vector.load %arg5[%c0_2, %c0_3, %c0_4] : memref<1x1x128xf32, #tpu.memory_space<vmem>>, vector<1x1x128xf32>
    %5 = vector.shape_cast %4 : vector<1x1x128xf32> to vector<1x128xf32>
    %c0_5 = arith.constant 0 : index
    %c0_6 = arith.constant 0 : index
    %c0_7 = arith.constant 0 : index
    %6 = vector.load %arg6[%c0_5, %c0_6, %c0_7] : memref<1x1x128xf32, #tpu.memory_space<vmem>>, vector<1x1x128xf32>
    %7 = vector.shape_cast %6 : vector<1x1x128xf32> to vector<1x128xf32>
    %cst = arith.constant dense<0.000000e+00> : vector<16xf32>
    %8 = vector.multi_reduction <add>, %3, %cst [1] : vector<16x128xf32> to vector<16xf32>
    %9 = vector.shape_cast %8 : vector<16xf32> to vector<16x1xf32>
    %cst_8 = arith.constant 1.280000e+02 : f32
    %10 = vector.broadcast %cst_8 : f32 to vector<16x1xf32>
    %11 = arith.divf %9, %10 : vector<16x1xf32>
    %12 = vector.broadcast %11 : vector<16x1xf32> to vector<16x128xf32>
    %13 = arith.subf %3, %12 : vector<16x128xf32>
    %14 = arith.mulf %13, %13 : vector<16x128xf32>
    %cst_9 = arith.constant dense<0.000000e+00> : vector<16xf32>
    %15 = vector.multi_reduction <add>, %14, %cst_9 [1] : vector<16x128xf32> to vector<16xf32>
    %16 = vector.shape_cast %15 : vector<16xf32> to vector<16x1xf32>
    %cst_10 = arith.constant 1.280000e+02 : f32
    %17 = vector.broadcast %cst_10 : f32 to vector<16x1xf32>
    %18 = arith.divf %16, %17 : vector<16x1xf32>
    %19 = vector.broadcast %11 : vector<16x1xf32> to vector<16x128xf32>
    %20 = arith.subf %3, %19 : vector<16x128xf32>
    %cst_11 = arith.constant 9.99999974E-6 : f32
    %21 = vector.broadcast %cst_11 : f32 to vector<16x1xf32>
    %22 = arith.addf %18, %21 : vector<16x1xf32>
    %23 = math.rsqrt %22 : vector<16x1xf32>
    %24 = vector.broadcast %23 : vector<16x1xf32> to vector<16x128xf32>
    %25 = arith.mulf %20, %24 : vector<16x128xf32>
    %26 = vector.broadcast %5 : vector<1x128xf32> to vector<16x128xf32>
    %27 = arith.mulf %25, %26 : vector<16x128xf32>
    %28 = vector.broadcast %7 : vector<1x128xf32> to vector<16x128xf32>
    %29 = arith.addf %27, %28 : vector<16x128xf32>
    %30 = arith.truncf %29 : vector<16x128xf32> to vector<16x128xbf16>
    %c0_12 = arith.constant 0 : index
    %c0_13 = arith.constant 0 : index
    %c0_14 = arith.constant 0 : index
    %31 = vector.load %arg7[%c0_12, %c0_13, %c0_14] : memref<1x128x384xbf16, #tpu.memory_space<vmem>>, vector<1x128x384xbf16>
    %32 = vector.shape_cast %31 : vector<1x128x384xbf16> to vector<128x384xbf16>
    %cst_15 = arith.constant dense<0.000000e+00> : vector<16x384xf32>
    %33 = tpu.matmul %30, %32, %cst_15 {dimension_numbers = #tpu.dot_dimension_numbers<[1], [0], [0], [1], [0, 0, 1, 1], [], []>} : vector<16x128xbf16>, vector<128x384xbf16>, vector<16x384xf32> -> vector<16x384xf32>
    %34 = arith.truncf %33 : vector<16x384xf32> to vector<16x384xbf16>
    %c0_16 = arith.constant 0 : index
    %c0_17 = arith.constant 0 : index
    %35 = vector.load %arg17[%c0_16, %c0_17] : memref<16x384xbf16, #tpu.memory_space<vmem>>, vector<16x384xbf16>
    tpu.vector_store %arg17[%c0_16, %c0_17], %34 {strides = array<i32>} : memref<16x384xbf16, #tpu.memory_space<vmem>>, vector<16x384xbf16>,
    %36 = tpu.iota {dimensions = array<i32: 1>} : vector<8x8xi32>
    %c5_i32 = arith.constant 5 : i32
    %37 = vector.broadcast %c5_i32 : i32 to vector<8x8xi32>
    %38 = arith.cmpi slt, %36, %37 : vector<8x8xi32>
    %c0_18 = arith.constant 0 : index
    %c0_19 = arith.constant 0 : index
    %39 = vector.load %arg17[%c0_18, %c0_19] : memref<16x384xbf16, #tpu.memory_space<vmem>>, vector<8x32xbf16>
    %c0_20 = arith.constant 0 : index
    %c128 = arith.constant 128 : index
    %40 = vector.load %arg17[%c0_20, %c128] : memref<16x384xbf16, #tpu.memory_space<vmem>>, vector<8x32xbf16>
    %c0_21 = arith.constant 0 : index
    %c256 = arith.constant 256 : index
    %41 = vector.load %arg17[%c0_21, %c256] : memref<16x384xbf16, #tpu.memory_space<vmem>>, vector<8x32xbf16>
    "tpu.trace_start"() <{level = 10 : i32, message = "qd,kd->qk"}> : () -> ()
    %cst_22 = arith.constant dense<0.000000e+00> : vector<8x8xf32>
    %42 = tpu.matmul %39, %40, %cst_22 {dimension_numbers = #tpu.dot_dimension_numbers<[1], [1], [0], [0], [0, 0, 1, 0], [], []>} : vector<8x32xbf16>, vector<8x32xbf16>, vector<8x8xf32> -> vector<8x8xf32>
    %cst_23 = arith.constant -1.000000e+30 : f32
    "tpu.trace_stop"() : () -> ()
    %43 = vector.broadcast %cst_23 : f32 to vector<8x8xf32>
    %44 = arith.select %38, %42, %43 : vector<8x8xi1>, vector<8x8xf32>
    %cst_24 = arith.constant dense<0xFF800000> : vector<8xf32>
    %45 = vector.multi_reduction <maximumf>, %44, %cst_24 [1] : vector<8x8xf32> to vector<8xf32>
    %46 = vector.shape_cast %45 : vector<8xf32> to vector<8x1xf32>
    %47 = vector.broadcast %46 : vector<8x1xf32> to vector<8x8xf32>
    %48 = arith.subf %44, %47 : vector<8x8xf32>
    %49 = math.exp %48 : vector<8x8xf32>
    %cst_25 = arith.constant dense<0.000000e+00> : vector<8xf32>
    %50 = vector.multi_reduction <add>, %49, %cst_25 [1] : vector<8x8xf32> to vector<8xf32>
    %51 = vector.shape_cast %50 : vector<8xf32> to vector<8x1xf32>
    %52 = tpu.reciprocal %51 {approx = true} : vector<8x1xf32> -> vector<8x1xf32>
    %53 = vector.broadcast %52 : vector<8x1xf32> to vector<8x8xf32>
    %54 = arith.mulf %49, %53 : vector<8x8xf32>
    %55 = arith.truncf %54 : vector<8x8xf32> to vector<8x8xbf16>
    %cst_26 = arith.constant dense<0.000000e+00> : vector<8x32xf32>
    %56 = tpu.matmul %55, %41, %cst_26 {dimension_numbers = #tpu.dot_dimension_numbers<[1], [0], [0], [1], [0, 0, 1, 1], [], []>} : vector<8x8xbf16>, vector<8x32xbf16>, vector<8x32xf32> -> vector<8x32xf32>
    %57 = arith.truncf %56 : vector<8x32xf32> to vector<8x32xbf16>
    %c0_27 = arith.constant 0 : index
    %c0_28 = arith.constant 0 : index
    %58 = vector.load %arg18[%c0_27, %c0_28] : memref<16x128xbf16, #tpu.memory_space<vmem>>, vector<8x32xbf16>
    tpu.vector_store %arg18[%c0_27, %c0_28], %57 {strides = array<i32>} : memref<16x128xbf16, #tpu.memory_space<vmem>>, vector<8x32xbf16>,
    %c0_29 = arith.constant 0 : index
    %c32 = arith.constant 32 : index
    %59 = vector.load %arg17[%c0_29, %c32] : memref<16x384xbf16, #tpu.memory_space<vmem>>, vector<8x32xbf16>
    %c0_30 = arith.constant 0 : index
    %c160 = arith.constant 160 : index
    %60 = vector.load %arg17[%c0_30, %c160] : memref<16x384xbf16, #tpu.memory_space<vmem>>, vector<8x32xbf16>
    %c0_31 = arith.constant 0 : index
    %c288 = arith.constant 288 : index
    %61 = vector.load %arg17[%c0_31, %c288] : memref<16x384xbf16, #tpu.memory_space<vmem>>, vector<8x32xbf16>
    "tpu.trace_start"() <{level = 10 : i32, message = "qd,kd->qk"}> : () -> ()
    %cst_32 = arith.constant dense<0.000000e+00> : vector<8x8xf32>
    %62 = tpu.matmul %59, %60, %cst_32 {dimension_numbers = #tpu.dot_dimension_numbers<[1], [1], [0], [0], [0, 0, 1, 0], [], []>} : vector<8x32xbf16>, vector<8x32xbf16>, vector<8x8xf32> -> vector<8x8xf32>
    %cst_33 = arith.constant -1.000000e+30 : f32
    "tpu.trace_stop"() : () -> ()
    %63 = vector.broadcast %cst_33 : f32 to vector<8x8xf32>
    %64 = arith.select %38, %62, %63 : vector<8x8xi1>, vector<8x8xf32>
    %cst_34 = arith.constant dense<0xFF800000> : vector<8xf32>
    %65 = vector.multi_reduction <maximumf>, %64, %cst_34 [1] : vector<8x8xf32> to vector<8xf32>
    %66 = vector.shape_cast %65 : vector<8xf32> to vector<8x1xf32>
    %67 = vector.broadcast %66 : vector<8x1xf32> to vector<8x8xf32>
    %68 = arith.subf %64, %67 : vector<8x8xf32>
    %69 = math.exp %68 : vector<8x8xf32>
    %cst_35 = arith.constant dense<0.000000e+00> : vector<8xf32>
    %70 = vector.multi_reduction <add>, %69, %cst_35 [1] : vector<8x8xf32> to vector<8xf32>
    %71 = vector.shape_cast %70 : vector<8xf32> to vector<8x1xf32>
    %72 = tpu.reciprocal %71 {approx = true} : vector<8x1xf32> -> vector<8x1xf32>
    %73 = vector.broadcast %72 : vector<8x1xf32> to vector<8x8xf32>
    %74 = arith.mulf %69, %73 : vector<8x8xf32>
    %75 = arith.truncf %74 : vector<8x8xf32> to vector<8x8xbf16>
    %cst_36 = arith.constant dense<0.000000e+00> : vector<8x32xf32>
    %76 = tpu.matmul %75, %61, %cst_36 {dimension_numbers = #tpu.dot_dimension_numbers<[1], [0], [0], [1], [0, 0, 1, 1], [], []>} : vector<8x8xbf16>, vector<8x32xbf16>, vector<8x32xf32> -> vector<8x32xf32>
    %77 = arith.truncf %76 : vector<8x32xf32> to vector<8x32xbf16>
    %c0_37 = arith.constant 0 : index
    %c32_38 = arith.constant 32 : index
    %78 = vector.load %arg18[%c0_37, %c32_38] : memref<16x128xbf16, #tpu.memory_space<vmem>>, vector<8x32xbf16>
    tpu.vector_store %arg18[%c0_37, %c32_38], %77 {strides = array<i32>} : memref<16x128xbf16, #tpu.memory_space<vmem>>, vector<8x32xbf16>,
    %c0_39 = arith.constant 0 : index
    %c64 = arith.constant 64 : index
    %79 = vector.load %arg17[%c0_39, %c64] : memref<16x384xbf16, #tpu.memory_space<vmem>>, vector<8x32xbf16>
    %c0_40 = arith.constant 0 : index
    %c192 = arith.constant 192 : index
    %80 = vector.load %arg17[%c0_40, %c192] : memref<16x384xbf16, #tpu.memory_space<vmem>>, vector<8x32xbf16>
    %c0_41 = arith.constant 0 : index
    %c320 = arith.constant 320 : index
    %81 = vector.load %arg17[%c0_41, %c320] : memref<16x384xbf16, #tpu.memory_space<vmem>>, vector<8x32xbf16>
    "tpu.trace_start"() <{level = 10 : i32, message = "qd,kd->qk"}> : () -> ()
    %cst_42 = arith.constant dense<0.000000e+00> : vector<8x8xf32>
    %82 = tpu.matmul %79, %80, %cst_42 {dimension_numbers = #tpu.dot_dimension_numbers<[1], [1], [0], [0], [0, 0, 1, 0], [], []>} : vector<8x32xbf16>, vector<8x32xbf16>, vector<8x8xf32> -> vector<8x8xf32>
    %cst_43 = arith.constant -1.000000e+30 : f32
    "tpu.trace_stop"() : () -> ()
    %83 = vector.broadcast %cst_43 : f32 to vector<8x8xf32>
    %84 = arith.select %38, %82, %83 : vector<8x8xi1>, vector<8x8xf32>
    %cst_44 = arith.constant dense<0xFF800000> : vector<8xf32>
    %85 = vector.multi_reduction <maximumf>, %84, %cst_44 [1] : vector<8x8xf32> to vector<8xf32>
    %86 = vector.shape_cast %85 : vector<8xf32> to vector<8x1xf32>
    %87 = vector.broadcast %86 : vector<8x1xf32> to vector<8x8xf32>
    %88 = arith.subf %84, %87 : vector<8x8xf32>
    %89 = math.exp %88 : vector<8x8xf32>
    %cst_45 = arith.constant dense<0.000000e+00> : vector<8xf32>
    %90 = vector.multi_reduction <add>, %89, %cst_45 [1] : vector<8x8xf32> to vector<8xf32>
    %91 = vector.shape_cast %90 : vector<8xf32> to vector<8x1xf32>
    %92 = tpu.reciprocal %91 {approx = true} : vector<8x1xf32> -> vector<8x1xf32>
    %93 = vector.broadcast %92 : vector<8x1xf32> to vector<8x8xf32>
    %94 = arith.mulf %89, %93 : vector<8x8xf32>
    %95 = arith.truncf %94 : vector<8x8xf32> to vector<8x8xbf16>
    %cst_46 = arith.constant dense<0.000000e+00> : vector<8x32xf32>
    %96 = tpu.matmul %95, %81, %cst_46 {dimension_numbers = #tpu.dot_dimension_numbers<[1], [0], [0], [1], [0, 0, 1, 1], [], []>} : vector<8x8xbf16>, vector<8x32xbf16>, vector<8x32xf32> -> vector<8x32xf32>
    %97 = arith.truncf %96 : vector<8x32xf32> to vector<8x32xbf16>
    %c0_47 = arith.constant 0 : index
    %c64_48 = arith.constant 64 : index
    %98 = vector.load %arg18[%c0_47, %c64_48] : memref<16x128xbf16, #tpu.memory_space<vmem>>, vector<8x32xbf16>
    tpu.vector_store %arg18[%c0_47, %c64_48], %97 {strides = array<i32>} : memref<16x128xbf16, #tpu.memory_space<vmem>>, vector<8x32xbf16>,
    %c0_49 = arith.constant 0 : index
    %c96 = arith.constant 96 : index
    %99 = vector.load %arg17[%c0_49, %c96] : memref<16x384xbf16, #tpu.memory_space<vmem>>, vector<8x32xbf16>
    %c0_50 = arith.constant 0 : index
    %c224 = arith.constant 224 : index
    %100 = vector.load %arg17[%c0_50, %c224] : memref<16x384xbf16, #tpu.memory_space<vmem>>, vector<8x32xbf16>
    %c0_51 = arith.constant 0 : index
    %c352 = arith.constant 352 : index
    %101 = vector.load %arg17[%c0_51, %c352] : memref<16x384xbf16, #tpu.memory_space<vmem>>, vector<8x32xbf16>
    "tpu.trace_start"() <{level = 10 : i32, message = "qd,kd->qk"}> : () -> ()
    %cst_52 = arith.constant dense<0.000000e+00> : vector<8x8xf32>
    %102 = tpu.matmul %99, %100, %cst_52 {dimension_numbers = #tpu.dot_dimension_numbers<[1], [1], [0], [0], [0, 0, 1, 0], [], []>} : vector<8x32xbf16>, vector<8x32xbf16>, vector<8x8xf32> -> vector<8x8xf32>
    %cst_53 = arith.constant -1.000000e+30 : f32
    "tpu.trace_stop"() : () -> ()
    %103 = vector.broadcast %cst_53 : f32 to vector<8x8xf32>
    %104 = arith.select %38, %102, %103 : vector<8x8xi1>, vector<8x8xf32>
    %cst_54 = arith.constant dense<0xFF800000> : vector<8xf32>
    %105 = vector.multi_reduction <maximumf>, %104, %cst_54 [1] : vector<8x8xf32> to vector<8xf32>
    %106 = vector.shape_cast %105 : vector<8xf32> to vector<8x1xf32>
    %107 = vector.broadcast %106 : vector<8x1xf32> to vector<8x8xf32>
    %108 = arith.subf %104, %107 : vector<8x8xf32>
    %109 = math.exp %108 : vector<8x8xf32>
    %cst_55 = arith.constant dense<0.000000e+00> : vector<8xf32>
    %110 = vector.multi_reduction <add>, %109, %cst_55 [1] : vector<8x8xf32> to vector<8xf32>
    %111 = vector.shape_cast %110 : vector<8xf32> to vector<8x1xf32>
    %112 = tpu.reciprocal %111 {approx = true} : vector<8x1xf32> -> vector<8x1xf32>
    %113 = vector.broadcast %112 : vector<8x1xf32> to vector<8x8xf32>
    %114 = arith.mulf %109, %113 : vector<8x8xf32>
    %115 = arith.truncf %114 : vector<8x8xf32> to vector<8x8xbf16>
    %cst_56 = arith.constant dense<0.000000e+00> : vector<8x32xf32>
    %116 = tpu.matmul %115, %101, %cst_56 {dimension_numbers = #tpu.dot_dimension_numbers<[1], [0], [0], [1], [0, 0, 1, 1], [], []>} : vector<8x8xbf16>, vector<8x32xbf16>, vector<8x32xf32> -> vector<8x32xf32>
    %117 = arith.truncf %116 : vector<8x32xf32> to vector<8x32xbf16>
    %c0_57 = arith.constant 0 : index
    %c96_58 = arith.constant 96 : index
    %118 = vector.load %arg18[%c0_57, %c96_58] : memref<16x128xbf16, #tpu.memory_space<vmem>>, vector<8x32xbf16>
    tpu.vector_store %arg18[%c0_57, %c96_58], %117 {strides = array<i32>} : memref<16x128xbf16, #tpu.memory_space<vmem>>, vector<8x32xbf16>,
    %c8 = arith.constant 8 : index
    %c0_59 = arith.constant 0 : index
    %119 = vector.load %arg17[%c8, %c0_59] : memref<16x384xbf16, #tpu.memory_space<vmem>>, vector<8x32xbf16>
    %c8_60 = arith.constant 8 : index
    %c128_61 = arith.constant 128 : index
    %120 = vector.load %arg17[%c8_60, %c128_61] : memref<16x384xbf16, #tpu.memory_space<vmem>>, vector<8x32xbf16>
    %c8_62 = arith.constant 8 : index
    %c256_63 = arith.constant 256 : index
    %121 = vector.load %arg17[%c8_62, %c256_63] : memref<16x384xbf16, #tpu.memory_space<vmem>>, vector<8x32xbf16>
    "tpu.trace_start"() <{level = 10 : i32, message = "qd,kd->qk"}> : () -> ()
    %cst_64 = arith.constant dense<0.000000e+00> : vector<8x8xf32>
    %122 = tpu.matmul %119, %120, %cst_64 {dimension_numbers = #tpu.dot_dimension_numbers<[1], [1], [0], [0], [0, 0, 1, 0], [], []>} : vector<8x32xbf16>, vector<8x32xbf16>, vector<8x8xf32> -> vector<8x8xf32>
    %cst_65 = arith.constant -1.000000e+30 : f32
    "tpu.trace_stop"() : () -> ()
    %123 = vector.broadcast %cst_65 : f32 to vector<8x8xf32>
    %124 = arith.select %38, %122, %123 : vector<8x8xi1>, vector<8x8xf32>
    %cst_66 = arith.constant dense<0xFF800000> : vector<8xf32>
    %125 = vector.multi_reduction <maximumf>, %124, %cst_66 [1] : vector<8x8xf32> to vector<8xf32>
    %126 = vector.shape_cast %125 : vector<8xf32> to vector<8x1xf32>
    %127 = vector.broadcast %126 : vector<8x1xf32> to vector<8x8xf32>
    %128 = arith.subf %124, %127 : vector<8x8xf32>
    %129 = math.exp %128 : vector<8x8xf32>
    %cst_67 = arith.constant dense<0.000000e+00> : vector<8xf32>
    %130 = vector.multi_reduction <add>, %129, %cst_67 [1] : vector<8x8xf32> to vector<8xf32>
    %131 = vector.shape_cast %130 : vector<8xf32> to vector<8x1xf32>
    %132 = tpu.reciprocal %131 {approx = true} : vector<8x1xf32> -> vector<8x1xf32>
    %133 = vector.broadcast %132 : vector<8x1xf32> to vector<8x8xf32>
    %134 = arith.mulf %129, %133 : vector<8x8xf32>
    %135 = arith.truncf %134 : vector<8x8xf32> to vector<8x8xbf16>
    %cst_68 = arith.constant dense<0.000000e+00> : vector<8x32xf32>
    %136 = tpu.matmul %135, %121, %cst_68 {dimension_numbers = #tpu.dot_dimension_numbers<[1], [0], [0], [1], [0, 0, 1, 1], [], []>} : vector<8x8xbf16>, vector<8x32xbf16>, vector<8x32xf32> -> vector<8x32xf32>
    %137 = arith.truncf %136 : vector<8x32xf32> to vector<8x32xbf16>
    %c8_69 = arith.constant 8 : index
    %c0_70 = arith.constant 0 : index
    %138 = vector.load %arg18[%c8_69, %c0_70] : memref<16x128xbf16, #tpu.memory_space<vmem>>, vector<8x32xbf16>
    tpu.vector_store %arg18[%c8_69, %c0_70], %137 {strides = array<i32>} : memref<16x128xbf16, #tpu.memory_space<vmem>>, vector<8x32xbf16>,
    %c8_71 = arith.constant 8 : index
    %c32_72 = arith.constant 32 : index
    %139 = vector.load %arg17[%c8_71, %c32_72] : memref<16x384xbf16, #tpu.memory_space<vmem>>, vector<8x32xbf16>
    %c8_73 = arith.constant 8 : index
    %c160_74 = arith.constant 160 : index
    %140 = vector.load %arg17[%c8_73, %c160_74] : memref<16x384xbf16, #tpu.memory_space<vmem>>, vector<8x32xbf16>
    %c8_75 = arith.constant 8 : index
    %c288_76 = arith.constant 288 : index
    %141 = vector.load %arg17[%c8_75, %c288_76] : memref<16x384xbf16, #tpu.memory_space<vmem>>, vector<8x32xbf16>
    "tpu.trace_start"() <{level = 10 : i32, message = "qd,kd->qk"}> : () -> ()
    %cst_77 = arith.constant dense<0.000000e+00> : vector<8x8xf32>
    %142 = tpu.matmul %139, %140, %cst_77 {dimension_numbers = #tpu.dot_dimension_numbers<[1], [1], [0], [0], [0, 0, 1, 0], [], []>} : vector<8x32xbf16>, vector<8x32xbf16>, vector<8x8xf32> -> vector<8x8xf32>
    %cst_78 = arith.constant -1.000000e+30 : f32
    "tpu.trace_stop"() : () -> ()
    %143 = vector.broadcast %cst_78 : f32 to vector<8x8xf32>
    %144 = arith.select %38, %142, %143 : vector<8x8xi1>, vector<8x8xf32>
    %cst_79 = arith.constant dense<0xFF800000> : vector<8xf32>
    %145 = vector.multi_reduction <maximumf>, %144, %cst_79 [1] : vector<8x8xf32> to vector<8xf32>
    %146 = vector.shape_cast %145 : vector<8xf32> to vector<8x1xf32>
    %147 = vector.broadcast %146 : vector<8x1xf32> to vector<8x8xf32>
    %148 = arith.subf %144, %147 : vector<8x8xf32>
    %149 = math.exp %148 : vector<8x8xf32>
    %cst_80 = arith.constant dense<0.000000e+00> : vector<8xf32>
    %150 = vector.multi_reduction <add>, %149, %cst_80 [1] : vector<8x8xf32> to vector<8xf32>
    %151 = vector.shape_cast %150 : vector<8xf32> to vector<8x1xf32>
    %152 = tpu.reciprocal %151 {approx = true} : vector<8x1xf32> -> vector<8x1xf32>
    %153 = vector.broadcast %152 : vector<8x1xf32> to vector<8x8xf32>
    %154 = arith.mulf %149, %153 : vector<8x8xf32>
    %155 = arith.truncf %154 : vector<8x8xf32> to vector<8x8xbf16>
    %cst_81 = arith.constant dense<0.000000e+00> : vector<8x32xf32>
    %156 = tpu.matmul %155, %141, %cst_81 {dimension_numbers = #tpu.dot_dimension_numbers<[1], [0], [0], [1], [0, 0, 1, 1], [], []>} : vector<8x8xbf16>, vector<8x32xbf16>, vector<8x32xf32> -> vector<8x32xf32>
    %157 = arith.truncf %156 : vector<8x32xf32> to vector<8x32xbf16>
    %c8_82 = arith.constant 8 : index
    %c32_83 = arith.constant 32 : index
    %158 = vector.load %arg18[%c8_82, %c32_83] : memref<16x128xbf16, #tpu.memory_space<vmem>>, vector<8x32xbf16>
    tpu.vector_store %arg18[%c8_82, %c32_83], %157 {strides = array<i32>} : memref<16x128xbf16, #tpu.memory_space<vmem>>, vector<8x32xbf16>,
    %c8_84 = arith.constant 8 : index
    %c64_85 = arith.constant 64 : index
    %159 = vector.load %arg17[%c8_84, %c64_85] : memref<16x384xbf16, #tpu.memory_space<vmem>>, vector<8x32xbf16>
    %c8_86 = arith.constant 8 : index
    %c192_87 = arith.constant 192 : index
    %160 = vector.load %arg17[%c8_86, %c192_87] : memref<16x384xbf16, #tpu.memory_space<vmem>>, vector<8x32xbf16>
    %c8_88 = arith.constant 8 : index
    %c320_89 = arith.constant 320 : index
    %161 = vector.load %arg17[%c8_88, %c320_89] : memref<16x384xbf16, #tpu.memory_space<vmem>>, vector<8x32xbf16>
    "tpu.trace_start"() <{level = 10 : i32, message = "qd,kd->qk"}> : () -> ()
    %cst_90 = arith.constant dense<0.000000e+00> : vector<8x8xf32>
    %162 = tpu.matmul %159, %160, %cst_90 {dimension_numbers = #tpu.dot_dimension_numbers<[1], [1], [0], [0], [0, 0, 1, 0], [], []>} : vector<8x32xbf16>, vector<8x32xbf16>, vector<8x8xf32> -> vector<8x8xf32>
    %cst_91 = arith.constant -1.000000e+30 : f32
    "tpu.trace_stop"() : () -> ()
    %163 = vector.broadcast %cst_91 : f32 to vector<8x8xf32>
    %164 = arith.select %38, %162, %163 : vector<8x8xi1>, vector<8x8xf32>
    %cst_92 = arith.constant dense<0xFF800000> : vector<8xf32>
    %165 = vector.multi_reduction <maximumf>, %164, %cst_92 [1] : vector<8x8xf32> to vector<8xf32>
    %166 = vector.shape_cast %165 : vector<8xf32> to vector<8x1xf32>
    %167 = vector.broadcast %166 : vector<8x1xf32> to vector<8x8xf32>
    %168 = arith.subf %164, %167 : vector<8x8xf32>
    %169 = math.exp %168 : vector<8x8xf32>
    %cst_93 = arith.constant dense<0.000000e+00> : vector<8xf32>
    %170 = vector.multi_reduction <add>, %169, %cst_93 [1] : vector<8x8xf32> to vector<8xf32>
    %171 = vector.shape_cast %170 : vector<8xf32> to vector<8x1xf32>
    %172 = tpu.reciprocal %171 {approx = true} : vector<8x1xf32> -> vector<8x1xf32>
    %173 = vector.broadcast %172 : vector<8x1xf32> to vector<8x8xf32>
    %174 = arith.mulf %169, %173 : vector<8x8xf32>
    %175 = arith.truncf %174 : vector<8x8xf32> to vector<8x8xbf16>
    %cst_94 = arith.constant dense<0.000000e+00> : vector<8x32xf32>
    %176 = tpu.matmul %175, %161, %cst_94 {dimension_numbers = #tpu.dot_dimension_numbers<[1], [0], [0], [1], [0, 0, 1, 1], [], []>} : vector<8x8xbf16>, vector<8x32xbf16>, vector<8x32xf32> -> vector<8x32xf32>
    %177 = arith.truncf %176 : vector<8x32xf32> to vector<8x32xbf16>
    %c8_95 = arith.constant 8 : index
    %c64_96 = arith.constant 64 : index
    %178 = vector.load %arg18[%c8_95, %c64_96] : memref<16x128xbf16, #tpu.memory_space<vmem>>, vector<8x32xbf16>
    tpu.vector_store %arg18[%c8_95, %c64_96], %177 {strides = array<i32>} : memref<16x128xbf16, #tpu.memory_space<vmem>>, vector<8x32xbf16>,
    %c8_97 = arith.constant 8 : index
    %c96_98 = arith.constant 96 : index
    %179 = vector.load %arg17[%c8_97, %c96_98] : memref<16x384xbf16, #tpu.memory_space<vmem>>, vector<8x32xbf16>
    %c8_99 = arith.constant 8 : index
    %c224_100 = arith.constant 224 : index
    %180 = vector.load %arg17[%c8_99, %c224_100] : memref<16x384xbf16, #tpu.memory_space<vmem>>, vector<8x32xbf16>
    %c8_101 = arith.constant 8 : index
    %c352_102 = arith.constant 352 : index
    %181 = vector.load %arg17[%c8_101, %c352_102] : memref<16x384xbf16, #tpu.memory_space<vmem>>, vector<8x32xbf16>
    "tpu.trace_start"() <{level = 10 : i32, message = "qd,kd->qk"}> : () -> ()
    %cst_103 = arith.constant dense<0.000000e+00> : vector<8x8xf32>
    %182 = tpu.matmul %179, %180, %cst_103 {dimension_numbers = #tpu.dot_dimension_numbers<[1], [1], [0], [0], [0, 0, 1, 0], [], []>} : vector<8x32xbf16>, vector<8x32xbf16>, vector<8x8xf32> -> vector<8x8xf32>
    %cst_104 = arith.constant -1.000000e+30 : f32
    "tpu.trace_stop"() : () -> ()
    %183 = vector.broadcast %cst_104 : f32 to vector<8x8xf32>
    %184 = arith.select %38, %182, %183 : vector<8x8xi1>, vector<8x8xf32>
    %cst_105 = arith.constant dense<0xFF800000> : vector<8xf32>
    %185 = vector.multi_reduction <maximumf>, %184, %cst_105 [1] : vector<8x8xf32> to vector<8xf32>
    %186 = vector.shape_cast %185 : vector<8xf32> to vector<8x1xf32>
    %187 = vector.broadcast %186 : vector<8x1xf32> to vector<8x8xf32>
    %188 = arith.subf %184, %187 : vector<8x8xf32>
    %189 = math.exp %188 : vector<8x8xf32>
    %cst_106 = arith.constant dense<0.000000e+00> : vector<8xf32>
    %190 = vector.multi_reduction <add>, %189, %cst_106 [1] : vector<8x8xf32> to vector<8xf32>
    %191 = vector.shape_cast %190 : vector<8xf32> to vector<8x1xf32>
    %192 = tpu.reciprocal %191 {approx = true} : vector<8x1xf32> -> vector<8x1xf32>
    %193 = vector.broadcast %192 : vector<8x1xf32> to vector<8x8xf32>
    %194 = arith.mulf %189, %193 : vector<8x8xf32>
    %195 = arith.truncf %194 : vector<8x8xf32> to vector<8x8xbf16>
    %cst_107 = arith.constant dense<0.000000e+00> : vector<8x32xf32>
    %196 = tpu.matmul %195, %181, %cst_107 {dimension_numbers = #tpu.dot_dimension_numbers<[1], [0], [0], [1], [0, 0, 1, 1], [], []>} : vector<8x8xbf16>, vector<8x32xbf16>, vector<8x32xf32> -> vector<8x32xf32>
    %197 = arith.truncf %196 : vector<8x32xf32> to vector<8x32xbf16>
    %c8_108 = arith.constant 8 : index
    %c96_109 = arith.constant 96 : index
    %198 = vector.load %arg18[%c8_108, %c96_109] : memref<16x128xbf16, #tpu.memory_space<vmem>>, vector<8x32xbf16>
    tpu.vector_store %arg18[%c8_108, %c96_109], %197 {strides = array<i32>} : memref<16x128xbf16, #tpu.memory_space<vmem>>, vector<8x32xbf16>,
    %c0_110 = arith.constant 0 : index
    %c0_111 = arith.constant 0 : index
    %199 = vector.load %arg18[%c0_110, %c0_111] : memref<16x128xbf16, #tpu.memory_space<vmem>>, vector<16x128xbf16>
    %c0_112 = arith.constant 0 : index
    %c0_113 = arith.constant 0 : index
    %c0_114 = arith.constant 0 : index
    %200 = vector.load %arg8[%c0_112, %c0_113, %c0_114] : memref<1x128x128xbf16, #tpu.memory_space<vmem>>, vector<1x128x128xbf16>
    %201 = vector.shape_cast %200 : vector<1x128x128xbf16> to vector<128x128xbf16>
    %cst_115 = arith.constant dense<0.000000e+00> : vector<16x128xf32>
    %202 = tpu.matmul %199, %201, %cst_115 {dimension_numbers = #tpu.dot_dimension_numbers<[1], [0], [0], [1], [0, 0, 1, 1], [], []>} : vector<16x128xbf16>, vector<128x128xbf16>, vector<16x128xf32> -> vector<16x128xf32>
    %203 = arith.addf %3, %202 : vector<16x128xf32>
    %c0_116 = arith.constant 0 : index
    %c0_117 = arith.constant 0 : index
    %c0_118 = arith.constant 0 : index
    %204 = vector.load %arg9[%c0_116, %c0_117, %c0_118] : memref<1x1x128xf32, #tpu.memory_space<vmem>>, vector<1x1x128xf32>
    %205 = vector.shape_cast %204 : vector<1x1x128xf32> to vector<1x128xf32>
    %206 = vector.broadcast %205 : vector<1x128xf32> to vector<16x128xf32>
    %207 = arith.addf %203, %206 : vector<16x128xf32>
    %c0_119 = arith.constant 0 : index
    %c0_120 = arith.constant 0 : index
    %c0_121 = arith.constant 0 : index
    %208 = vector.load %arg10[%c0_119, %c0_120, %c0_121] : memref<1x1x128xf32, #tpu.memory_space<vmem>>, vector<1x1x128xf32>
    %209 = vector.shape_cast %208 : vector<1x1x128xf32> to vector<1x128xf32>
    %c0_122 = arith.constant 0 : index
    %c0_123 = arith.constant 0 : index
    %c0_124 = arith.constant 0 : index
    %210 = vector.load %arg11[%c0_122, %c0_123, %c0_124] : memref<1x1x128xf32, #tpu.memory_space<vmem>>, vector<1x1x128xf32>
    %211 = vector.shape_cast %210 : vector<1x1x128xf32> to vector<1x128xf32>
    %cst_125 = arith.constant dense<0.000000e+00> : vector<16xf32>
    %212 = vector.multi_reduction <add>, %207, %cst_125 [1] : vector<16x128xf32> to vector<16xf32>
    %213 = vector.shape_cast %212 : vector<16xf32> to vector<16x1xf32>
    %cst_126 = arith.constant 1.280000e+02 : f32
    %214 = vector.broadcast %cst_126 : f32 to vector<16x1xf32>
    %215 = arith.divf %213, %214 : vector<16x1xf32>
    %216 = vector.broadcast %215 : vector<16x1xf32> to vector<16x128xf32>
    %217 = arith.subf %207, %216 : vector<16x128xf32>
    %218 = arith.mulf %217, %217 : vector<16x128xf32>
    %cst_127 = arith.constant dense<0.000000e+00> : vector<16xf32>
    %219 = vector.multi_reduction <add>, %218, %cst_127 [1] : vector<16x128xf32> to vector<16xf32>
    %220 = vector.shape_cast %219 : vector<16xf32> to vector<16x1xf32>
    %cst_128 = arith.constant 1.280000e+02 : f32
    %221 = vector.broadcast %cst_128 : f32 to vector<16x1xf32>
    %222 = arith.divf %220, %221 : vector<16x1xf32>
    %223 = vector.broadcast %215 : vector<16x1xf32> to vector<16x128xf32>
    %224 = arith.subf %207, %223 : vector<16x128xf32>
    %cst_129 = arith.constant 9.99999974E-6 : f32
    %225 = vector.broadcast %cst_129 : f32 to vector<16x1xf32>
    %226 = arith.addf %222, %225 : vector<16x1xf32>
    %227 = math.rsqrt %226 : vector<16x1xf32>
    %228 = vector.broadcast %227 : vector<16x1xf32> to vector<16x128xf32>
    %229 = arith.mulf %224, %228 : vector<16x128xf32>
    %230 = vector.broadcast %209 : vector<1x128xf32> to vector<16x128xf32>
    %231 = arith.mulf %229, %230 : vector<16x128xf32>
    %232 = vector.broadcast %211 : vector<1x128xf32> to vector<16x128xf32>
    %233 = arith.addf %231, %232 : vector<16x128xf32>
    %234 = arith.truncf %233 : vector<16x128xf32> to vector<16x128xbf16>
    %c0_130 = arith.constant 0 : index
    %c0_131 = arith.constant 0 : index
    %c0_132 = arith.constant 0 : index
    %235 = vector.load %arg12[%c0_130, %c0_131, %c0_132] : memref<1x128x256xbf16, #tpu.memory_space<vmem>>, vector<1x128x256xbf16>
    %236 = vector.shape_cast %235 : vector<1x128x256xbf16> to vector<128x256xbf16>
    %cst_133 = arith.constant dense<0.000000e+00> : vector<16x256xf32>
    %237 = tpu.matmul %234, %236, %cst_133 {dimension_numbers = #tpu.dot_dimension_numbers<[1], [0], [0], [1], [0, 0, 1, 1], [], []>} : vector<16x128xbf16>, vector<128x256xbf16>, vector<16x256xf32> -> vector<16x256xf32>
    %c0_134 = arith.constant 0 : index
    %c0_135 = arith.constant 0 : index
    %c0_136 = arith.constant 0 : index
    %238 = vector.load %arg13[%c0_134, %c0_135, %c0_136] : memref<1x1x256xf32, #tpu.memory_space<vmem>>, vector<1x1x256xf32>
    %239 = vector.shape_cast %238 : vector<1x1x256xf32> to vector<1x256xf32>
    %240 = vector.broadcast %239 : vector<1x256xf32> to vector<16x256xf32>
    %241 = arith.addf %237, %240 : vector<16x256xf32>
    %cst_137 = arith.constant 5.000000e-01 : f32
    %242 = vector.broadcast %cst_137 : f32 to vector<16x256xf32>
    %243 = arith.mulf %242, %241 : vector<16x256xf32>
    %cst_138 = arith.constant 4.471500e-02 : f32
    %244 = vector.broadcast %cst_138 : f32 to vector<16x256xf32>
    %245 = arith.mulf %244, %241 : vector<16x256xf32>
    %246 = arith.mulf %245, %241 : vector<16x256xf32>
    %247 = arith.mulf %246, %241 : vector<16x256xf32>
    %248 = arith.addf %241, %247 : vector<16x256xf32>
    %cst_139 = arith.constant 0.797884583 : f32
    %249 = vector.broadcast %cst_139 : f32 to vector<16x256xf32>
    %250 = arith.mulf %249, %248 : vector<16x256xf32>
    %251 = math.tanh %250 : vector<16x256xf32>
    %cst_140 = arith.constant 1.000000e+00 : f32
    %252 = vector.broadcast %cst_140 : f32 to vector<16x256xf32>
    %253 = arith.addf %252, %251 : vector<16x256xf32>
    %254 = arith.mulf %243, %253 : vector<16x256xf32>
    %255 = arith.truncf %254 : vector<16x256xf32> to vector<16x256xbf16>
    %c0_141 = arith.constant 0 : index
    %c0_142 = arith.constant 0 : index
    %c0_143 = arith.constant 0 : index
    %256 = vector.load %arg14[%c0_141, %c0_142, %c0_143] : memref<1x256x128xbf16, #tpu.memory_space<vmem>>, vector<1x256x128xbf16>
    %257 = vector.shape_cast %256 : vector<1x256x128xbf16> to vector<256x128xbf16>
    %cst_144 = arith.constant dense<0.000000e+00> : vector<16x128xf32>
    %258 = tpu.matmul %255, %257, %cst_144 {dimension_numbers = #tpu.dot_dimension_numbers<[1], [0], [0], [1], [0, 0, 1, 1], [], []>} : vector<16x256xbf16>, vector<256x128xbf16>, vector<16x128xf32> -> vector<16x128xf32>
    %c0_145 = arith.constant 0 : index
    %c0_146 = arith.constant 0 : index
    %c0_147 = arith.constant 0 : index
    %259 = vector.load %arg15[%c0_145, %c0_146, %c0_147] : memref<1x1x128xf32, #tpu.memory_space<vmem>>, vector<1x1x128xf32>
    %260 = vector.shape_cast %259 : vector<1x1x128xf32> to vector<1x128xf32>
    %261 = vector.broadcast %260 : vector<1x128xf32> to vector<16x128xf32>
    %262 = arith.addf %258, %261 : vector<16x128xf32>
    %263 = arith.addf %207, %262 : vector<16x128xf32>
    %c0_148 = arith.constant 0 : index
    %c0_149 = arith.constant 0 : index
    %264 = vector.load %arg16[%c0_148, %c0_149] : memref<16x128xf32, #tpu.memory_space<vmem>>, vector<16x128xf32>
    tpu.vector_store %arg16[%c0_148, %c0_149], %263 {strides = array<i32>} : memref<16x128xf32, #tpu.memory_space<vmem>>, vector<16x128xf32>,
    return
  }
  func.func @transform_0(%arg0: i32, %arg1: i32) -> (i32, i32) {
    %c0_i32 = arith.constant 0 : i32
    %c0_i32_0 = arith.constant 0 : i32
    return %arg0, %c0_i32 : i32, i32
  }
  func.func @transform_1(%arg0: i32, %arg1: i32) -> (i32, i32) {
    %c0_i32 = arith.constant 0 : i32
    %c0_i32_0 = arith.constant 0 : i32
    %c0_i32_1 = arith.constant 0 : i32
    return %c0_i32, %c0_i32_0 : i32, i32
  }
  func.func @transform_2(%arg0: i32, %arg1: i32) -> (i32, i32) {
    %c0_i32 = arith.constant 0 : i32
    %c0_i32_0 = arith.constant 0 : i32
    %c0_i32_1 = arith.constant 0 : i32
    return %c0_i32, %c0_i32_0 : i32, i32
  }
  func.func @transform_3(%arg0: i32, %arg1: i32) -> (i32, i32, i32) {
    %c0_i32 = arith.constant 0 : i32
    %c0_i32_0 = arith.constant 0 : i32
    %c0_i32_1 = arith.constant 0 : i32
    return %arg1, %c0_i32, %c0_i32_0 : i32, i32, i32
  }
  func.func @transform_4(%arg0: i32, %arg1: i32) -> (i32, i32, i32) {
    %c0_i32 = arith.constant 0 : i32
    %c0_i32_0 = arith.constant 0 : i32
    %c0_i32_1 = arith.constant 0 : i32
    return %arg1, %c0_i32, %c0_i32_0 : i32, i32, i32
  }
  func.func @transform_5(%arg0: i32, %arg1: i32) -> (i32, i32, i32) {
    %c0_i32 = arith.constant 0 : i32
    %c0_i32_0 = arith.constant 0 : i32
    %c0_i32_1 = arith.constant 0 : i32
    return %arg1, %c0_i32, %c0_i32_0 : i32, i32, i32
  }
  func.func @transform_6(%arg0: i32, %arg1: i32) -> (i32, i32, i32) {
    %c0_i32 = arith.constant 0 : i32
    %c0_i32_0 = arith.constant 0 : i32
    %c0_i32_1 = arith.constant 0 : i32
    return %arg1, %c0_i32, %c0_i32_0 : i32, i32, i32
  }
  func.func @transform_7(%arg0: i32, %arg1: i32) -> (i32, i32, i32) {
    %c0_i32 = arith.constant 0 : i32
    %c0_i32_0 = arith.constant 0 : i32
    %c0_i32_1 = arith.constant 0 : i32
    return %arg1, %c0_i32, %c0_i32_0 : i32, i32, i32
  }
  func.func @transform_8(%arg0: i32, %arg1: i32) -> (i32, i32, i32) {
    %c0_i32 = arith.constant 0 : i32
    %c0_i32_0 = arith.constant 0 : i32
    %c0_i32_1 = arith.constant 0 : i32
    return %arg1, %c0_i32, %c0_i32_0 : i32, i32, i32
  }
  func.func @transform_9(%arg0: i32, %arg1: i32) -> (i32, i32, i32) {
    %c0_i32 = arith.constant 0 : i32
    %c0_i32_0 = arith.constant 0 : i32
    %c0_i32_1 = arith.constant 0 : i32
    return %arg1, %c0_i32, %c0_i32_0 : i32, i32, i32
  }
  func.func @transform_10(%arg0: i32, %arg1: i32) -> (i32, i32, i32) {
    %c0_i32 = arith.constant 0 : i32
    %c0_i32_0 = arith.constant 0 : i32
    %c0_i32_1 = arith.constant 0 : i32
    return %arg1, %c0_i32, %c0_i32_0 : i32, i32, i32
  }
  func.func @transform_11(%arg0: i32, %arg1: i32) -> (i32, i32, i32) {
    %c0_i32 = arith.constant 0 : i32
    %c0_i32_0 = arith.constant 0 : i32
    %c0_i32_1 = arith.constant 0 : i32
    return %arg1, %c0_i32, %c0_i32_0 : i32, i32, i32
  }
  func.func @transform_12(%arg0: i32, %arg1: i32) -> (i32, i32, i32) {
    %c0_i32 = arith.constant 0 : i32
    %c0_i32_0 = arith.constant 0 : i32
    %c0_i32_1 = arith.constant 0 : i32
    return %arg1, %c0_i32, %c0_i32_0 : i32, i32, i32
  }
  func.func @transform_13(%arg0: i32, %arg1: i32) -> (i32, i32, i32) {
    %c0_i32 = arith.constant 0 : i32
    %c0_i32_0 = arith.constant 0 : i32
    %c0_i32_1 = arith.constant 0 : i32
    return %arg1, %c0_i32, %c0_i32_0 : i32, i32, i32
  }
  func.func @transform_14(%arg0: i32, %arg1: i32) -> (i32, i32) {
    %c0_i32 = arith.constant 0 : i32
    %c0_i32_0 = arith.constant 0 : i32
    return %arg0, %c0_i32 : i32, i32
  }
}

</mosaic_0001>

<llo_original>
// kernel: tpu_custom_call.1
$region0: #{tpu_custom_call.1}
  #allocation0 [shape = 'u32[]', space=smem, size = 0x4, offset = 0x4, fixed_abs, tag = 'smem constant byte address 0x4 - core index']
  #allocation1 [shape = 'u32[144,128]{1,0:T(1,128)}', space=vmem, size = 0x12000, scoped, tag = 'internal scratch']
  #allocation2 [shape = 'bf16[16,384]{1,0:T(8,128)(2,1)}', space=vmem, size = 0x3000, scoped, tag = 'scratch operand']
  #allocation3 [shape = 'bf16[16,128]{1,0:T(8,128)(2,1)}', space=vmem, size = 0x1000, scoped, tag = 'scratch operand']
  %s0 = inlined_call_operand.hbm [shape: bf16[16,64], index: 0, kind: input, shape index: {}]
  %s1 = inlined_call_operand.hbm [shape: bf16[64,128], index: 1, kind: input, shape index: {}]
  %s2 = inlined_call_operand.hbm [shape: f32[16,128], index: 2, kind: input, shape index: {}]
  %s3 = inlined_call_operand.vmem [shape: f32[2,1,128], index: 3, kind: input, shape index: {}]
  %s4 = inlined_call_operand.hbm [shape: f32[2,1,128], index: 4, kind: input, shape index: {}]
  %s5 = inlined_call_operand.hbm [shape: bf16[2,128,384], index: 5, kind: input, shape index: {}]
  %s6 = inlined_call_operand.hbm [shape: bf16[2,128,128], index: 6, kind: input, shape index: {}]
  %s7 = inlined_call_operand.vmem [shape: f32[2,1,128], index: 7, kind: input, shape index: {}]
  %s8 = inlined_call_operand.vmem [shape: f32[2,1,128], index: 8, kind: input, shape index: {}]
  %s9 = inlined_call_operand.vmem [shape: f32[2,1,128], index: 9, kind: input, shape index: {}]
  %s10 = inlined_call_operand.hbm [shape: bf16[2,128,256], index: 10, kind: input, shape index: {}]
  %s11 = inlined_call_operand.vmem [shape: f32[2,1,256], index: 11, kind: input, shape index: {}]
  %s12 = inlined_call_operand.hbm [shape: bf16[2,256,128], index: 12, kind: input, shape index: {}]
  %s13 = inlined_call_operand.vmem [shape: f32[2,1,128], index: 13, kind: input, shape index: {}]
  %s14 = inlined_call_operand.hbm [shape: f32[16,128], index: 14, kind: output, shape index: {}]
  %s15 = sld [smem:[#allocation0]]
  $region125: #{tpu_custom_call.1} parent=0
    _
  %s17 = ssub.s32 1, %s15
  %s18 = scalar_select 0, %s17, %s15
  $region1: #{tpu_custom_call.1} parent=0
    #allocation4 [shape = 'u8[4096]{0}', space=vmem, size = 0x1000, scoped, tag = 'input window, operand 0, single buffered']
    #allocation5 [shape = 's32[2]{0}', space=sflag, size = 0x8, scoped, tag = 'scoped memory for tpu_custom_call.1']
    #allocation6 [shape = 's32[2]{0}', space=sflag, size = 0x8, scoped, tag = 'scoped memory for tpu_custom_call.1']
    #allocation7 [shape = 'u8[16384]{0}', space=vmem, size = 0x4000, scoped, tag = 'input window, operand 1, single buffered']
    #allocation8 [shape = 's32[1]{0}', space=sflag, size = 0x4, scoped, tag = 'scoped memory for tpu_custom_call.1']
    #allocation9 [shape = 'u8[8192]{0}', space=vmem, size = 0x2000, scoped, tag = 'input window, operand 2, single buffered']
    #allocation10 [shape = 'u8[1024]{0}', space=vmem, size = 0x400, scoped, tag = 'input window, operand 4']
    #allocation11 [shape = 's32[2]{0}', space=sflag, size = 0x8, scoped, tag = 'scoped memory for tpu_custom_call.1']
    #allocation12 [shape = 'u8[196608]{0}', space=vmem, size = 0x30000, scoped, tag = 'input window, operand 5']
    #allocation13 [shape = 'u8[65536]{0}', space=vmem, size = 0x10000, scoped, tag = 'input window, operand 6']
    #allocation14 [shape = 's32[2]{0}', space=sflag, size = 0x8, scoped, tag = 'scoped memory for tpu_custom_call.1']
    #allocation15 [shape = 'u8[131072]{0}', space=vmem, size = 0x20000, scoped, tag = 'input window, operand 10']
    #allocation16 [shape = 'u8[131072]{0}', space=vmem, size = 0x20000, scoped, tag = 'input window, operand 12']
    #allocation17 [shape = 's32[2]{0}', space=sflag, size = 0x8, scoped, tag = 'scoped memory for tpu_custom_call.1']
    #allocation18 [shape = 'u8[8192]{0}', space=vmem, size = 0x2000, scoped, tag = 'output window, operand 0, single buffered']
    %19 = vsyncpa [#allocation5], 0
    %20 = vsyncpa [#allocation8], 0
    %21 = vsyncpa [#allocation11], 0
    %s22 = scalar_lea.sflag [#allocation11], 1
    %23 = vsyncpa %s22, 0
    %24 = vsyncpa [#allocation14], 0
    %s25 = scalar_lea.sflag [#allocation14], 1
    %26 = vsyncpa %s25, 0
    %27 = vsyncpa [#allocation17], 0
    %s28 = scalar_lea.sflag [#allocation17], 1
    %29 = vsyncpa %s28, 0
    %30 = vsyncpa [#allocation6], 0
    loop: start=0, step=1, limit=4
    $region2: #{tpu_custom_call.1} parent=1 // loop_pre_header
      _
    $region3: #{tpu_custom_call.1} parent=1 // loop_header
      %s32 = sphi 0, %s36
      %p33 = scmp.ge.s32.totalorder %s32, 4
      %s39 = sphi 0, %s51
      %s40 = sphi 0, %s47
      %s41 = sphi 0, %s39
      %s42 = sphi 0, %s40
      %s43 = sphi 0, %s41
      %s44 = sphi 0, %s42
      %s54 = sphi 0, %s56
      %s57 = sphi 0, %s54
      %s58 = sphi 0, %s57
      %s74 = sphi 0, %s58
      %s78 = sphi 0, %s78
      %s80 = sphi 0, %s78
      %s81 = sphi 0, %s80
      %s95 = sphi 0, %s81
      %s99 = sphi 0, %s99
      %s101 = sphi 0, %s99
      %s102 = sphi 0, %s101
      %s116 = sphi 0, %s102
      %s122 = sphi 0, %s124
      %s125 = sphi 0, %s122
      %s126 = sphi 0, %s125
      %s142 = sphi 0, %s126
      %s148 = sphi 0, %s150
      %s151 = sphi 0, %s148
      %s152 = sphi 0, %s151
      %s168 = sphi 0, %s152
      %s174 = sphi 0, %s176
      %s177 = sphi 0, %s174
      %s178 = sphi 0, %s177
      %s194 = sphi 0, %s178
      %s200 = sphi 0, %s202
      %s203 = sphi 0, %s200
      %s204 = sphi 0, %s203
      %s220 = sphi 0, %s204
      %s226 = sphi 0, %s228
      %s229 = sphi 0, %s226
      %s230 = sphi 0, %s229
      %s246 = sphi 0, %s230
      %s252 = sphi 0, %s254
      %s255 = sphi 0, %s252
      %s256 = sphi 0, %s255
      %s272 = sphi 0, %s256
      %s278 = sphi 0, %s280
      %s281 = sphi 0, %s278
      %s282 = sphi 0, %s281
      %s298 = sphi 0, %s282
      %s304 = sphi 0, %s306
      %s307 = sphi 0, %s304
      %s308 = sphi 0, %s307
      %s324 = sphi 0, %s308
      %s330 = sphi 0, %s332
      %s333 = sphi 0, %s330
      %s334 = sphi 0, %s333
      %s350 = sphi 0, %s334
      %s356 = sphi 0, %s358
      %s359 = sphi 0, %s356
      %s360 = sphi 0, %s359
      %s376 = sphi 0, %s360
      %s382 = sphi 0, %s384
      %s385 = sphi 0, %s382
      %s386 = sphi 0, %s385
      %s402 = sphi 0, %s386
      %s408 = sphi 0, %s410
      %s411 = sphi 0, %s408
      %s412 = sphi 0, %s411
      %s428 = sphi 0, %s412
    $region4: #{tpu_custom_call.1} parent=1 // loop_header_branch
      %35 = sbr.rel (%p33) target = $region8
    $region5: #{tpu_custom_call.1} parent=1 // loop_body
      %s37 = ssub.s32 %s32, 1
      %s38 = ssub.s32 %s32, 2
      %s45 = sadd.s32 1, %s40
      %p46 = scmp.ge.s32.totalorder %s45, 2
      %s47 = scalar_select %p46, 0, %s45
      %s48 = sadd.s32 1, %s39
      %s49 = scalar_select %p46, %s48, %s39
      %p50 = scmp.ge.s32.totalorder %s49, 1
      %s51 = scalar_select %p50, 0, %s49
      %s52 = ssub.s32 %s39, %s51
      %p53 = scmp.eq.s32.totalorder %s52, 0
      %s55 = sadd.s32 %s54, 1
      %s56 = scalar_select %p53, %s54, %s55
      %p59 = pneg %p53
      %p60 = scmp.eq.s32.totalorder %s32, 1
      %p61 = por %p59, %p60
      %p62 = scmp.ne.s32.totalorder %s54, %s57
      %p63 = scmp.eq.s32.totalorder %s32, 0
      %p64 = por %p62, %p63
      %p65 = scmp.ne.s32.totalorder %s54, %s57
      %p66 = scmp.eq.s32.totalorder %s37, 1
      %p67 = por %p65, %p66
      %p68 = scmp.ne.s32.totalorder %s57, %s58
      %p69 = scmp.eq.s32.totalorder %s37, 0
      %p70 = por %p68, %p69
      %p71 = scmp.ne.s32.totalorder %s57, %s58
      %p72 = scmp.eq.s32.totalorder %s38, 1
      %p73 = por %p71, %p72
      %p75 = scmp.ne.s32.totalorder %s58, %s74
      %p76 = scmp.eq.s32.totalorder %s38, 0
      %p77 = por %p75, %p76
      %s79 = sadd.s32 %s78, 1
      %p82 = scmp.eq.s32.totalorder %s32, 1
      %p83 = scmp.ne.s32.totalorder %s78, %s80
      %p84 = scmp.eq.s32.totalorder %s32, 0
      %p85 = por %p83, %p84
      %p86 = scmp.ne.s32.totalorder %s78, %s80
      %p87 = scmp.eq.s32.totalorder %s37, 1
      %p88 = por %p86, %p87
      %p89 = scmp.ne.s32.totalorder %s80, %s81
      %p90 = scmp.eq.s32.totalorder %s37, 0
      %p91 = por %p89, %p90
      %p92 = scmp.ne.s32.totalorder %s80, %s81
      %p93 = scmp.eq.s32.totalorder %s38, 1
      %p94 = por %p92, %p93
      %p96 = scmp.ne.s32.totalorder %s81, %s95
      %p97 = scmp.eq.s32.totalorder %s38, 0
      %p98 = por %p96, %p97
      %s100 = sadd.s32 %s99, 1
      %p103 = scmp.eq.s32.totalorder %s32, 1
      %p104 = scmp.ne.s32.totalorder %s99, %s101
      %p105 = scmp.eq.s32.totalorder %s32, 0
      %p106 = por %p104, %p105
      %p107 = scmp.ne.s32.totalorder %s99, %s101
      %p108 = scmp.eq.s32.totalorder %s37, 1
      %p109 = por %p107, %p108
      %p110 = scmp.ne.s32.totalorder %s101, %s102
      %p111 = scmp.eq.s32.totalorder %s37, 0
      %p112 = por %p110, %p111
      %p113 = scmp.ne.s32.totalorder %s101, %s102
      %p114 = scmp.eq.s32.totalorder %s38, 1
      %p115 = por %p113, %p114
      %p117 = scmp.ne.s32.totalorder %s102, %s116
      %p118 = scmp.eq.s32.totalorder %s38, 0
      %p119 = por %p117, %p118
      %s120 = ssub.s32 %s40, %s47
      %p121 = scmp.eq.s32.totalorder %s120, 0
      %s123 = sadd.s32 %s122, 1
      %s124 = scalar_select %p121, %s122, %s123
      %p127 = pneg %p121
      %p128 = scmp.eq.s32.totalorder %s32, 1
      %p129 = por %p127, %p128
      %p130 = scmp.ne.s32.totalorder %s122, %s125
      %p131 = scmp.eq.s32.totalorder %s32, 0
      %p132 = por %p130, %p131
      %p133 = scmp.ne.s32.totalorder %s122, %s125
      %p134 = scmp.eq.s32.totalorder %s37, 1
      %p135 = por %p133, %p134
      %p136 = scmp.ne.s32.totalorder %s125, %s126
      %p137 = scmp.eq.s32.totalorder %s37, 0
      %p138 = por %p136, %p137
      %p139 = scmp.ne.s32.totalorder %s125, %s126
      %p140 = scmp.eq.s32.totalorder %s38, 1
      %p141 = por %p139, %p140
      %p143 = scmp.ne.s32.totalorder %s126, %s142
      %p144 = scmp.eq.s32.totalorder %s38, 0
      %p145 = por %p143, %p144
      %s146 = ssub.s32 %s40, %s47
      %p147 = scmp.eq.s32.totalorder %s146, 0
      %s149 = sadd.s32 %s148, 1
      %s150 = scalar_select %p147, %s148, %s149
      %p153 = pneg %p147
      %p154 = scmp.eq.s32.totalorder %s32, 1
      %p155 = por %p153, %p154
      %p156 = scmp.ne.s32.totalorder %s148, %s151
      %p157 = scmp.eq.s32.totalorder %s32, 0
      %p158 = por %p156, %p157
      %p159 = scmp.ne.s32.totalorder %s148, %s151
      %p160 = scmp.eq.s32.totalorder %s37, 1
      %p161 = por %p159, %p160
      %p162 = scmp.ne.s32.totalorder %s151, %s152
      %p163 = scmp.eq.s32.totalorder %s37, 0
      %p164 = por %p162, %p163
      %p165 = scmp.ne.s32.totalorder %s151, %s152
      %p166 = scmp.eq.s32.totalorder %s38, 1
      %p167 = por %p165, %p166
      %p169 = scmp.ne.s32.totalorder %s152, %s168
      %p170 = scmp.eq.s32.totalorder %s38, 0
      %p171 = por %p169, %p170
      %s172 = ssub.s32 %s40, %s47
      %p173 = scmp.eq.s32.totalorder %s172, 0
      %s175 = sadd.s32 %s174, 1
      %s176 = scalar_select %p173, %s174, %s175
      %p179 = pneg %p173
      %p180 = scmp.eq.s32.totalorder %s32, 1
      %p181 = por %p179, %p180
      %p182 = scmp.ne.s32.totalorder %s174, %s177
      %p183 = scmp.eq.s32.totalorder %s32, 0
      %p184 = por %p182, %p183
      %p185 = scmp.ne.s32.totalorder %s174, %s177
      %p186 = scmp.eq.s32.totalorder %s37, 1
      %p187 = por %p185, %p186
      %p188 = scmp.ne.s32.totalorder %s177, %s178
      %p189 = scmp.eq.s32.totalorder %s37, 0
      %p190 = por %p188, %p189
      %p191 = scmp.ne.s32.totalorder %s177, %s178
      %p192 = scmp.eq.s32.totalorder %s38, 1
      %p193 = por %p191, %p192
      %p195 = scmp.ne.s32.totalorder %s178, %s194
      %p196 = scmp.eq.s32.totalorder %s38, 0
      %p197 = por %p195, %p196
      %s198 = ssub.s32 %s40, %s47
      %p199 = scmp.eq.s32.totalorder %s198, 0
      %s201 = sadd.s32 %s200, 1
      %s202 = scalar_select %p199, %s200, %s201
      %p205 = pneg %p199
      %p206 = scmp.eq.s32.totalorder %s32, 1
      %p207 = por %p205, %p206
      %p208 = scmp.ne.s32.totalorder %s200, %s203
      %p209 = scmp.eq.s32.totalorder %s32, 0
      %p210 = por %p208, %p209
      %p211 = scmp.ne.s32.totalorder %s200, %s203
      %p212 = scmp.eq.s32.totalorder %s37, 1
      %p213 = por %p211, %p212
      %p214 = scmp.ne.s32.totalorder %s203, %s204
      %p215 = scmp.eq.s32.totalorder %s37, 0
      %p216 = por %p214, %p215
      %p217 = scmp.ne.s32.totalorder %s203, %s204
      %p218 = scmp.eq.s32.totalorder %s38, 1
      %p219 = por %p217, %p218
      %p221 = scmp.ne.s32.totalorder %s204, %s220
      %p222 = scmp.eq.s32.totalorder %s38, 0
      %p223 = por %p221, %p222
      %s224 = ssub.s32 %s40, %s47
      %p225 = scmp.eq.s32.totalorder %s224, 0
      %s227 = sadd.s32 %s226, 1
      %s228 = scalar_select %p225, %s226, %s227
      %p231 = pneg %p225
      %p232 = scmp.eq.s32.totalorder %s32, 1
      %p233 = por %p231, %p232
      %p234 = scmp.ne.s32.totalorder %s226, %s229
      %p235 = scmp.eq.s32.totalorder %s32, 0
      %p236 = por %p234, %p235
      %p237 = scmp.ne.s32.totalorder %s226, %s229
      %p238 = scmp.eq.s32.totalorder %s37, 1
      %p239 = por %p237, %p238
      %p240 = scmp.ne.s32.totalorder %s229, %s230
      %p241 = scmp.eq.s32.totalorder %s37, 0
      %p242 = por %p240, %p241
      %p243 = scmp.ne.s32.totalorder %s229, %s230
      %p244 = scmp.eq.s32.totalorder %s38, 1
      %p245 = por %p243, %p244
      %p247 = scmp.ne.s32.totalorder %s230, %s246
      %p248 = scmp.eq.s32.totalorder %s38, 0
      %p249 = por %p247, %p248
      %s250 = ssub.s32 %s40, %s47
      %p251 = scmp.eq.s32.totalorder %s250, 0
      %s253 = sadd.s32 %s252, 1
      %s254 = scalar_select %p251, %s252, %s253
      %p257 = pneg %p251
      %p258 = scmp.eq.s32.totalorder %s32, 1
      %p259 = por %p257, %p258
      %p260 = scmp.ne.s32.totalorder %s252, %s255
      %p261 = scmp.eq.s32.totalorder %s32, 0
      %p262 = por %p260, %p261
      %p263 = scmp.ne.s32.totalorder %s252, %s255
      %p264 = scmp.eq.s32.totalorder %s37, 1
      %p265 = por %p263, %p264
      %p266 = scmp.ne.s32.totalorder %s255, %s256
      %p267 = scmp.eq.s32.totalorder %s37, 0
      %p268 = por %p266, %p267
      %p269 = scmp.ne.s32.totalorder %s255, %s256
      %p270 = scmp.eq.s32.totalorder %s38, 1
      %p271 = por %p269, %p270
      %p273 = scmp.ne.s32.totalorder %s256, %s272
      %p274 = scmp.eq.s32.totalorder %s38, 0
      %p275 = por %p273, %p274
      %s276 = ssub.s32 %s40, %s47
      %p277 = scmp.eq.s32.totalorder %s276, 0
      %s279 = sadd.s32 %s278, 1
      %s280 = scalar_select %p277, %s278, %s279
      %p283 = pneg %p277
      %p284 = scmp.eq.s32.totalorder %s32, 1
      %p285 = por %p283, %p284
      %p286 = scmp.ne.s32.totalorder %s278, %s281
      %p287 = scmp.eq.s32.totalorder %s32, 0
      %p288 = por %p286, %p287
      %p289 = scmp.ne.s32.totalorder %s278, %s281
      %p290 = scmp.eq.s32.totalorder %s37, 1
      %p291 = por %p289, %p290
      %p292 = scmp.ne.s32.totalorder %s281, %s282
      %p293 = scmp.eq.s32.totalorder %s37, 0
      %p294 = por %p292, %p293
      %p295 = scmp.ne.s32.totalorder %s281, %s282
      %p296 = scmp.eq.s32.totalorder %s38, 1
      %p297 = por %p295, %p296
      %p299 = scmp.ne.s32.totalorder %s282, %s298
      %p300 = scmp.eq.s32.totalorder %s38, 0
      %p301 = por %p299, %p300
      %s302 = ssub.s32 %s40, %s47
      %p303 = scmp.eq.s32.totalorder %s302, 0
      %s305 = sadd.s32 %s304, 1
      %s306 = scalar_select %p303, %s304, %s305
      %p309 = pneg %p303
      %p310 = scmp.eq.s32.totalorder %s32, 1
      %p311 = por %p309, %p310
      %p312 = scmp.ne.s32.totalorder %s304, %s307
      %p313 = scmp.eq.s32.totalorder %s32, 0
      %p314 = por %p312, %p313
      %p315 = scmp.ne.s32.totalorder %s304, %s307
      %p316 = scmp.eq.s32.totalorder %s37, 1
      %p317 = por %p315, %p316
      %p318 = scmp.ne.s32.totalorder %s307, %s308
      %p319 = scmp.eq.s32.totalorder %s37, 0
      %p320 = por %p318, %p319
      %p321 = scmp.ne.s32.totalorder %s307, %s308
      %p322 = scmp.eq.s32.totalorder %s38, 1
      %p323 = por %p321, %p322
      %p325 = scmp.ne.s32.totalorder %s308, %s324
      %p326 = scmp.eq.s32.totalorder %s38, 0
      %p327 = por %p325, %p326
      %s328 = ssub.s32 %s40, %s47
      %p329 = scmp.eq.s32.totalorder %s328, 0
      %s331 = sadd.s32 %s330, 1
      %s332 = scalar_select %p329, %s330, %s331
      %p335 = pneg %p329
      %p336 = scmp.eq.s32.totalorder %s32, 1
      %p337 = por %p335, %p336
      %p338 = scmp.ne.s32.totalorder %s330, %s333
      %p339 = scmp.eq.s32.totalorder %s32, 0
      %p340 = por %p338, %p339
      %p341 = scmp.ne.s32.totalorder %s330, %s333
      %p342 = scmp.eq.s32.totalorder %s37, 1
      %p343 = por %p341, %p342
      %p344 = scmp.ne.s32.totalorder %s333, %s334
      %p345 = scmp.eq.s32.totalorder %s37, 0
      %p346 = por %p344, %p345
      %p347 = scmp.ne.s32.totalorder %s333, %s334
      %p348 = scmp.eq.s32.totalorder %s38, 1
      %p349 = por %p347, %p348
      %p351 = scmp.ne.s32.totalorder %s334, %s350
      %p352 = scmp.eq.s32.totalorder %s38, 0
      %p353 = por %p351, %p352
      %s354 = ssub.s32 %s40, %s47
      %p355 = scmp.eq.s32.totalorder %s354, 0
      %s357 = sadd.s32 %s356, 1
      %s358 = scalar_select %p355, %s356, %s357
      %p361 = pneg %p355
      %p362 = scmp.eq.s32.totalorder %s32, 1
      %p363 = por %p361, %p362
      %p364 = scmp.ne.s32.totalorder %s356, %s359
      %p365 = scmp.eq.s32.totalorder %s32, 0
      %p366 = por %p364, %p365
      %p367 = scmp.ne.s32.totalorder %s356, %s359
      %p368 = scmp.eq.s32.totalorder %s37, 1
      %p369 = por %p367, %p368
      %p370 = scmp.ne.s32.totalorder %s359, %s360
      %p371 = scmp.eq.s32.totalorder %s37, 0
      %p372 = por %p370, %p371
      %p373 = scmp.ne.s32.totalorder %s359, %s360
      %p374 = scmp.eq.s32.totalorder %s38, 1
      %p375 = por %p373, %p374
      %p377 = scmp.ne.s32.totalorder %s360, %s376
      %p378 = scmp.eq.s32.totalorder %s38, 0
      %p379 = por %p377, %p378
      %s380 = ssub.s32 %s40, %s47
      %p381 = scmp.eq.s32.totalorder %s380, 0
      %s383 = sadd.s32 %s382, 1
      %s384 = scalar_select %p381, %s382, %s383
      %p387 = pneg %p381
      %p388 = scmp.eq.s32.totalorder %s32, 1
      %p389 = por %p387, %p388
      %p390 = scmp.ne.s32.totalorder %s382, %s385
      %p391 = scmp.eq.s32.totalorder %s32, 0
      %p392 = por %p390, %p391
      %p393 = scmp.ne.s32.totalorder %s382, %s385
      %p394 = scmp.eq.s32.totalorder %s37, 1
      %p395 = por %p393, %p394
      %p396 = scmp.ne.s32.totalorder %s385, %s386
      %p397 = scmp.eq.s32.totalorder %s37, 0
      %p398 = por %p396, %p397
      %p399 = scmp.ne.s32.totalorder %s385, %s386
      %p400 = scmp.eq.s32.totalorder %s38, 1
      %p401 = por %p399, %p400
      %p403 = scmp.ne.s32.totalorder %s386, %s402
      %p404 = scmp.eq.s32.totalorder %s38, 0
      %p405 = por %p403, %p404
      %s406 = ssub.s32 %s39, %s51
      %p407 = scmp.eq.s32.totalorder %s406, 0
      %s409 = sadd.s32 %s408, 1
      %s410 = scalar_select %p407, %s408, %s409
      %p413 = pneg %p407
      %p414 = scmp.eq.s32.totalorder %s32, 1
      %p415 = por %p413, %p414
      %p416 = scmp.ne.s32.totalorder %s408, %s411
      %p417 = scmp.eq.s32.totalorder %s32, 0
      %p418 = por %p416, %p417
      %p419 = scmp.ne.s32.totalorder %s408, %s411
      %p420 = scmp.eq.s32.totalorder %s37, 1
      %p421 = por %p419, %p420
      %p422 = scmp.ne.s32.totalorder %s411, %s412
      %p423 = scmp.eq.s32.totalorder %s37, 0
      %p424 = por %p422, %p423
      %p425 = scmp.ne.s32.totalorder %s411, %s412
      %p426 = scmp.eq.s32.totalorder %s38, 1
      %p427 = por %p425, %p426
      %p429 = scmp.ne.s32.totalorder %s412, %s428
      %p430 = scmp.eq.s32.totalorder %s38, 0
      %p431 = por %p429, %p430
      %p432 = scmp.le.s32.totalorder 1, %s32
      %p433 = scmp.lt.s32.totalorder %s32, 3
      %p434 = pnand %p432, %p433
      %p435 = pneg %p434
      // Predicated region
      $region9: #{tpu_custom_call.1} parent=5 // pred_check
        _
      $region10: #{tpu_custom_call.1} parent=5 // pred_check_branch
        %437 = sbr.rel (%p434) target = $region12
      $region11: #{tpu_custom_call.1} parent=5 // pred_region
        %s438 = ssub.s32 %s32, 1
        // Predicated region
        $region13: #{tpu_custom_call.1} parent=11 // pred_check
          %p439 = pneg %p70
        $region14: #{tpu_custom_call.1} parent=11 // pred_check_branch
          %441 = sbr.rel (%p439) target = $region16
        $region15: #{tpu_custom_call.1} parent=11 // pred_region
          %s442 = smul.u32 2, %s41
          %s444 = ssub.s32 128, 128
          %445 = vsyncadd [#allocation5], %s444
          %s446 = smul.addr %s442, 64
          %s447 = scalar_lea.hbm %s0, %s446
          %s448 = sshll.u32 [#allocation4], 4
          %s449 = int_to_ptr.vmem [resolvable:$true] %s448
          %454 = dma.hbm_to_vmem [thread:$0]  %s447, 128, %s449, [#allocation5], 64, 64, 4
        $region16: #{tpu_custom_call.1} parent=11 // pred_fallthru
          _
        // Predicated region
        $region17: #{tpu_custom_call.1} parent=11 // pred_check
          %p455 = pneg %p91
        $region18: #{tpu_custom_call.1} parent=11 // pred_check_branch
          %457 = sbr.rel (%p455) target = $region20
        $region19: #{tpu_custom_call.1} parent=11 // pred_region
          %s459 = ssub.s32 512, 512
          %460 = vsyncadd [#allocation8], %s459
          %s461 = sshll.u32 [#allocation7], 4
          %s462 = int_to_ptr.vmem [resolvable:$true] %s461
          %467 = dma.hbm_to_vmem [thread:$0]  %s1, 512, %s462, [#allocation8], 64, 64, 4
        $region20: #{tpu_custom_call.1} parent=11 // pred_fallthru
          _
        // Predicated region
        $region21: #{tpu_custom_call.1} parent=11 // pred_check
          %p468 = pneg %p112
        $region22: #{tpu_custom_call.1} parent=11 // pred_check_branch
          %470 = sbr.rel (%p468) target = $region24
        $region23: #{tpu_custom_call.1} parent=11 // pred_region
          %s472 = ssub.s32 256, 256
          %473 = vsyncadd [#allocation8], %s472
          %s474 = sshll.u32 [#allocation9], 4
          %s475 = int_to_ptr.vmem [resolvable:$true] %s474
          %480 = dma.hbm_to_vmem [thread:$0]  %s2, 256, %s475, [#allocation8], 128, 128, 8
        $region24: #{tpu_custom_call.1} parent=11 // pred_fallthru
          _
      $region12: #{tpu_custom_call.1} parent=5 // pred_fallthru
        _
      %p481 = scmp.lt.s32.totalorder %s32, 2
      // Predicated region
      $region25: #{tpu_custom_call.1} parent=5 // pred_check
        %p482 = pneg %p481
      $region26: #{tpu_custom_call.1} parent=5 // pred_check_branch
        %484 = sbr.rel (%p482) target = $region28
      $region27: #{tpu_custom_call.1} parent=5 // pred_region
        // Predicated region
        $region29: #{tpu_custom_call.1} parent=27 // pred_check
          %p485 = pneg %p132
        $region30: #{tpu_custom_call.1} parent=27 // pred_check_branch
          %487 = sbr.rel (%p485) target = $region32
        $region31: #{tpu_custom_call.1} parent=27 // pred_region
          %p488 = scmp.lt.s32.totalorder %s40, 1
          %s489 = scalar_select %p488, %s40, 1
          %s490 = scalar_lea.vmem %s3, %s489
        $region32: #{tpu_custom_call.1} parent=27 // pred_fallthru
          _
        // Predicated region
        $region33: #{tpu_custom_call.1} parent=27 // pred_check
          %p491 = pneg %p158
        $region34: #{tpu_custom_call.1} parent=27 // pred_check_branch
          %493 = sbr.rel (%p491) target = $region36
        $region35: #{tpu_custom_call.1} parent=27 // pred_region
          %s494 = sand.u32 %s32, 1
          %s495 = scalar_lea.sflag [#allocation11], %s494
          %s496 = sand.u32 %s148, 1
          %s497 = scalar_lea.vmem [#allocation10], %s496
          %s499 = ssub.s32 16, 16
          %500 = vsyncadd %s495, %s499
          %s501 = smul.addr %s40, 16
          %s502 = scalar_lea.hbm %s4, %s501
          %s504 = sshll.u32 %s497, 4
          %s505 = int_to_ptr.vmem [resolvable:$true] %s504
          %507 = dma.hbm_to_vmem [thread:$0]  %s502, 16, %s505, %s495
        $region36: #{tpu_custom_call.1} parent=27 // pred_fallthru
          _
        // Predicated region
        $region37: #{tpu_custom_call.1} parent=27 // pred_check
          %p508 = pneg %p184
        $region38: #{tpu_custom_call.1} parent=27 // pred_check_branch
          %510 = sbr.rel (%p508) target = $region40
        $region39: #{tpu_custom_call.1} parent=27 // pred_region
          %s511 = sand.u32 %s32, 1
          %s512 = scalar_lea.sflag [#allocation11], %s511
          %s513 = sand.u32 %s174, 1
          %s514 = smul.addr %s513, 192
          %s515 = scalar_lea.vmem [#allocation12], %s514
          %s517 = ssub.s32 3072, 3072
          %518 = vsyncadd %s512, %s517
          %s519 = smul.addr %s40, 48
          %s520 = smul.addr %s519, 64
          %s521 = scalar_lea.hbm %s5, %s520
          %s522 = sshll.u32 %s515, 4
          %s523 = int_to_ptr.vmem [resolvable:$true] %s522
          %528 = dma.hbm_to_vmem [thread:$0]  %s521, 3072, %s523, %s512, 192, 192, 12
        $region40: #{tpu_custom_call.1} parent=27 // pred_fallthru
          _
        // Predicated region
        $region41: #{tpu_custom_call.1} parent=27 // pred_check
          %p529 = pneg %p210
        $region42: #{tpu_custom_call.1} parent=27 // pred_check_branch
          %531 = sbr.rel (%p529) target = $region44
        $region43: #{tpu_custom_call.1} parent=27 // pred_region
          %s532 = sand.u32 %s32, 1
          %s533 = scalar_lea.sflag [#allocation14], %s532
          %s534 = sand.u32 %s200, 1
          %s535 = smul.addr %s534, 64
          %s536 = scalar_lea.vmem [#allocation13], %s535
          %s538 = ssub.s32 1024, 1024
          %539 = vsyncadd %s533, %s538
          %s540 = smul.addr %s40, 16
          %s541 = smul.addr %s540, 64
          %s542 = scalar_lea.hbm %s6, %s541
          %s543 = sshll.u32 %s536, 4
          %s544 = int_to_ptr.vmem [resolvable:$true] %s543
          %549 = dma.hbm_to_vmem [thread:$0]  %s542, 1024, %s544, %s533, 64, 64, 4
        $region44: #{tpu_custom_call.1} parent=27 // pred_fallthru
          _
        // Predicated region
        $region45: #{tpu_custom_call.1} parent=27 // pred_check
          %p550 = pneg %p236
        $region46: #{tpu_custom_call.1} parent=27 // pred_check_branch
          %552 = sbr.rel (%p550) target = $region48
        $region47: #{tpu_custom_call.1} parent=27 // pred_region
          %p553 = scmp.lt.s32.totalorder %s40, 1
          %s554 = scalar_select %p553, %s40, 1
          %s555 = scalar_lea.vmem %s7, %s554
        $region48: #{tpu_custom_call.1} parent=27 // pred_fallthru
          _
        // Predicated region
        $region49: #{tpu_custom_call.1} parent=27 // pred_check
          %p556 = pneg %p262
        $region50: #{tpu_custom_call.1} parent=27 // pred_check_branch
          %558 = sbr.rel (%p556) target = $region52
        $region51: #{tpu_custom_call.1} parent=27 // pred_region
          %p559 = scmp.lt.s32.totalorder %s40, 1
          %s560 = scalar_select %p559, %s40, 1
          %s561 = scalar_lea.vmem %s8, %s560
        $region52: #{tpu_custom_call.1} parent=27 // pred_fallthru
          _
        // Predicated region
        $region53: #{tpu_custom_call.1} parent=27 // pred_check
          %p562 = pneg %p288
        $region54: #{tpu_custom_call.1} parent=27 // pred_check_branch
          %564 = sbr.rel (%p562) target = $region56
        $region55: #{tpu_custom_call.1} parent=27 // pred_region
          %p565 = scmp.lt.s32.totalorder %s40, 1
          %s566 = scalar_select %p565, %s40, 1
          %s567 = scalar_lea.vmem %s9, %s566
        $region56: #{tpu_custom_call.1} parent=27 // pred_fallthru
          _
        // Predicated region
        $region57: #{tpu_custom_call.1} parent=27 // pred_check
          %p568 = pneg %p314
        $region58: #{tpu_custom_call.1} parent=27 // pred_check_branch
          %570 = sbr.rel (%p568) target = $region60
        $region59: #{tpu_custom_call.1} parent=27 // pred_region
          %s571 = sand.u32 %s32, 1
          %s572 = scalar_lea.sflag [#allocation14], %s571
          %s573 = sand.u32 %s304, 1
          %s574 = smul.addr %s573, 128
          %s575 = scalar_lea.vmem [#allocation15], %s574
          %s577 = ssub.s32 2048, 2048
          %578 = vsyncadd %s572, %s577
          %s579 = smul.addr %s40, 32
          %s580 = smul.addr %s579, 64
          %s581 = scalar_lea.hbm %s10, %s580
          %s582 = sshll.u32 %s575, 4
          %s583 = int_to_ptr.vmem [resolvable:$true] %s582
          %588 = dma.hbm_to_vmem [thread:$0]  %s581, 2048, %s583, %s572, 128, 128, 8
        $region60: #{tpu_custom_call.1} parent=27 // pred_fallthru
          _
        // Predicated region
        $region61: #{tpu_custom_call.1} parent=27 // pred_check
          %p589 = pneg %p340
        $region62: #{tpu_custom_call.1} parent=27 // pred_check_branch
          %591 = sbr.rel (%p589) target = $region64
        $region63: #{tpu_custom_call.1} parent=27 // pred_region
          %p592 = scmp.lt.s32.totalorder %s40, 1
          %s593 = scalar_select %p592, %s40, 1
          %s594 = smul.addr %s593, 2
          %s595 = scalar_lea.vmem %s11, %s594
        $region64: #{tpu_custom_call.1} parent=27 // pred_fallthru
          _
        // Predicated region
        $region65: #{tpu_custom_call.1} parent=27 // pred_check
          %p596 = pneg %p366
        $region66: #{tpu_custom_call.1} parent=27 // pred_check_branch
          %598 = sbr.rel (%p596) target = $region68
        $region67: #{tpu_custom_call.1} parent=27 // pred_region
          %s599 = sand.u32 %s356, 1
          %s600 = scalar_lea.sflag [#allocation17], %s599
          %s601 = sand.u32 %s356, 1
          %s602 = smul.addr %s601, 128
          %s603 = scalar_lea.vmem [#allocation16], %s602
          %s605 = ssub.s32 2048, 2048
          %606 = vsyncadd %s600, %s605
          %s607 = smul.addr %s40, 32
          %s608 = smul.addr %s607, 64
          %s609 = scalar_lea.hbm %s12, %s608
          %s610 = sshll.u32 %s603, 4
          %s611 = int_to_ptr.vmem [resolvable:$true] %s610
          %616 = dma.hbm_to_vmem [thread:$0]  %s609, 2048, %s611, %s600, 64, 64, 4
        $region68: #{tpu_custom_call.1} parent=27 // pred_fallthru
          _
        // Predicated region
        $region69: #{tpu_custom_call.1} parent=27 // pred_check
          %p617 = pneg %p392
        $region70: #{tpu_custom_call.1} parent=27 // pred_check_branch
          %619 = sbr.rel (%p617) target = $region72
        $region71: #{tpu_custom_call.1} parent=27 // pred_region
          %p620 = scmp.lt.s32.totalorder %s40, 1
          %s621 = scalar_select %p620, %s40, 1
          %s622 = scalar_lea.vmem %s13, %s621
        $region72: #{tpu_custom_call.1} parent=27 // pred_fallthru
          _
      $region28: #{tpu_custom_call.1} parent=5 // pred_fallthru
        _
      %p623 = scmp.le.s32.totalorder 1, %s32
      %p624 = scmp.lt.s32.totalorder %s32, 3
      %p625 = pnand %p623, %p624
      %p626 = pneg %p625
      // Predicated region
      $region73: #{tpu_custom_call.1} parent=5 // pred_check
        _
      $region74: #{tpu_custom_call.1} parent=5 // pred_check_branch
        %628 = sbr.rel (%p625) target = $region76
      $region75: #{tpu_custom_call.1} parent=5 // pred_region
        %s629 = ssub.s32 %s32, 1
        // Predicated region
        $region77: #{tpu_custom_call.1} parent=75 // pred_check
          %p630 = pneg %p70
        $region78: #{tpu_custom_call.1} parent=75 // pred_check_branch
          %632 = sbr.rel (%p630) target = $region80
        $region79: #{tpu_custom_call.1} parent=75 // pred_region
          %633 = dma.done [#allocation5], 128
        $region80: #{tpu_custom_call.1} parent=75 // pred_fallthru
          _
        // Predicated region
        $region81: #{tpu_custom_call.1} parent=75 // pred_check
          %p634 = pneg %p91
        $region82: #{tpu_custom_call.1} parent=75 // pred_check_branch
          %636 = sbr.rel (%p634) target = $region84
        $region83: #{tpu_custom_call.1} parent=75 // pred_region
          %637 = dma.done [#allocation8], 512
        $region84: #{tpu_custom_call.1} parent=75 // pred_fallthru
          _
        // Predicated region
        $region85: #{tpu_custom_call.1} parent=75 // pred_check
          %p638 = pneg %p112
        $region86: #{tpu_custom_call.1} parent=75 // pred_check_branch
          %640 = sbr.rel (%p638) target = $region88
        $region87: #{tpu_custom_call.1} parent=75 // pred_region
          %641 = dma.done [#allocation8], 256
        $region88: #{tpu_custom_call.1} parent=75 // pred_fallthru
          _
        %s642 = sand.u32 %s37, 1
        %s643 = scalar_lea.sflag [#allocation11], %s642
        %s644 = sand.u32 %s151, 1
        %s645 = scalar_lea.vmem [#allocation10], %s644
        // Predicated region
        $region89: #{tpu_custom_call.1} parent=75 // pred_check
          %p646 = pneg %p164
        $region90: #{tpu_custom_call.1} parent=75 // pred_check_branch
          %648 = sbr.rel (%p646) target = $region92
        $region91: #{tpu_custom_call.1} parent=75 // pred_region
          %649 = dma.done %s643, 16
        $region92: #{tpu_custom_call.1} parent=75 // pred_fallthru
          _
        %s650 = sand.u32 %s37, 1
        %s651 = scalar_lea.sflag [#allocation11], %s650
        %s652 = sand.u32 %s177, 1
        %s653 = smul.addr %s652, 192
        %s654 = scalar_lea.vmem [#allocation12], %s653
        // Predicated region
        $region93: #{tpu_custom_call.1} parent=75 // pred_check
          %p655 = pneg %p190
        $region94: #{tpu_custom_call.1} parent=75 // pred_check_branch
          %657 = sbr.rel (%p655) target = $region96
        $region95: #{tpu_custom_call.1} parent=75 // pred_region
          %658 = dma.done %s651, 3072
        $region96: #{tpu_custom_call.1} parent=75 // pred_fallthru
          _
        %s659 = sand.u32 %s37, 1
        %s660 = scalar_lea.sflag [#allocation14], %s659
        %s661 = sand.u32 %s203, 1
        %s662 = smul.addr %s661, 64
        %s663 = scalar_lea.vmem [#allocation13], %s662
        // Predicated region
        $region97: #{tpu_custom_call.1} parent=75 // pred_check
          %p664 = pneg %p216
        $region98: #{tpu_custom_call.1} parent=75 // pred_check_branch
          %666 = sbr.rel (%p664) target = $region100
        $region99: #{tpu_custom_call.1} parent=75 // pred_region
          %667 = dma.done %s660, 1024
        $region100: #{tpu_custom_call.1} parent=75 // pred_fallthru
          _
        %s668 = sand.u32 %s37, 1
        %s669 = scalar_lea.sflag [#allocation14], %s668
        %s670 = sand.u32 %s307, 1
        %s671 = smul.addr %s670, 128
        %s672 = scalar_lea.vmem [#allocation15], %s671
        // Predicated region
        $region101: #{tpu_custom_call.1} parent=75 // pred_check
          %p673 = pneg %p320
        $region102: #{tpu_custom_call.1} parent=75 // pred_check_branch
          %675 = sbr.rel (%p673) target = $region104
        $region103: #{tpu_custom_call.1} parent=75 // pred_region
          %676 = dma.done %s669, 2048
        $region104: #{tpu_custom_call.1} parent=75 // pred_fallthru
          _
        %s677 = sand.u32 %s359, 1
        %s678 = scalar_lea.sflag [#allocation17], %s677
        %s679 = sand.u32 %s359, 1
        %s680 = smul.addr %s679, 128
        %s681 = scalar_lea.vmem [#allocation16], %s680
        // Predicated region
        $region105: #{tpu_custom_call.1} parent=75 // pred_check
          %p682 = pneg %p372
        $region106: #{tpu_custom_call.1} parent=75 // pred_check_branch
          %684 = sbr.rel (%p682) target = $region108
        $region107: #{tpu_custom_call.1} parent=75 // pred_region
          %685 = dma.done %s678, 2048
        $region108: #{tpu_custom_call.1} parent=75 // pred_fallthru
          _
        %p686 = pneg %p70
        %p687 = pneg %p67
        %p688 = pneg %p91
        %p689 = pneg %p88
        %p690 = pneg %p112
        %p691 = pneg %p109
        %p692 = scmp.lt.s32.totalorder %s42, 1
        %s693 = scalar_select %p692, %s42, 1
        %s694 = scalar_lea.vmem %s3, %s693
        %p695 = pneg %p138
        %p696 = pneg %p135
        %s697 = sand.u32 %s37, 1
        %s698 = scalar_lea.sflag [#allocation11], %s697
        %s699 = sand.u32 %s151, 1
        %s700 = scalar_lea.vmem [#allocation10], %s699
        %p701 = pneg %p164
        %p702 = pneg %p161
        %s703 = sand.u32 %s37, 1
        %s704 = scalar_lea.sflag [#allocation11], %s703
        %s705 = sand.u32 %s177, 1
        %s706 = smul.addr %s705, 192
        %s707 = scalar_lea.vmem [#allocation12], %s706
        %p708 = pneg %p190
        %p709 = pneg %p187
        %s710 = sand.u32 %s37, 1
        %s711 = scalar_lea.sflag [#allocation14], %s710
        %s712 = sand.u32 %s203, 1
        %s713 = smul.addr %s712, 64
        %s714 = scalar_lea.vmem [#allocation13], %s713
        %p715 = pneg %p216
        %p716 = pneg %p213
        %p717 = scmp.lt.s32.totalorder %s42, 1
        %s718 = scalar_select %p717, %s42, 1
        %s719 = scalar_lea.vmem %s7, %s718
        %p720 = pneg %p242
        %p721 = pneg %p239
        %p722 = scmp.lt.s32.totalorder %s42, 1
        %s723 = scalar_select %p722, %s42, 1
        %s724 = scalar_lea.vmem %s8, %s723
        %p725 = pneg %p268
        %p726 = pneg %p265
        %p727 = scmp.lt.s32.totalorder %s42, 1
        %s728 = scalar_select %p727, %s42, 1
        %s729 = scalar_lea.vmem %s9, %s728
        %p730 = pneg %p294
        %p731 = pneg %p291
        %s732 = sand.u32 %s37, 1
        %s733 = scalar_lea.sflag [#allocation14], %s732
        %s734 = sand.u32 %s307, 1
        %s735 = smul.addr %s734, 128
        %s736 = scalar_lea.vmem [#allocation15], %s735
        %p737 = pneg %p320
        %p738 = pneg %p317
        %p739 = scmp.lt.s32.totalorder %s42, 1
        %s740 = scalar_select %p739, %s42, 1
        %s741 = smul.addr %s740, 2
        %s742 = scalar_lea.vmem %s11, %s741
        %p743 = pneg %p346
        %p744 = pneg %p343
        %s745 = sand.u32 %s359, 1
        %s746 = scalar_lea.sflag [#allocation17], %s745
        %s747 = sand.u32 %s359, 1
        %s748 = smul.addr %s747, 128
        %s749 = scalar_lea.vmem [#allocation16], %s748
        %p750 = pneg %p372
        %p751 = pneg %p369
        %p752 = scmp.lt.s32.totalorder %s42, 1
        %s753 = scalar_select %p752, %s42, 1
        %s754 = scalar_lea.vmem %s13, %s753
        %p755 = pneg %p398
        %p756 = pneg %p395
        %p757 = pneg %p424
        %p758 = pneg %p421
        %s759 = smul.u32 2, %s41
        %p760 = scmp.lt.s32.totalorder %s42, 1
        %s761 = scalar_select %p760, %s42, 1
        %s762 = scalar_lea.vmem %s3, %s761
        %p763 = scmp.lt.s32.totalorder %s42, 1
        %s764 = scalar_select %p763, %s42, 1
        %s765 = scalar_lea.vmem %s7, %s764
        %p766 = scmp.lt.s32.totalorder %s42, 1
        %s767 = scalar_select %p766, %s42, 1
        %s768 = scalar_lea.vmem %s8, %s767
        %p769 = scmp.lt.s32.totalorder %s42, 1
        %s770 = scalar_select %p769, %s42, 1
        %s771 = scalar_lea.vmem %s9, %s770
        %p772 = scmp.lt.s32.totalorder %s42, 1
        %s773 = scalar_select %p772, %s42, 1
        %s774 = smul.addr %s773, 2
        %s775 = scalar_lea.vmem %s11, %s774
        %p776 = scmp.lt.s32.totalorder %s42, 1
        %s777 = scalar_select %p776, %s42, 1
        %s778 = scalar_lea.vmem %s13, %s777
        %s779 = smul.u32 2, %s41
        %p781 = scmp.eq.s32.totalorder %s42, 0
        // Predicated region
        $region109: #{tpu_custom_call.1} parent=75 // pred_check
          %p782 = pneg %p781
        $region110: #{tpu_custom_call.1} parent=75 // pred_check_branch
          %784 = sbr.rel (%p782) target = $region112
        $region111: #{tpu_custom_call.1} parent=75 // pred_region
          %v785 = vld [vmem:[#allocation4] sm:$0xf]
          %v786 = vld [vmem:[#allocation4 + $0x4] sm:$0xf]
          %v787 = vld [vmem:[#allocation7] sm:$0xf]
          %v788 = vld [vmem:[#allocation7 + $0x4] sm:$0xf]
          %v789 = vld [vmem:[#allocation7 + $0x8] sm:$0xf]
          %v790 = vld [vmem:[#allocation7 + $0xc] sm:$0xf]
          %v791 = vld [vmem:[#allocation7 + $0x10] sm:$0xf]
          %v792 = vld [vmem:[#allocation7 + $0x14] sm:$0xf]
          %v793 = vld [vmem:[#allocation7 + $0x18] sm:$0xf]
          %v794 = vld [vmem:[#allocation7 + $0x1c] sm:$0xf]
          %v795 = vld [vmem:[#allocation9] sm:$0xff]
          %v796 = vld [vmem:[#allocation9 + $0x8] sm:$0xff]
          %v799 = vunpack.c.l.b16 %v785
          %v800 = vunpack.c.l.b16 %v786
          %v801 = vpack.c.b16 %v800, %v799
          %v810 = vunpack.c.l.b16 %v787
          %v811 = vunpack.c.l.b16 %v788
          %v812 = vunpack.c.l.b16 %v789
          %v813 = vunpack.c.l.b16 %v790
          %v814 = vunpack.c.l.b16 %v791
          %v815 = vunpack.c.l.b16 %v792
          %v816 = vunpack.c.l.b16 %v793
          %v817 = vunpack.c.l.b16 %v794
          %v818 = vpack.c.b16 %v811, %v810
          %v819 = vpack.c.b16 %v813, %v812
          %v820 = vpack.c.b16 %v815, %v814
          %v821 = vpack.c.b16 %v817, %v816
          %vm826 = vcmask 523264
          %v828 = vsel %vm826, %v801, 0
          %830 = vmatprep.subr.bf16.mxu0 0
          %831 = vmatpush1.bf16.msra.mxu0 0
          %832 = vmatprep.subr.bf16.mxu0 0
          %833 = vmatpush1.bf16.msra.mxu0 0
          %834 = vmatprep.subr.bf16.mxu0 0
          %835 = vmatpush1.bf16.msra.mxu0 0
          %836 = vmatprep.subr.bf16.mxu0 0
          %837 = vmatpush1.bf16.msra.mxu0 0
          %838 = vmatprep.subr.bf16.mxu0 0
          %839 = vmatpush1.bf16.msra.mxu0 %v821
          %840 = vmatprep.subr.bf16.mxu0 0
          %841 = vmatpush1.bf16.msra.mxu0 %v820
          %842 = vmatprep.subr.bf16.mxu0 0
          %843 = vmatpush1.bf16.msra.mxu0 %v819
          %844 = vmatprep.subr.bf16.mxu0 0
          %845 = vmatpush1.bf16.msra.mxu0 %v818
          %846 = vmatprep.subr.bf16.mxu0 0
          %847 = vmatpush2.bf16.msra.mxu0 0
          %848 = vmatprep.subr.bf16.mxu0 0
          %849 = vmatpush2.bf16.msra.mxu0 0
          %850 = vmatprep.subr.bf16.mxu0 0
          %851 = vmatpush2.bf16.msra.mxu0 0
          %852 = vmatprep.subr.bf16.mxu0 0
          %853 = vmatpush2.bf16.msra.mxu0 0
          %854 = vmatprep.subr.bf16.mxu0 0
          %855 = vmatpush2.bf16.msra.mxu0 0
          %856 = vmatprep.subr.bf16.mxu0 0
          %857 = vmatpush2.bf16.msra.mxu0 0
          %858 = vmatprep.subr.bf16.mxu0 0
          %859 = vmatpush2.bf16.msra.mxu0 0
          %860 = vmatprep.subr.bf16.mxu0 0
          %861 = vmatpush2.bf16.msra.mxu0 0
          %862 = vmatprep.mubr.bf16.mxu0 0
          %863 = vmatmul.mubr.bf16.gmra.mxu0 %v828
          %v864 = vpop.f32.mrf.mxu0
          %v865 = vadd.f32 %v795, %v864
          %v866 = vpop.f32.mrf.mxu0
          %v867 = vpop.f32.mrf.mxu0
          %v868 = vadd.f32 %v796, %v867
          %v869 = vpop.f32.mrf.mxu0
          %870 = vdwg.mxu0
          %871 = vst [vmem:[#allocation18] sm:$0xff] %v865
          %872 = vst [vmem:[#allocation18 + $0x8] sm:$0xff] %v868
        $region112: #{tpu_custom_call.1} parent=75 // pred_fallthru
          _
        %v873 = vld [vmem:[#allocation18] sm:$0xff]
        %v874 = vld [vmem:[#allocation18 + $0x8] sm:$0xff]
        %v875 = vld [vmem:[%s762] sm:$0x1]
        %v876 = vld [vmem:[%s645] sm:$0x1]
        %877 = vadd.xlane.f32.xlu0 %v873
        %v878 = vpop.xlane.xlu0 %877
        %879 = vadd.xlane.f32.xlu0 %v874
        %v880 = vpop.xlane.xlu0 %879
        %v881 = vrcp.pop 128.0
        %v882 = vmul.f32 %v878, %v881
        %v883 = vmul.f32 %v880, %v881
        %v884 = vsub.f32 %v873, %v882
        %v885 = vsub.f32 %v874, %v883
        %v886 = vmul.f32 %v884, %v884
        %v887 = vmul.f32 %v885, %v885
        %888 = vadd.xlane.f32.xlu0 %v886
        %v889 = vpop.xlane.xlu0 %888
        %890 = vadd.xlane.f32.xlu0 %v887
        %v891 = vpop.xlane.xlu0 %890
        %v892 = vmul.f32 %v889, %v881
        %v893 = vmul.f32 %v891, %v881
        %v894 = vadd.f32 %v892, 1e-05
        %v895 = vadd.f32 %v893, 1e-05
        %v896 = vrsqrt.pop %v894
        %v897 = vrsqrt.pop %v895
        %v898 = vmul.f32 %v884, %v896
        %v899 = vmul.f32 %v885, %v897
        %v901 = vlaneseq
        %v902 = vshrl.u32 %v901, 7
        %v903 = vsub.s32 0, %v902
        %v904 = vrot.slane %v875, %v903
        %v906 = vmul.f32 %v898, %v904
        %v907 = vmul.f32 %v899, %v904
        %v909 = vlaneseq
        %v910 = vshrl.u32 %v909, 7
        %v911 = vsub.s32 0, %v910
        %v912 = vrot.slane %v876, %v911
        %v914 = vadd.f32 %v906, %v912
        %v915 = vadd.f32 %v907, %v912
        %v916 = vpack.c.bf16 %v915, %v914
        %v917 = vld [vmem:[%s654] sm:$0xff]
        %v918 = vld [vmem:[%s654 + $0x8] sm:$0xf]
        %v919 = vld [vmem:[%s654 + $0xc] sm:$0xff]
        %v920 = vld [vmem:[%s654 + $0x14] sm:$0xf]
        %v921 = vld [vmem:[%s654 + $0x18] sm:$0xff]
        %v922 = vld [vmem:[%s654 + $0x20] sm:$0xf]
        %v923 = vld [vmem:[%s654 + $0x24] sm:$0xff]
        %v924 = vld [vmem:[%s654 + $0x2c] sm:$0xf]
        %v925 = vld [vmem:[%s654 + $0x30] sm:$0xff]
        %v926 = vld [vmem:[%s654 + $0x38] sm:$0xf]
        %v927 = vld [vmem:[%s654 + $0x3c] sm:$0xff]
        %v928 = vld [vmem:[%s654 + $0x44] sm:$0xf]
        %v929 = vld [vmem:[%s654 + $0x48] sm:$0xff]
        %v930 = vld [vmem:[%s654 + $0x50] sm:$0xf]
        %v931 = vld [vmem:[%s654 + $0x54] sm:$0xff]
        %v932 = vld [vmem:[%s654 + $0x5c] sm:$0xf]
        %v933 = vld [vmem:[%s654 + $0x60] sm:$0xff]
        %v934 = vld [vmem:[%s654 + $0x68] sm:$0xf]
        %v935 = vld [vmem:[%s654 + $0x6c] sm:$0xff]
        %v936 = vld [vmem:[%s654 + $0x74] sm:$0xf]
        %v937 = vld [vmem:[%s654 + $0x78] sm:$0xff]
        %v938 = vld [vmem:[%s654 + $0x80] sm:$0xf]
        %v939 = vld [vmem:[%s654 + $0x84] sm:$0xff]
        %v940 = vld [vmem:[%s654 + $0x8c] sm:$0xf]
        %v941 = vld [vmem:[%s654 + $0x90] sm:$0xff]
        %v942 = vld [vmem:[%s654 + $0x98] sm:$0xf]
        %v943 = vld [vmem:[%s654 + $0x9c] sm:$0xff]
        %v944 = vld [vmem:[%s654 + $0xa4] sm:$0xf]
        %v945 = vld [vmem:[%s654 + $0xa8] sm:$0xff]
        %v946 = vld [vmem:[%s654 + $0xb0] sm:$0xf]
        %v947 = vld [vmem:[%s654 + $0xb4] sm:$0xff]
        %v948 = vld [vmem:[%s654 + $0xbc] sm:$0xf]
        %v981 = vunpack.c.l.b16 %v917
        %v982 = vunpack.c.h.b16 %v917
        %v983 = vunpack.c.l.b16 %v918
        %v984 = vunpack.c.l.b16 %v919
        %v985 = vunpack.c.h.b16 %v919
        %v986 = vunpack.c.l.b16 %v920
        %v987 = vunpack.c.l.b16 %v921
        %v988 = vunpack.c.h.b16 %v921
        %v989 = vunpack.c.l.b16 %v922
        %v990 = vunpack.c.l.b16 %v923
        %v991 = vunpack.c.h.b16 %v923
        %v992 = vunpack.c.l.b16 %v924
        %v993 = vunpack.c.l.b16 %v925
        %v994 = vunpack.c.h.b16 %v925
        %v995 = vunpack.c.l.b16 %v926
        %v996 = vunpack.c.l.b16 %v927
        %v997 = vunpack.c.h.b16 %v927
        %v998 = vunpack.c.l.b16 %v928
        %v999 = vunpack.c.l.b16 %v929
        %v1000 = vunpack.c.h.b16 %v929
        %v1001 = vunpack.c.l.b16 %v930
        %v1002 = vunpack.c.l.b16 %v931
        %v1003 = vunpack.c.h.b16 %v931
        %v1004 = vunpack.c.l.b16 %v932
        %v1005 = vunpack.c.l.b16 %v933
        %v1006 = vunpack.c.h.b16 %v933
        %v1007 = vunpack.c.l.b16 %v934
        %v1008 = vunpack.c.l.b16 %v935
        %v1009 = vunpack.c.h.b16 %v935
        %v1010 = vunpack.c.l.b16 %v936
        %v1011 = vunpack.c.l.b16 %v937
        %v1012 = vunpack.c.h.b16 %v937
        %v1013 = vunpack.c.l.b16 %v938
        %v1014 = vunpack.c.l.b16 %v939
        %v1015 = vunpack.c.h.b16 %v939
        %v1016 = vunpack.c.l.b16 %v940
        %v1017 = vunpack.c.l.b16 %v941
        %v1018 = vunpack.c.h.b16 %v941
        %v1019 = vunpack.c.l.b16 %v942
        %v1020 = vunpack.c.l.b16 %v943
        %v1021 = vunpack.c.h.b16 %v943
        %v1022 = vunpack.c.l.b16 %v944
        %v1023 = vunpack.c.l.b16 %v945
        %v1024 = vunpack.c.h.b16 %v945
        %v1025 = vunpack.c.l.b16 %v946
        %v1026 = vunpack.c.l.b16 %v947
        %v1027 = vunpack.c.h.b16 %v947
        %v1028 = vunpack.c.l.b16 %v948
        %v1029 = vpack.c.b16 %v984, %v981
        %v1030 = vpack.c.b16 %v985, %v982
        %v1031 = vpack.c.b16 %v986, %v983
        %v1032 = vpack.c.b16 %v990, %v987
        %v1033 = vpack.c.b16 %v991, %v988
        %v1034 = vpack.c.b16 %v992, %v989
        %v1035 = vpack.c.b16 %v996, %v993
        %v1036 = vpack.c.b16 %v997, %v994
        %v1037 = vpack.c.b16 %v998, %v995
        %v1038 = vpack.c.b16 %v1002, %v999
        %v1039 = vpack.c.b16 %v1003, %v1000
        %v1040 = vpack.c.b16 %v1004, %v1001
        %v1041 = vpack.c.b16 %v1008, %v1005
        %v1042 = vpack.c.b16 %v1009, %v1006
        %v1043 = vpack.c.b16 %v1010, %v1007
        %v1044 = vpack.c.b16 %v1014, %v1011
        %v1045 = vpack.c.b16 %v1015, %v1012
        %v1046 = vpack.c.b16 %v1016, %v1013
        %v1047 = vpack.c.b16 %v1020, %v1017
        %v1048 = vpack.c.b16 %v1021, %v1018
        %v1049 = vpack.c.b16 %v1022, %v1019
        %v1050 = vpack.c.b16 %v1026, %v1023
        %v1051 = vpack.c.b16 %v1027, %v1024
        %v1052 = vpack.c.b16 %v1028, %v1025
        %1077 = vmatprep.subr.bf16.mxu0 %v1051
        %1078 = vmatpush1.bf16.msra.mxu0 %v1050
        %1079 = vmatprep.subr.bf16.mxu0 %v1048
        %1080 = vmatpush1.bf16.msra.mxu0 %v1047
        %1081 = vmatprep.subr.bf16.mxu0 %v1045
        %1082 = vmatpush1.bf16.msra.mxu0 %v1044
        %1083 = vmatprep.subr.bf16.mxu0 %v1042
        %1084 = vmatpush1.bf16.msra.mxu0 %v1041
        %1085 = vmatprep.subr.bf16.mxu0 %v1039
        %1086 = vmatpush1.bf16.msra.mxu0 %v1038
        %1087 = vmatprep.subr.bf16.mxu0 %v1036
        %1088 = vmatpush1.bf16.msra.mxu0 %v1035
        %1089 = vmatprep.subr.bf16.mxu0 %v1033
        %1090 = vmatpush1.bf16.msra.mxu0 %v1032
        %1091 = vmatprep.subr.bf16.mxu0 %v1030
        %1092 = vmatpush1.bf16.msra.mxu0 %v1029
        %1093 = vmatprep.subr.bf16.mxu0 0
        %1094 = vmatpush2.bf16.msra.mxu0 0
        %1095 = vmatprep.subr.bf16.mxu0 0
        %1096 = vmatpush2.bf16.msra.mxu0 0
        %1097 = vmatprep.subr.bf16.mxu0 0
        %1098 = vmatpush2.bf16.msra.mxu0 0
        %1099 = vmatprep.subr.bf16.mxu0 0
        %1100 = vmatpush2.bf16.msra.mxu0 0
        %1101 = vmatprep.subr.bf16.mxu0 0
        %1102 = vmatpush2.bf16.msra.mxu0 0
        %1103 = vmatprep.subr.bf16.mxu0 0
        %1104 = vmatpush2.bf16.msra.mxu0 0
        %1105 = vmatprep.subr.bf16.mxu0 0
        %1106 = vmatpush2.bf16.msra.mxu0 0
        %1107 = vmatprep.subr.bf16.mxu0 0
        %1108 = vmatpush2.bf16.msra.mxu0 0
        %1109 = vmatprep.mubr.bf16.mxu0 0
        %1110 = vmatmul.mubr.bf16.gmra.mxu0 %v916
        %v1111 = vpop.f32.mrf.mxu0
        %v1112 = vadd.f32 0.0, %v1111
        %v1113 = vpop.f32.mrf.mxu0
        %v1114 = vadd.f32 0.0, %v1113
        %v1115 = vpop.f32.mrf.mxu0
        %v1116 = vadd.f32 0.0, %v1115
        %v1117 = vpop.f32.mrf.mxu0
        %v1118 = vadd.f32 0.0, %v1117
        %1119 = vdwg.mxu0
        %1120 = vmatprep.subr.bf16.mxu0 0
        %1121 = vmatpush1.bf16.msra.mxu0 %v1052
        %1122 = vmatprep.subr.bf16.mxu0 0
        %1123 = vmatpush1.bf16.msra.mxu0 %v1049
        %1124 = vmatprep.subr.bf16.mxu0 0
        %1125 = vmatpush1.bf16.msra.mxu0 %v1046
        %1126 = vmatprep.subr.bf16.mxu0 0
        %1127 = vmatpush1.bf16.msra.mxu0 %v1043
        %1128 = vmatprep.subr.bf16.mxu0 0
        %1129 = vmatpush1.bf16.msra.mxu0 %v1040
        %1130 = vmatprep.subr.bf16.mxu0 0
        %1131 = vmatpush1.bf16.msra.mxu0 %v1037
        %1132 = vmatprep.subr.bf16.mxu0 0
        %1133 = vmatpush1.bf16.msra.mxu0 %v1034
        %1134 = vmatprep.subr.bf16.mxu0 0
        %1135 = vmatpush1.bf16.msra.mxu0 %v1031
        %1136 = vmatprep.subr.bf16.mxu0 0
        %1137 = vmatpush2.bf16.msra.mxu0 0
        %1138 = vmatprep.subr.bf16.mxu0 0
        %1139 = vmatpush2.bf16.msra.mxu0 0
        %1140 = vmatprep.subr.bf16.mxu0 0
        %1141 = vmatpush2.bf16.msra.mxu0 0
        %1142 = vmatprep.subr.bf16.mxu0 0
        %1143 = vmatpush2.bf16.msra.mxu0 0
        %1144 = vmatprep.subr.bf16.mxu0 0
        %1145 = vmatpush2.bf16.msra.mxu0 0
        %1146 = vmatprep.subr.bf16.mxu0 0
        %1147 = vmatpush2.bf16.msra.mxu0 0
        %1148 = vmatprep.subr.bf16.mxu0 0
        %1149 = vmatpush2.bf16.msra.mxu0 0
        %1150 = vmatprep.subr.bf16.mxu0 0
        %1151 = vmatpush2.bf16.msra.mxu0 0
        %1152 = vmatprep.mubr.bf16.mxu0 0
        %1153 = vmatmul.mubr.bf16.gmra.mxu0 %v916
        %v1154 = vpop.f32.mrf.mxu0
        %v1155 = vadd.f32 0.0, %v1154
        %v1156 = vpop.f32.mrf.mxu0
        %v1157 = vpop.f32.mrf.mxu0
        %v1158 = vadd.f32 0.0, %v1157
        %v1159 = vpop.f32.mrf.mxu0
        %1160 = vdwg.mxu0
        %v1161 = vpack.c.bf16 %v1116, %v1112
        %v1162 = vpack.c.bf16 %v1118, %v1114
        %v1163 = vpack.c.bf16 %v1158, %v1155
        %v1167 = vunpack.c.l.b16 %v1161
        %v1168 = vunpack.c.l.b16 %v1162
        %v1169 = vunpack.c.l.b16 %v1163
        %v1170 = vunpack.c.h.b16 %v1161
        %v1171 = vunpack.c.h.b16 %v1162
        %v1172 = vunpack.c.h.b16 %v1163
        %v1173 = vpack.c.b16 %v1168, %v1167
        %v1174 = vpack.c.b16 %v1169, %v1169
        %v1175 = vpack.c.b16 %v1171, %v1170
        %v1176 = vpack.c.b16 %v1172, %v1172
        %1181 = vst [vmem:[#allocation2] sm:$0xff] %v1173
        %1182 = vst [vmem:[#allocation2 + $0x8] sm:$0xf] %v1174
        %1183 = vst [vmem:[#allocation2 + $0xc] sm:$0xff] %v1175
        %1184 = vst [vmem:[#allocation2 + $0x14] sm:$0xf] %v1176
        %v1185 = vlaneseq
        %v1186 = vand.u32 %v1185, 127
        %vm1187 = vcmp.lt.s32.totalorder %v1186, 5
        %v1188 = vld [vmem:[#allocation2] sm:$0xf]
        %v1189 = vld [vmem:[#allocation2 + $0x4] sm:$0xf]
        %v1190 = vld [vmem:[#allocation2 + $0x8] sm:$0xf]
        %vm1191 = vcmask 261120
        %v1193 = vsel %vm1191, %v1188, 0
        %v1196 = vsel %vm1191, %v1189, 0
        %1198 = vmatprep.subr.bf16.mxu0 0
        %1199 = vmatpush1.bf16.xpose.msra.mxu0 0
        %1200 = vmatprep.subr.bf16.mxu0 0
        %1201 = vmatpush1.bf16.xpose.msra.mxu0 0
        %1202 = vmatprep.subr.bf16.mxu0 0
        %1203 = vmatpush1.bf16.xpose.msra.mxu0 0
        %1204 = vmatprep.subr.bf16.mxu0 0
        %1205 = vmatpush1.bf16.xpose.msra.mxu0 0
        %1206 = vmatprep.subr.bf16.mxu0 0
        %1207 = vmatpush1.bf16.xpose.msra.mxu0 0
        %1208 = vmatprep.subr.bf16.mxu0 0
        %1209 = vmatpush1.bf16.xpose.msra.mxu0 0
        %1210 = vmatprep.subr.bf16.mxu0 0
        %1211 = vmatpush1.bf16.xpose.msra.mxu0 0
        %1212 = vmatprep.subr.bf16.mxu0 0
        %1213 = vmatpush1.bf16.xpose.msra.mxu0 %v1196
        %1214 = vmatprep.subr.bf16.mxu0 0
        %1215 = vmatpush2.bf16.xpose.msra.mxu0 0
        %1216 = vmatprep.subr.bf16.mxu0 0
        %1217 = vmatpush2.bf16.xpose.msra.mxu0 0
        %1218 = vmatprep.subr.bf16.mxu0 0
        %1219 = vmatpush2.bf16.xpose.msra.mxu0 0
        %1220 = vmatprep.subr.bf16.mxu0 0
        %1221 = vmatpush2.bf16.xpose.msra.mxu0 0
        %1222 = vmatprep.subr.bf16.mxu0 0
        %1223 = vmatpush2.bf16.xpose.msra.mxu0 0
        %1224 = vmatprep.subr.bf16.mxu0 0
        %1225 = vmatpush2.bf16.xpose.msra.mxu0 0
        %1226 = vmatprep.subr.bf16.mxu0 0
        %1227 = vmatpush2.bf16.xpose.msra.mxu0 0
        %1228 = vmatprep.subr.bf16.mxu0 0
        %1229 = vmatpush2.bf16.xpose.msra.mxu0 0
        %1230 = vmatprep.mubr.bf16.mxu0 0
        %1231 = vmatmul.mubr.bf16.gmra.mxu0 %v1193
        %v1232 = vpop.f32.mrf.mxu0
        %v1233 = vadd.f32 0.0, %v1232
        %v1234 = vpop.f32.mrf.mxu0
        %v1235 = vpop.f32.mrf.mxu0
        %v1236 = vpop.f32.mrf.mxu0
        %1237 = vdwg.mxu0
        %v1238 = vsel %vm1187, %v1233, -1e+30
        %vm1239 = vcmask 64512
        %v1240 = vsel %vm1239, %v1238, -inf
        %1241 = vmax.xlane.f32.xlu0 %v1240
        %v1242 = vpop.xlane.xlu0 %1241
        %v1243 = vsub.f32 %v1238, %v1242
        %v1244 = vmul.f32 %v1243, 1.442695
        %v1245 = vpow.pop %v1244
        %v1246 = vsel %vm1239, %v1245, 0.0
        %1247 = vadd.xlane.f32.xlu0 %v1246
        %v1248 = vpop.xlane.xlu0 %1247
        %v1249 = vrcp.pop %v1248
        %v1250 = vmul.f32 %v1245, %v1249
        %v1251 = vpack.c.bf16 %v1250, %v1250
        %v1253 = vsel %vm1239, %v1251, 0
        %vm1255 = vcmask 1043456
        %v1257 = vsel %vm1255, %v1190, 0
        %1259 = vmatprep.subr.bf16.mxu0 0
        %1260 = vmatpush1.bf16.msra.mxu0 0
        %1261 = vmatprep.subr.bf16.mxu0 0
        %1262 = vmatpush1.bf16.msra.mxu0 0
        %1263 = vmatprep.subr.bf16.mxu0 0
        %1264 = vmatpush1.bf16.msra.mxu0 0
        %1265 = vmatprep.subr.bf16.mxu0 0
        %1266 = vmatpush1.bf16.msra.mxu0 0
        %1267 = vmatprep.subr.bf16.mxu0 0
        %1268 = vmatpush1.bf16.msra.mxu0 0
        %1269 = vmatprep.subr.bf16.mxu0 0
        %1270 = vmatpush1.bf16.msra.mxu0 0
        %1271 = vmatprep.subr.bf16.mxu0 0
        %1272 = vmatpush1.bf16.msra.mxu0 0
        %1273 = vmatprep.subr.bf16.mxu0 0
        %1274 = vmatpush1.bf16.msra.mxu0 %v1257
        %1275 = vmatprep.subr.bf16.mxu0 0
        %1276 = vmatpush2.bf16.msra.mxu0 0
        %1277 = vmatprep.subr.bf16.mxu0 0
        %1278 = vmatpush2.bf16.msra.mxu0 0
        %1279 = vmatprep.subr.bf16.mxu0 0
        %1280 = vmatpush2.bf16.msra.mxu0 0
        %1281 = vmatprep.subr.bf16.mxu0 0
        %1282 = vmatpush2.bf16.msra.mxu0 0
        %1283 = vmatprep.subr.bf16.mxu0 0
        %1284 = vmatpush2.bf16.msra.mxu0 0
        %1285 = vmatprep.subr.bf16.mxu0 0
        %1286 = vmatpush2.bf16.msra.mxu0 0
        %1287 = vmatprep.subr.bf16.mxu0 0
        %1288 = vmatpush2.bf16.msra.mxu0 0
        %1289 = vmatprep.subr.bf16.mxu0 0
        %1290 = vmatpush2.bf16.msra.mxu0 0
        %1291 = vmatprep.mubr.bf16.mxu0 0
        %1292 = vmatmul.mubr.bf16.gmra.mxu0 %v1253
        %v1293 = vpop.f32.mrf.mxu0
        %v1294 = vadd.f32 0.0, %v1293
        %v1295 = vpop.f32.mrf.mxu0
        %v1296 = vpop.f32.mrf.mxu0
        %v1297 = vpop.f32.mrf.mxu0
        %1298 = vdwg.mxu0
        %v1299 = vpack.c.bf16 %v1294, %v1294
        %vm1300 = vcmask 257024
        %1301 = vst.msk [vmem:[#allocation3] sm:$0xf] %vm1300, %v1299
        %v1302 = vld [vmem:[#allocation2] sm:$0xf]
        %v1303 = vld [vmem:[#allocation2 + $0x4] sm:$0xf]
        %v1304 = vld [vmem:[#allocation2 + $0x8] sm:$0xf]
        %v1306 = vunpack.c.l.b16 %v1302
        %v1307 = vpack.c.b16 %v1306, %v1306
        %1308 = vrot.lane.b32.xlu0 %v1307, 96
        %v1309 = vpop.permute.xlu0 %1308
        %v1311 = vunpack.c.l.b16 %v1303
        %v1312 = vpack.c.b16 %v1311, %v1311
        %1313 = vrot.lane.b32.xlu0 %v1312, 96
        %v1314 = vpop.permute.xlu0 %1313
        %v1316 = vsel %vm1191, %v1309, 0
        %v1319 = vsel %vm1191, %v1314, 0
        %1321 = vmatprep.subr.bf16.mxu0 0
        %1322 = vmatpush1.bf16.xpose.msra.mxu0 0
        %1323 = vmatprep.subr.bf16.mxu0 0
        %1324 = vmatpush1.bf16.xpose.msra.mxu0 0
        %1325 = vmatprep.subr.bf16.mxu0 0
        %1326 = vmatpush1.bf16.xpose.msra.mxu0 0
        %1327 = vmatprep.subr.bf16.mxu0 0
        %1328 = vmatpush1.bf16.xpose.msra.mxu0 0
        %1329 = vmatprep.subr.bf16.mxu0 0
        %1330 = vmatpush1.bf16.xpose.msra.mxu0 0
        %1331 = vmatprep.subr.bf16.mxu0 0
        %1332 = vmatpush1.bf16.xpose.msra.mxu0 0
        %1333 = vmatprep.subr.bf16.mxu0 0
        %1334 = vmatpush1.bf16.xpose.msra.mxu0 0
        %1335 = vmatprep.subr.bf16.mxu0 0
        %1336 = vmatpush1.bf16.xpose.msra.mxu0 %v1319
        %1337 = vmatprep.subr.bf16.mxu0 0
        %1338 = vmatpush2.bf16.xpose.msra.mxu0 0
        %1339 = vmatprep.subr.bf16.mxu0 0
        %1340 = vmatpush2.bf16.xpose.msra.mxu0 0
        %1341 = vmatprep.subr.bf16.mxu0 0
        %1342 = vmatpush2.bf16.xpose.msra.mxu0 0
        %1343 = vmatprep.subr.bf16.mxu0 0
        %1344 = vmatpush2.bf16.xpose.msra.mxu0 0
        %1345 = vmatprep.subr.bf16.mxu0 0
        %1346 = vmatpush2.bf16.xpose.msra.mxu0 0
        %1347 = vmatprep.subr.bf16.mxu0 0
        %1348 = vmatpush2.bf16.xpose.msra.mxu0 0
        %1349 = vmatprep.subr.bf16.mxu0 0
        %1350 = vmatpush2.bf16.xpose.msra.mxu0 0
        %1351 = vmatprep.subr.bf16.mxu0 0
        %1352 = vmatpush2.bf16.xpose.msra.mxu0 0
        %1353 = vmatprep.mubr.bf16.mxu0 0
        %1354 = vmatmul.mubr.bf16.gmra.mxu0 %v1316
        %v1355 = vpop.f32.mrf.mxu0
        %v1356 = vadd.f32 0.0, %v1355
        %v1357 = vpop.f32.mrf.mxu0
        %v1358 = vpop.f32.mrf.mxu0
        %v1359 = vpop.f32.mrf.mxu0
        %1360 = vdwg.mxu0
        %v1361 = vsel %vm1187, %v1356, -1e+30
        %v1362 = vsel %vm1239, %v1361, -inf
        %1363 = vmax.xlane.f32.xlu0 %v1362
        %v1364 = vpop.xlane.xlu0 %1363
        %v1365 = vsub.f32 %v1361, %v1364
        %v1366 = vmul.f32 %v1365, 1.442695
        %v1367 = vpow.pop %v1366
        %v1368 = vsel %vm1239, %v1367, 0.0
        %1369 = vadd.xlane.f32.xlu0 %v1368
        %v1370 = vpop.xlane.xlu0 %1369
        %v1371 = vrcp.pop %v1370
        %v1372 = vmul.f32 %v1367, %v1371
        %v1373 = vpack.c.bf16 %v1372, %v1372
        %v1375 = vunpack.c.l.b16 %v1304
        %v1376 = vpack.c.b16 %v1375, %v1375
        %1377 = vrot.lane.b32.xlu0 %v1376, 96
        %v1378 = vpop.permute.xlu0 %1377
        %v1380 = vsel %vm1239, %v1373, 0
        %v1383 = vsel %vm1255, %v1378, 0
        %1385 = vmatprep.subr.bf16.mxu0 0
        %1386 = vmatpush1.bf16.msra.mxu0 0
        %1387 = vmatprep.subr.bf16.mxu0 0
        %1388 = vmatpush1.bf16.msra.mxu0 0
        %1389 = vmatprep.subr.bf16.mxu0 0
        %1390 = vmatpush1.bf16.msra.mxu0 0
        %1391 = vmatprep.subr.bf16.mxu0 0
        %1392 = vmatpush1.bf16.msra.mxu0 0
        %1393 = vmatprep.subr.bf16.mxu0 0
        %1394 = vmatpush1.bf16.msra.mxu0 0
        %1395 = vmatprep.subr.bf16.mxu0 0
        %1396 = vmatpush1.bf16.msra.mxu0 0
        %1397 = vmatprep.subr.bf16.mxu0 0
        %1398 = vmatpush1.bf16.msra.mxu0 0
        %1399 = vmatprep.subr.bf16.mxu0 0
        %1400 = vmatpush1.bf16.msra.mxu0 %v1383
        %1401 = vmatprep.subr.bf16.mxu0 0
        %1402 = vmatpush2.bf16.msra.mxu0 0
        %1403 = vmatprep.subr.bf16.mxu0 0
        %1404 = vmatpush2.bf16.msra.mxu0 0
        %1405 = vmatprep.subr.bf16.mxu0 0
        %1406 = vmatpush2.bf16.msra.mxu0 0
        %1407 = vmatprep.subr.bf16.mxu0 0
        %1408 = vmatpush2.bf16.msra.mxu0 0
        %1409 = vmatprep.subr.bf16.mxu0 0
        %1410 = vmatpush2.bf16.msra.mxu0 0
        %1411 = vmatprep.subr.bf16.mxu0 0
        %1412 = vmatpush2.bf16.msra.mxu0 0
        %1413 = vmatprep.subr.bf16.mxu0 0
        %1414 = vmatpush2.bf16.msra.mxu0 0
        %1415 = vmatprep.subr.bf16.mxu0 0
        %1416 = vmatpush2.bf16.msra.mxu0 0
        %1417 = vmatprep.mubr.bf16.mxu0 0
        %1418 = vmatmul.mubr.bf16.gmra.mxu0 %v1380
        %v1419 = vpop.f32.mrf.mxu0
        %v1420 = vadd.f32 0.0, %v1419
        %v1421 = vpop.f32.mrf.mxu0
        %v1422 = vpop.f32.mrf.mxu0
        %v1423 = vpop.f32.mrf.mxu0
        %1424 = vdwg.mxu0
        %v1425 = vpack.c.bf16 %v1420, %v1420
        %v1427 = vunpack.c.l.b16 %v1425
        %v1428 = vpack.c.b16 %v1427, %v1427
        %1429 = vrot.lane.b32.xlu0 %v1428, 32
        %v1430 = vpop.permute.xlu0 %1429
        %vm1432 = vcmask 519424
        %1433 = vst.msk [vmem:[#allocation3] sm:$0xf] %vm1432, %v1430
        %v1434 = vld [vmem:[#allocation2] sm:$0xf]
        %v1435 = vld [vmem:[#allocation2 + $0x4] sm:$0xf]
        %v1436 = vld [vmem:[#allocation2 + $0x8] sm:$0xf]
        %v1438 = vunpack.c.l.b16 %v1434
        %v1439 = vpack.c.b16 %v1438, %v1438
        %1440 = vrot.lane.b32.xlu0 %v1439, 64
        %v1441 = vpop.permute.xlu0 %1440
        %v1443 = vunpack.c.l.b16 %v1435
        %v1444 = vpack.c.b16 %v1443, %v1443
        %1445 = vrot.lane.b32.xlu0 %v1444, 64
        %v1446 = vpop.permute.xlu0 %1445
        %v1448 = vsel %vm1191, %v1441, 0
        %v1451 = vsel %vm1191, %v1446, 0
        %1453 = vmatprep.subr.bf16.mxu0 0
        %1454 = vmatpush1.bf16.xpose.msra.mxu0 0
        %1455 = vmatprep.subr.bf16.mxu0 0
        %1456 = vmatpush1.bf16.xpose.msra.mxu0 0
        %1457 = vmatprep.subr.bf16.mxu0 0
        %1458 = vmatpush1.bf16.xpose.msra.mxu0 0
        %1459 = vmatprep.subr.bf16.mxu0 0
        %1460 = vmatpush1.bf16.xpose.msra.mxu0 0
        %1461 = vmatprep.subr.bf16.mxu0 0
        %1462 = vmatpush1.bf16.xpose.msra.mxu0 0
        %1463 = vmatprep.subr.bf16.mxu0 0
        %1464 = vmatpush1.bf16.xpose.msra.mxu0 0
        %1465 = vmatprep.subr.bf16.mxu0 0
        %1466 = vmatpush1.bf16.xpose.msra.mxu0 0
        %1467 = vmatprep.subr.bf16.mxu0 0
        %1468 = vmatpush1.bf16.xpose.msra.mxu0 %v1451
        %1469 = vmatprep.subr.bf16.mxu0 0
        %1470 = vmatpush2.bf16.xpose.msra.mxu0 0
        %1471 = vmatprep.subr.bf16.mxu0 0
        %1472 = vmatpush2.bf16.xpose.msra.mxu0 0
        %1473 = vmatprep.subr.bf16.mxu0 0
        %1474 = vmatpush2.bf16.xpose.msra.mxu0 0
        %1475 = vmatprep.subr.bf16.mxu0 0
        %1476 = vmatpush2.bf16.xpose.msra.mxu0 0
        %1477 = vmatprep.subr.bf16.mxu0 0
        %1478 = vmatpush2.bf16.xpose.msra.mxu0 0
        %1479 = vmatprep.subr.bf16.mxu0 0
        %1480 = vmatpush2.bf16.xpose.msra.mxu0 0
        %1481 = vmatprep.subr.bf16.mxu0 0
        %1482 = vmatpush2.bf16.xpose.msra.mxu0 0
        %1483 = vmatprep.subr.bf16.mxu0 0
        %1484 = vmatpush2.bf16.xpose.msra.mxu0 0
        %1485 = vmatprep.mubr.bf16.mxu0 0
        %1486 = vmatmul.mubr.bf16.gmra.mxu0 %v1448
        %v1487 = vpop.f32.mrf.mxu0
        %v1488 = vadd.f32 0.0, %v1487
        %v1489 = vpop.f32.mrf.mxu0
        %v1490 = vpop.f32.mrf.mxu0
        %v1491 = vpop.f32.mrf.mxu0
        %1492 = vdwg.mxu0
        %v1493 = vsel %vm1187, %v1488, -1e+30
        %v1494 = vsel %vm1239, %v1493, -inf
        %1495 = vmax.xlane.f32.xlu0 %v1494
        %v1496 = vpop.xlane.xlu0 %1495
        %v1497 = vsub.f32 %v1493, %v1496
        %v1498 = vmul.f32 %v1497, 1.442695
        %v1499 = vpow.pop %v1498
        %v1500 = vsel %vm1239, %v1499, 0.0
        %1501 = vadd.xlane.f32.xlu0 %v1500
        %v1502 = vpop.xlane.xlu0 %1501
        %v1503 = vrcp.pop %v1502
        %v1504 = vmul.f32 %v1499, %v1503
        %v1505 = vpack.c.bf16 %v1504, %v1504
        %v1507 = vunpack.c.l.b16 %v1436
        %v1508 = vpack.c.b16 %v1507, %v1507
        %1509 = vrot.lane.b32.xlu0 %v1508, 64
        %v1510 = vpop.permute.xlu0 %1509
        %v1512 = vsel %vm1239, %v1505, 0
        %v1515 = vsel %vm1255, %v1510, 0
        %1517 = vmatprep.subr.bf16.mxu0 0
        %1518 = vmatpush1.bf16.msra.mxu0 0
        %1519 = vmatprep.subr.bf16.mxu0 0
        %1520 = vmatpush1.bf16.msra.mxu0 0
        %1521 = vmatprep.subr.bf16.mxu0 0
        %1522 = vmatpush1.bf16.msra.mxu0 0
        %1523 = vmatprep.subr.bf16.mxu0 0
        %1524 = vmatpush1.bf16.msra.mxu0 0
        %1525 = vmatprep.subr.bf16.mxu0 0
        %1526 = vmatpush1.bf16.msra.mxu0 0
        %1527 = vmatprep.subr.bf16.mxu0 0
        %1528 = vmatpush1.bf16.msra.mxu0 0
        %1529 = vmatprep.subr.bf16.mxu0 0
        %1530 = vmatpush1.bf16.msra.mxu0 0
        %1531 = vmatprep.subr.bf16.mxu0 0
        %1532 = vmatpush1.bf16.msra.mxu0 %v1515
        %1533 = vmatprep.subr.bf16.mxu0 0
        %1534 = vmatpush2.bf16.msra.mxu0 0
        %1535 = vmatprep.subr.bf16.mxu0 0
        %1536 = vmatpush2.bf16.msra.mxu0 0
        %1537 = vmatprep.subr.bf16.mxu0 0
        %1538 = vmatpush2.bf16.msra.mxu0 0
        %1539 = vmatprep.subr.bf16.mxu0 0
        %1540 = vmatpush2.bf16.msra.mxu0 0
        %1541 = vmatprep.subr.bf16.mxu0 0
        %1542 = vmatpush2.bf16.msra.mxu0 0
        %1543 = vmatprep.subr.bf16.mxu0 0
        %1544 = vmatpush2.bf16.msra.mxu0 0
        %1545 = vmatprep.subr.bf16.mxu0 0
        %1546 = vmatpush2.bf16.msra.mxu0 0
        %1547 = vmatprep.subr.bf16.mxu0 0
        %1548 = vmatpush2.bf16.msra.mxu0 0
        %1549 = vmatprep.mubr.bf16.mxu0 0
        %1550 = vmatmul.mubr.bf16.gmra.mxu0 %v1512
        %v1551 = vpop.f32.mrf.mxu0
        %v1552 = vadd.f32 0.0, %v1551
        %v1553 = vpop.f32.mrf.mxu0
        %v1554 = vpop.f32.mrf.mxu0
        %v1555 = vpop.f32.mrf.mxu0
        %1556 = vdwg.mxu0
        %v1557 = vpack.c.bf16 %v1552, %v1552
        %v1559 = vunpack.c.l.b16 %v1557
        %v1560 = vpack.c.b16 %v1559, %v1559
        %1561 = vrot.lane.b32.xlu0 %v1560, 64
        %v1562 = vpop.permute.xlu0 %1561
        %vm1564 = vcmask 781824
        %1565 = vst.msk [vmem:[#allocation3] sm:$0xf] %vm1564, %v1562
        %v1566 = vld [vmem:[#allocation2] sm:$0xf]
        %v1567 = vld [vmem:[#allocation2 + $0x4] sm:$0xf]
        %v1568 = vld [vmem:[#allocation2 + $0x8] sm:$0xf]
        %v1570 = vunpack.c.l.b16 %v1566
        %v1571 = vpack.c.b16 %v1570, %v1570
        %1572 = vrot.lane.b32.xlu0 %v1571, 32
        %v1573 = vpop.permute.xlu0 %1572
        %v1575 = vunpack.c.l.b16 %v1567
        %v1576 = vpack.c.b16 %v1575, %v1575
        %1577 = vrot.lane.b32.xlu0 %v1576, 32
        %v1578 = vpop.permute.xlu0 %1577
        %v1580 = vsel %vm1191, %v1573, 0
        %v1583 = vsel %vm1191, %v1578, 0
        %1585 = vmatprep.subr.bf16.mxu0 0
        %1586 = vmatpush1.bf16.xpose.msra.mxu0 0
        %1587 = vmatprep.subr.bf16.mxu0 0
        %1588 = vmatpush1.bf16.xpose.msra.mxu0 0
        %1589 = vmatprep.subr.bf16.mxu0 0
        %1590 = vmatpush1.bf16.xpose.msra.mxu0 0
        %1591 = vmatprep.subr.bf16.mxu0 0
        %1592 = vmatpush1.bf16.xpose.msra.mxu0 0
        %1593 = vmatprep.subr.bf16.mxu0 0
        %1594 = vmatpush1.bf16.xpose.msra.mxu0 0
        %1595 = vmatprep.subr.bf16.mxu0 0
        %1596 = vmatpush1.bf16.xpose.msra.mxu0 0
        %1597 = vmatprep.subr.bf16.mxu0 0
        %1598 = vmatpush1.bf16.xpose.msra.mxu0 0
        %1599 = vmatprep.subr.bf16.mxu0 0
        %1600 = vmatpush1.bf16.xpose.msra.mxu0 %v1583
        %1601 = vmatprep.subr.bf16.mxu0 0
        %1602 = vmatpush2.bf16.xpose.msra.mxu0 0
        %1603 = vmatprep.subr.bf16.mxu0 0
        %1604 = vmatpush2.bf16.xpose.msra.mxu0 0
        %1605 = vmatprep.subr.bf16.mxu0 0
        %1606 = vmatpush2.bf16.xpose.msra.mxu0 0
        %1607 = vmatprep.subr.bf16.mxu0 0
        %1608 = vmatpush2.bf16.xpose.msra.mxu0 0
        %1609 = vmatprep.subr.bf16.mxu0 0
        %1610 = vmatpush2.bf16.xpose.msra.mxu0 0
        %1611 = vmatprep.subr.bf16.mxu0 0
        %1612 = vmatpush2.bf16.xpose.msra.mxu0 0
        %1613 = vmatprep.subr.bf16.mxu0 0
        %1614 = vmatpush2.bf16.xpose.msra.mxu0 0
        %1615 = vmatprep.subr.bf16.mxu0 0
        %1616 = vmatpush2.bf16.xpose.msra.mxu0 0
        %1617 = vmatprep.mubr.bf16.mxu0 0
        %1618 = vmatmul.mubr.bf16.gmra.mxu0 %v1580
        %v1619 = vpop.f32.mrf.mxu0
        %v1620 = vadd.f32 0.0, %v1619
        %v1621 = vpop.f32.mrf.mxu0
        %v1622 = vpop.f32.mrf.mxu0
        %v1623 = vpop.f32.mrf.mxu0
        %1624 = vdwg.mxu0
        %v1625 = vsel %vm1187, %v1620, -1e+30
        %v1626 = vsel %vm1239, %v1625, -inf
        %1627 = vmax.xlane.f32.xlu0 %v1626
        %v1628 = vpop.xlane.xlu0 %1627
        %v1629 = vsub.f32 %v1625, %v1628
        %v1630 = vmul.f32 %v1629, 1.442695
        %v1631 = vpow.pop %v1630
        %v1632 = vsel %vm1239, %v1631, 0.0
        %1633 = vadd.xlane.f32.xlu0 %v1632
        %v1634 = vpop.xlane.xlu0 %1633
        %v1635 = vrcp.pop %v1634
        %v1636 = vmul.f32 %v1631, %v1635
        %v1637 = vpack.c.bf16 %v1636, %v1636
        %v1639 = vunpack.c.l.b16 %v1568
        %v1640 = vpack.c.b16 %v1639, %v1639
        %1641 = vrot.lane.b32.xlu0 %v1640, 32
        %v1642 = vpop.permute.xlu0 %1641
        %v1644 = vsel %vm1239, %v1637, 0
        %v1647 = vsel %vm1255, %v1642, 0
        %1649 = vmatprep.subr.bf16.mxu0 0
        %1650 = vmatpush1.bf16.msra.mxu0 0
        %1651 = vmatprep.subr.bf16.mxu0 0
        %1652 = vmatpush1.bf16.msra.mxu0 0
        %1653 = vmatprep.subr.bf16.mxu0 0
        %1654 = vmatpush1.bf16.msra.mxu0 0
        %1655 = vmatprep.subr.bf16.mxu0 0
        %1656 = vmatpush1.bf16.msra.mxu0 0
        %1657 = vmatprep.subr.bf16.mxu0 0
        %1658 = vmatpush1.bf16.msra.mxu0 0
        %1659 = vmatprep.subr.bf16.mxu0 0
        %1660 = vmatpush1.bf16.msra.mxu0 0
        %1661 = vmatprep.subr.bf16.mxu0 0
        %1662 = vmatpush1.bf16.msra.mxu0 0
        %1663 = vmatprep.subr.bf16.mxu0 0
        %1664 = vmatpush1.bf16.msra.mxu0 %v1647
        %1665 = vmatprep.subr.bf16.mxu0 0
        %1666 = vmatpush2.bf16.msra.mxu0 0
        %1667 = vmatprep.subr.bf16.mxu0 0
        %1668 = vmatpush2.bf16.msra.mxu0 0
        %1669 = vmatprep.subr.bf16.mxu0 0
        %1670 = vmatpush2.bf16.msra.mxu0 0
        %1671 = vmatprep.subr.bf16.mxu0 0
        %1672 = vmatpush2.bf16.msra.mxu0 0
        %1673 = vmatprep.subr.bf16.mxu0 0
        %1674 = vmatpush2.bf16.msra.mxu0 0
        %1675 = vmatprep.subr.bf16.mxu0 0
        %1676 = vmatpush2.bf16.msra.mxu0 0
        %1677 = vmatprep.subr.bf16.mxu0 0
        %1678 = vmatpush2.bf16.msra.mxu0 0
        %1679 = vmatprep.subr.bf16.mxu0 0
        %1680 = vmatpush2.bf16.msra.mxu0 0
        %1681 = vmatprep.mubr.bf16.mxu0 0
        %1682 = vmatmul.mubr.bf16.gmra.mxu0 %v1644
        %v1683 = vpop.f32.mrf.mxu0
        %v1684 = vadd.f32 0.0, %v1683
        %v1685 = vpop.f32.mrf.mxu0
        %v1686 = vpop.f32.mrf.mxu0
        %v1687 = vpop.f32.mrf.mxu0
        %1688 = vdwg.mxu0
        %v1689 = vpack.c.bf16 %v1684, %v1684
        %v1691 = vunpack.c.l.b16 %v1689
        %v1692 = vpack.c.b16 %v1691, %v1691
        %1693 = vrot.lane.b32.xlu0 %v1692, 96
        %v1694 = vpop.permute.xlu0 %1693
        %vm1696 = vcmask 1044224
        %1697 = vst.msk [vmem:[#allocation3] sm:$0xf] %vm1696, %v1694
        %v1698 = vld [vmem:[#allocation2 + $0xc] sm:$0xf]
        %v1699 = vld [vmem:[#allocation2 + $0x10] sm:$0xf]
        %v1700 = vld [vmem:[#allocation2 + $0x14] sm:$0xf]
        %v1702 = vsel %vm1191, %v1698, 0
        %v1705 = vsel %vm1191, %v1699, 0
        %1707 = vmatprep.subr.bf16.mxu0 0
        %1708 = vmatpush1.bf16.xpose.msra.mxu0 0
        %1709 = vmatprep.subr.bf16.mxu0 0
        %1710 = vmatpush1.bf16.xpose.msra.mxu0 0
        %1711 = vmatprep.subr.bf16.mxu0 0
        %1712 = vmatpush1.bf16.xpose.msra.mxu0 0
        %1713 = vmatprep.subr.bf16.mxu0 0
        %1714 = vmatpush1.bf16.xpose.msra.mxu0 0
        %1715 = vmatprep.subr.bf16.mxu0 0
        %1716 = vmatpush1.bf16.xpose.msra.mxu0 0
        %1717 = vmatprep.subr.bf16.mxu0 0
        %1718 = vmatpush1.bf16.xpose.msra.mxu0 0
        %1719 = vmatprep.subr.bf16.mxu0 0
        %1720 = vmatpush1.bf16.xpose.msra.mxu0 0
        %1721 = vmatprep.subr.bf16.mxu0 0
        %1722 = vmatpush1.bf16.xpose.msra.mxu0 %v1705
        %1723 = vmatprep.subr.bf16.mxu0 0
        %1724 = vmatpush2.bf16.xpose.msra.mxu0 0
        %1725 = vmatprep.subr.bf16.mxu0 0
        %1726 = vmatpush2.bf16.xpose.msra.mxu0 0
        %1727 = vmatprep.subr.bf16.mxu0 0
        %1728 = vmatpush2.bf16.xpose.msra.mxu0 0
        %1729 = vmatprep.subr.bf16.mxu0 0
        %1730 = vmatpush2.bf16.xpose.msra.mxu0 0
        %1731 = vmatprep.subr.bf16.mxu0 0
        %1732 = vmatpush2.bf16.xpose.msra.mxu0 0
        %1733 = vmatprep.subr.bf16.mxu0 0
        %1734 = vmatpush2.bf16.xpose.msra.mxu0 0
        %1735 = vmatprep.subr.bf16.mxu0 0
        %1736 = vmatpush2.bf16.xpose.msra.mxu0 0
        %1737 = vmatprep.subr.bf16.mxu0 0
        %1738 = vmatpush2.bf16.xpose.msra.mxu0 0
        %1739 = vmatprep.mubr.bf16.mxu0 0
        %1740 = vmatmul.mubr.bf16.gmra.mxu0 %v1702
        %v1741 = vpop.f32.mrf.mxu0
        %v1742 = vadd.f32 0.0, %v1741
        %v1743 = vpop.f32.mrf.mxu0
        %v1744 = vpop.f32.mrf.mxu0
        %v1745 = vpop.f32.mrf.mxu0
        %1746 = vdwg.mxu0
        %v1747 = vsel %vm1187, %v1742, -1e+30
        %v1748 = vsel %vm1239, %v1747, -inf
        %1749 = vmax.xlane.f32.xlu0 %v1748
        %v1750 = vpop.xlane.xlu0 %1749
        %v1751 = vsub.f32 %v1747, %v1750
        %v1752 = vmul.f32 %v1751, 1.442695
        %v1753 = vpow.pop %v1752
        %v1754 = vsel %vm1239, %v1753, 0.0
        %1755 = vadd.xlane.f32.xlu0 %v1754
        %v1756 = vpop.xlane.xlu0 %1755
        %v1757 = vrcp.pop %v1756
        %v1758 = vmul.f32 %v1753, %v1757
        %v1759 = vpack.c.bf16 %v1758, %v1758
        %v1761 = vsel %vm1239, %v1759, 0
        %v1764 = vsel %vm1255, %v1700, 0
        %1766 = vmatprep.subr.bf16.mxu0 0
        %1767 = vmatpush1.bf16.msra.mxu0 0
        %1768 = vmatprep.subr.bf16.mxu0 0
        %1769 = vmatpush1.bf16.msra.mxu0 0
        %1770 = vmatprep.subr.bf16.mxu0 0
        %1771 = vmatpush1.bf16.msra.mxu0 0
        %1772 = vmatprep.subr.bf16.mxu0 0
        %1773 = vmatpush1.bf16.msra.mxu0 0
        %1774 = vmatprep.subr.bf16.mxu0 0
        %1775 = vmatpush1.bf16.msra.mxu0 0
        %1776 = vmatprep.subr.bf16.mxu0 0
        %1777 = vmatpush1.bf16.msra.mxu0 0
        %1778 = vmatprep.subr.bf16.mxu0 0
        %1779 = vmatpush1.bf16.msra.mxu0 0
        %1780 = vmatprep.subr.bf16.mxu0 0
        %1781 = vmatpush1.bf16.msra.mxu0 %v1764
        %1782 = vmatprep.subr.bf16.mxu0 0
        %1783 = vmatpush2.bf16.msra.mxu0 0
        %1784 = vmatprep.subr.bf16.mxu0 0
        %1785 = vmatpush2.bf16.msra.mxu0 0
        %1786 = vmatprep.subr.bf16.mxu0 0
        %1787 = vmatpush2.bf16.msra.mxu0 0
        %1788 = vmatprep.subr.bf16.mxu0 0
        %1789 = vmatpush2.bf16.msra.mxu0 0
        %1790 = vmatprep.subr.bf16.mxu0 0
        %1791 = vmatpush2.bf16.msra.mxu0 0
        %1792 = vmatprep.subr.bf16.mxu0 0
        %1793 = vmatpush2.bf16.msra.mxu0 0
        %1794 = vmatprep.subr.bf16.mxu0 0
        %1795 = vmatpush2.bf16.msra.mxu0 0
        %1796 = vmatprep.subr.bf16.mxu0 0
        %1797 = vmatpush2.bf16.msra.mxu0 0
        %1798 = vmatprep.mubr.bf16.mxu0 0
        %1799 = vmatmul.mubr.bf16.gmra.mxu0 %v1761
        %v1800 = vpop.f32.mrf.mxu0
        %v1801 = vadd.f32 0.0, %v1800
        %v1802 = vpop.f32.mrf.mxu0
        %v1803 = vpop.f32.mrf.mxu0
        %v1804 = vpop.f32.mrf.mxu0
        %1805 = vdwg.mxu0
        %v1806 = vpack.c.bf16 %v1801, %v1801
        %1807 = vst.msk [vmem:[#allocation3 + $0x4] sm:$0xf] %vm1300, %v1806
        %v1808 = vld [vmem:[#allocation2 + $0xc] sm:$0xf]
        %v1809 = vld [vmem:[#allocation2 + $0x10] sm:$0xf]
        %v1810 = vld [vmem:[#allocation2 + $0x14] sm:$0xf]
        %v1812 = vunpack.c.l.b16 %v1808
        %v1813 = vpack.c.b16 %v1812, %v1812
        %1814 = vrot.lane.b32.xlu0 %v1813, 96
        %v1815 = vpop.permute.xlu0 %1814
        %v1817 = vunpack.c.l.b16 %v1809
        %v1818 = vpack.c.b16 %v1817, %v1817
        %1819 = vrot.lane.b32.xlu0 %v1818, 96
        %v1820 = vpop.permute.xlu0 %1819
        %v1822 = vsel %vm1191, %v1815, 0
        %v1825 = vsel %vm1191, %v1820, 0
        %1827 = vmatprep.subr.bf16.mxu0 0
        %1828 = vmatpush1.bf16.xpose.msra.mxu0 0
        %1829 = vmatprep.subr.bf16.mxu0 0
        %1830 = vmatpush1.bf16.xpose.msra.mxu0 0
        %1831 = vmatprep.subr.bf16.mxu0 0
        %1832 = vmatpush1.bf16.xpose.msra.mxu0 0
        %1833 = vmatprep.subr.bf16.mxu0 0
        %1834 = vmatpush1.bf16.xpose.msra.mxu0 0
        %1835 = vmatprep.subr.bf16.mxu0 0
        %1836 = vmatpush1.bf16.xpose.msra.mxu0 0
        %1837 = vmatprep.subr.bf16.mxu0 0
        %1838 = vmatpush1.bf16.xpose.msra.mxu0 0
        %1839 = vmatprep.subr.bf16.mxu0 0
        %1840 = vmatpush1.bf16.xpose.msra.mxu0 0
        %1841 = vmatprep.subr.bf16.mxu0 0
        %1842 = vmatpush1.bf16.xpose.msra.mxu0 %v1825
        %1843 = vmatprep.subr.bf16.mxu0 0
        %1844 = vmatpush2.bf16.xpose.msra.mxu0 0
        %1845 = vmatprep.subr.bf16.mxu0 0
        %1846 = vmatpush2.bf16.xpose.msra.mxu0 0
        %1847 = vmatprep.subr.bf16.mxu0 0
        %1848 = vmatpush2.bf16.xpose.msra.mxu0 0
        %1849 = vmatprep.subr.bf16.mxu0 0
        %1850 = vmatpush2.bf16.xpose.msra.mxu0 0
        %1851 = vmatprep.subr.bf16.mxu0 0
        %1852 = vmatpush2.bf16.xpose.msra.mxu0 0
        %1853 = vmatprep.subr.bf16.mxu0 0
        %1854 = vmatpush2.bf16.xpose.msra.mxu0 0
        %1855 = vmatprep.subr.bf16.mxu0 0
        %1856 = vmatpush2.bf16.xpose.msra.mxu0 0
        %1857 = vmatprep.subr.bf16.mxu0 0
        %1858 = vmatpush2.bf16.xpose.msra.mxu0 0
        %1859 = vmatprep.mubr.bf16.mxu0 0
        %1860 = vmatmul.mubr.bf16.gmra.mxu0 %v1822
        %v1861 = vpop.f32.mrf.mxu0
        %v1862 = vadd.f32 0.0, %v1861
        %v1863 = vpop.f32.mrf.mxu0
        %v1864 = vpop.f32.mrf.mxu0
        %v1865 = vpop.f32.mrf.mxu0
        %1866 = vdwg.mxu0
        %v1867 = vsel %vm1187, %v1862, -1e+30
        %v1868 = vsel %vm1239, %v1867, -inf
        %1869 = vmax.xlane.f32.xlu0 %v1868
        %v1870 = vpop.xlane.xlu0 %1869
        %v1871 = vsub.f32 %v1867, %v1870
        %v1872 = vmul.f32 %v1871, 1.442695
        %v1873 = vpow.pop %v1872
        %v1874 = vsel %vm1239, %v1873, 0.0
        %1875 = vadd.xlane.f32.xlu0 %v1874
        %v1876 = vpop.xlane.xlu0 %1875
        %v1877 = vrcp.pop %v1876
        %v1878 = vmul.f32 %v1873, %v1877
        %v1879 = vpack.c.bf16 %v1878, %v1878
        %v1881 = vunpack.c.l.b16 %v1810
        %v1882 = vpack.c.b16 %v1881, %v1881
        %1883 = vrot.lane.b32.xlu0 %v1882, 96
        %v1884 = vpop.permute.xlu0 %1883
        %v1886 = vsel %vm1239, %v1879, 0
        %v1889 = vsel %vm1255, %v1884, 0
        %1891 = vmatprep.subr.bf16.mxu0 0
        %1892 = vmatpush1.bf16.msra.mxu0 0
        %1893 = vmatprep.subr.bf16.mxu0 0
        %1894 = vmatpush1.bf16.msra.mxu0 0
        %1895 = vmatprep.subr.bf16.mxu0 0
        %1896 = vmatpush1.bf16.msra.mxu0 0
        %1897 = vmatprep.subr.bf16.mxu0 0
        %1898 = vmatpush1.bf16.msra.mxu0 0
        %1899 = vmatprep.subr.bf16.mxu0 0
        %1900 = vmatpush1.bf16.msra.mxu0 0
        %1901 = vmatprep.subr.bf16.mxu0 0
        %1902 = vmatpush1.bf16.msra.mxu0 0
        %1903 = vmatprep.subr.bf16.mxu0 0
        %1904 = vmatpush1.bf16.msra.mxu0 0
        %1905 = vmatprep.subr.bf16.mxu0 0
        %1906 = vmatpush1.bf16.msra.mxu0 %v1889
        %1907 = vmatprep.subr.bf16.mxu0 0
        %1908 = vmatpush2.bf16.msra.mxu0 0
        %1909 = vmatprep.subr.bf16.mxu0 0
        %1910 = vmatpush2.bf16.msra.mxu0 0
        %1911 = vmatprep.subr.bf16.mxu0 0
        %1912 = vmatpush2.bf16.msra.mxu0 0
        %1913 = vmatprep.subr.bf16.mxu0 0
        %1914 = vmatpush2.bf16.msra.mxu0 0
        %1915 = vmatprep.subr.bf16.mxu0 0
        %1916 = vmatpush2.bf16.msra.mxu0 0
        %1917 = vmatprep.subr.bf16.mxu0 0
        %1918 = vmatpush2.bf16.msra.mxu0 0
        %1919 = vmatprep.subr.bf16.mxu0 0
        %1920 = vmatpush2.bf16.msra.mxu0 0
        %1921 = vmatprep.subr.bf16.mxu0 0
        %1922 = vmatpush2.bf16.msra.mxu0 0
        %1923 = vmatprep.mubr.bf16.mxu0 0
        %1924 = vmatmul.mubr.bf16.gmra.mxu0 %v1886
        %v1925 = vpop.f32.mrf.mxu0
        %v1926 = vadd.f32 0.0, %v1925
        %v1927 = vpop.f32.mrf.mxu0
        %v1928 = vpop.f32.mrf.mxu0
        %v1929 = vpop.f32.mrf.mxu0
        %1930 = vdwg.mxu0
        %v1931 = vpack.c.bf16 %v1926, %v1926
        %v1933 = vunpack.c.l.b16 %v1931
        %v1934 = vpack.c.b16 %v1933, %v1933
        %1935 = vrot.lane.b32.xlu0 %v1934, 32
        %v1936 = vpop.permute.xlu0 %1935
        %1938 = vst.msk [vmem:[#allocation3 + $0x4] sm:$0xf] %vm1432, %v1936
        %v1939 = vld [vmem:[#allocation2 + $0xc] sm:$0xf]
        %v1940 = vld [vmem:[#allocation2 + $0x10] sm:$0xf]
        %v1941 = vld [vmem:[#allocation2 + $0x14] sm:$0xf]
        %v1943 = vunpack.c.l.b16 %v1939
        %v1944 = vpack.c.b16 %v1943, %v1943
        %1945 = vrot.lane.b32.xlu0 %v1944, 64
        %v1946 = vpop.permute.xlu0 %1945
        %v1948 = vunpack.c.l.b16 %v1940
        %v1949 = vpack.c.b16 %v1948, %v1948
        %1950 = vrot.lane.b32.xlu0 %v1949, 64
        %v1951 = vpop.permute.xlu0 %1950
        %v1953 = vsel %vm1191, %v1946, 0
        %v1956 = vsel %vm1191, %v1951, 0
        %1958 = vmatprep.subr.bf16.mxu0 0
        %1959 = vmatpush1.bf16.xpose.msra.mxu0 0
        %1960 = vmatprep.subr.bf16.mxu0 0
        %1961 = vmatpush1.bf16.xpose.msra.mxu0 0
        %1962 = vmatprep.subr.bf16.mxu0 0
        %1963 = vmatpush1.bf16.xpose.msra.mxu0 0
        %1964 = vmatprep.subr.bf16.mxu0 0
        %1965 = vmatpush1.bf16.xpose.msra.mxu0 0
        %1966 = vmatprep.subr.bf16.mxu0 0
        %1967 = vmatpush1.bf16.xpose.msra.mxu0 0
        %1968 = vmatprep.subr.bf16.mxu0 0
        %1969 = vmatpush1.bf16.xpose.msra.mxu0 0
        %1970 = vmatprep.subr.bf16.mxu0 0
        %1971 = vmatpush1.bf16.xpose.msra.mxu0 0
        %1972 = vmatprep.subr.bf16.mxu0 0
        %1973 = vmatpush1.bf16.xpose.msra.mxu0 %v1956
        %1974 = vmatprep.subr.bf16.mxu0 0
        %1975 = vmatpush2.bf16.xpose.msra.mxu0 0
        %1976 = vmatprep.subr.bf16.mxu0 0
        %1977 = vmatpush2.bf16.xpose.msra.mxu0 0
        %1978 = vmatprep.subr.bf16.mxu0 0
        %1979 = vmatpush2.bf16.xpose.msra.mxu0 0
        %1980 = vmatprep.subr.bf16.mxu0 0
        %1981 = vmatpush2.bf16.xpose.msra.mxu0 0
        %1982 = vmatprep.subr.bf16.mxu0 0
        %1983 = vmatpush2.bf16.xpose.msra.mxu0 0
        %1984 = vmatprep.subr.bf16.mxu0 0
        %1985 = vmatpush2.bf16.xpose.msra.mxu0 0
        %1986 = vmatprep.subr.bf16.mxu0 0
        %1987 = vmatpush2.bf16.xpose.msra.mxu0 0
        %1988 = vmatprep.subr.bf16.mxu0 0
        %1989 = vmatpush2.bf16.xpose.msra.mxu0 0
        %1990 = vmatprep.mubr.bf16.mxu0 0
        %1991 = vmatmul.mubr.bf16.gmra.mxu0 %v1953
        %v1992 = vpop.f32.mrf.mxu0
        %v1993 = vadd.f32 0.0, %v1992
        %v1994 = vpop.f32.mrf.mxu0
        %v1995 = vpop.f32.mrf.mxu0
        %v1996 = vpop.f32.mrf.mxu0
        %1997 = vdwg.mxu0
        %v1998 = vsel %vm1187, %v1993, -1e+30
        %v1999 = vsel %vm1239, %v1998, -inf
        %2000 = vmax.xlane.f32.xlu0 %v1999
        %v2001 = vpop.xlane.xlu0 %2000
        %v2002 = vsub.f32 %v1998, %v2001
        %v2003 = vmul.f32 %v2002, 1.442695
        %v2004 = vpow.pop %v2003
        %v2005 = vsel %vm1239, %v2004, 0.0
        %2006 = vadd.xlane.f32.xlu0 %v2005
        %v2007 = vpop.xlane.xlu0 %2006
        %v2008 = vrcp.pop %v2007
        %v2009 = vmul.f32 %v2004, %v2008
        %v2010 = vpack.c.bf16 %v2009, %v2009
        %v2012 = vunpack.c.l.b16 %v1941
        %v2013 = vpack.c.b16 %v2012, %v2012
        %2014 = vrot.lane.b32.xlu0 %v2013, 64
        %v2015 = vpop.permute.xlu0 %2014
        %v2017 = vsel %vm1239, %v2010, 0
        %v2020 = vsel %vm1255, %v2015, 0
        %2022 = vmatprep.subr.bf16.mxu0 0
        %2023 = vmatpush1.bf16.msra.mxu0 0
        %2024 = vmatprep.subr.bf16.mxu0 0
        %2025 = vmatpush1.bf16.msra.mxu0 0
        %2026 = vmatprep.subr.bf16.mxu0 0
        %2027 = vmatpush1.bf16.msra.mxu0 0
        %2028 = vmatprep.subr.bf16.mxu0 0
        %2029 = vmatpush1.bf16.msra.mxu0 0
        %2030 = vmatprep.subr.bf16.mxu0 0
        %2031 = vmatpush1.bf16.msra.mxu0 0
        %2032 = vmatprep.subr.bf16.mxu0 0
        %2033 = vmatpush1.bf16.msra.mxu0 0
        %2034 = vmatprep.subr.bf16.mxu0 0
        %2035 = vmatpush1.bf16.msra.mxu0 0
        %2036 = vmatprep.subr.bf16.mxu0 0
        %2037 = vmatpush1.bf16.msra.mxu0 %v2020
        %2038 = vmatprep.subr.bf16.mxu0 0
        %2039 = vmatpush2.bf16.msra.mxu0 0
        %2040 = vmatprep.subr.bf16.mxu0 0
        %2041 = vmatpush2.bf16.msra.mxu0 0
        %2042 = vmatprep.subr.bf16.mxu0 0
        %2043 = vmatpush2.bf16.msra.mxu0 0
        %2044 = vmatprep.subr.bf16.mxu0 0
        %2045 = vmatpush2.bf16.msra.mxu0 0
        %2046 = vmatprep.subr.bf16.mxu0 0
        %2047 = vmatpush2.bf16.msra.mxu0 0
        %2048 = vmatprep.subr.bf16.mxu0 0
        %2049 = vmatpush2.bf16.msra.mxu0 0
        %2050 = vmatprep.subr.bf16.mxu0 0
        %2051 = vmatpush2.bf16.msra.mxu0 0
        %2052 = vmatprep.subr.bf16.mxu0 0
        %2053 = vmatpush2.bf16.msra.mxu0 0
        %2054 = vmatprep.mubr.bf16.mxu0 0
        %2055 = vmatmul.mubr.bf16.gmra.mxu0 %v2017
        %v2056 = vpop.f32.mrf.mxu0
        %v2057 = vadd.f32 0.0, %v2056
        %v2058 = vpop.f32.mrf.mxu0
        %v2059 = vpop.f32.mrf.mxu0
        %v2060 = vpop.f32.mrf.mxu0
        %2061 = vdwg.mxu0
        %v2062 = vpack.c.bf16 %v2057, %v2057
        %v2064 = vunpack.c.l.b16 %v2062
        %v2065 = vpack.c.b16 %v2064, %v2064
        %2066 = vrot.lane.b32.xlu0 %v2065, 64
        %v2067 = vpop.permute.xlu0 %2066
        %2069 = vst.msk [vmem:[#allocation3 + $0x4] sm:$0xf] %vm1564, %v2067
        %v2070 = vld [vmem:[#allocation2 + $0xc] sm:$0xf]
        %v2071 = vld [vmem:[#allocation2 + $0x10] sm:$0xf]
        %v2072 = vld [vmem:[#allocation2 + $0x14] sm:$0xf]
        %v2074 = vunpack.c.l.b16 %v2070
        %v2075 = vpack.c.b16 %v2074, %v2074
        %2076 = vrot.lane.b32.xlu0 %v2075, 32
        %v2077 = vpop.permute.xlu0 %2076
        %v2079 = vunpack.c.l.b16 %v2071
        %v2080 = vpack.c.b16 %v2079, %v2079
        %2081 = vrot.lane.b32.xlu0 %v2080, 32
        %v2082 = vpop.permute.xlu0 %2081
        %v2084 = vsel %vm1191, %v2077, 0
        %v2087 = vsel %vm1191, %v2082, 0
        %2089 = vmatprep.subr.bf16.mxu0 0
        %2090 = vmatpush1.bf16.xpose.msra.mxu0 0
        %2091 = vmatprep.subr.bf16.mxu0 0
        %2092 = vmatpush1.bf16.xpose.msra.mxu0 0
        %2093 = vmatprep.subr.bf16.mxu0 0
        %2094 = vmatpush1.bf16.xpose.msra.mxu0 0
        %2095 = vmatprep.subr.bf16.mxu0 0
        %2096 = vmatpush1.bf16.xpose.msra.mxu0 0
        %2097 = vmatprep.subr.bf16.mxu0 0
        %2098 = vmatpush1.bf16.xpose.msra.mxu0 0
        %2099 = vmatprep.subr.bf16.mxu0 0
        %2100 = vmatpush1.bf16.xpose.msra.mxu0 0
        %2101 = vmatprep.subr.bf16.mxu0 0
        %2102 = vmatpush1.bf16.xpose.msra.mxu0 0
        %2103 = vmatprep.subr.bf16.mxu0 0
        %2104 = vmatpush1.bf16.xpose.msra.mxu0 %v2087
        %2105 = vmatprep.subr.bf16.mxu0 0
        %2106 = vmatpush2.bf16.xpose.msra.mxu0 0
        %2107 = vmatprep.subr.bf16.mxu0 0
        %2108 = vmatpush2.bf16.xpose.msra.mxu0 0
        %2109 = vmatprep.subr.bf16.mxu0 0
        %2110 = vmatpush2.bf16.xpose.msra.mxu0 0
        %2111 = vmatprep.subr.bf16.mxu0 0
        %2112 = vmatpush2.bf16.xpose.msra.mxu0 0
        %2113 = vmatprep.subr.bf16.mxu0 0
        %2114 = vmatpush2.bf16.xpose.msra.mxu0 0
        %2115 = vmatprep.subr.bf16.mxu0 0
        %2116 = vmatpush2.bf16.xpose.msra.mxu0 0
        %2117 = vmatprep.subr.bf16.mxu0 0
        %2118 = vmatpush2.bf16.xpose.msra.mxu0 0
        %2119 = vmatprep.subr.bf16.mxu0 0
        %2120 = vmatpush2.bf16.xpose.msra.mxu0 0
        %2121 = vmatprep.mubr.bf16.mxu0 0
        %2122 = vmatmul.mubr.bf16.gmra.mxu0 %v2084
        %v2123 = vpop.f32.mrf.mxu0
        %v2124 = vadd.f32 0.0, %v2123
        %v2125 = vpop.f32.mrf.mxu0
        %v2126 = vpop.f32.mrf.mxu0
        %v2127 = vpop.f32.mrf.mxu0
        %2128 = vdwg.mxu0
        %v2129 = vsel %vm1187, %v2124, -1e+30
        %v2130 = vsel %vm1239, %v2129, -inf
        %2131 = vmax.xlane.f32.xlu0 %v2130
        %v2132 = vpop.xlane.xlu0 %2131
        %v2133 = vsub.f32 %v2129, %v2132
        %v2134 = vmul.f32 %v2133, 1.442695
        %v2135 = vpow.pop %v2134
        %v2136 = vsel %vm1239, %v2135, 0.0
        %2137 = vadd.xlane.f32.xlu0 %v2136
        %v2138 = vpop.xlane.xlu0 %2137
        %v2139 = vrcp.pop %v2138
        %v2140 = vmul.f32 %v2135, %v2139
        %v2141 = vpack.c.bf16 %v2140, %v2140
        %v2143 = vunpack.c.l.b16 %v2072
        %v2144 = vpack.c.b16 %v2143, %v2143
        %2145 = vrot.lane.b32.xlu0 %v2144, 32
        %v2146 = vpop.permute.xlu0 %2145
        %v2148 = vsel %vm1239, %v2141, 0
        %v2151 = vsel %vm1255, %v2146, 0
        %2153 = vmatprep.subr.bf16.mxu0 0
        %2154 = vmatpush1.bf16.msra.mxu0 0
        %2155 = vmatprep.subr.bf16.mxu0 0
        %2156 = vmatpush1.bf16.msra.mxu0 0
        %2157 = vmatprep.subr.bf16.mxu0 0
        %2158 = vmatpush1.bf16.msra.mxu0 0
        %2159 = vmatprep.subr.bf16.mxu0 0
        %2160 = vmatpush1.bf16.msra.mxu0 0
        %2161 = vmatprep.subr.bf16.mxu0 0
        %2162 = vmatpush1.bf16.msra.mxu0 0
        %2163 = vmatprep.subr.bf16.mxu0 0
        %2164 = vmatpush1.bf16.msra.mxu0 0
        %2165 = vmatprep.subr.bf16.mxu0 0
        %2166 = vmatpush1.bf16.msra.mxu0 0
        %2167 = vmatprep.subr.bf16.mxu0 0
        %2168 = vmatpush1.bf16.msra.mxu0 %v2151
        %2169 = vmatprep.subr.bf16.mxu0 0
        %2170 = vmatpush2.bf16.msra.mxu0 0
        %2171 = vmatprep.subr.bf16.mxu0 0
        %2172 = vmatpush2.bf16.msra.mxu0 0
        %2173 = vmatprep.subr.bf16.mxu0 0
        %2174 = vmatpush2.bf16.msra.mxu0 0
        %2175 = vmatprep.subr.bf16.mxu0 0
        %2176 = vmatpush2.bf16.msra.mxu0 0
        %2177 = vmatprep.subr.bf16.mxu0 0
        %2178 = vmatpush2.bf16.msra.mxu0 0
        %2179 = vmatprep.subr.bf16.mxu0 0
        %2180 = vmatpush2.bf16.msra.mxu0 0
        %2181 = vmatprep.subr.bf16.mxu0 0
        %2182 = vmatpush2.bf16.msra.mxu0 0
        %2183 = vmatprep.subr.bf16.mxu0 0
        %2184 = vmatpush2.bf16.msra.mxu0 0
        %2185 = vmatprep.mubr.bf16.mxu0 0
        %2186 = vmatmul.mubr.bf16.gmra.mxu0 %v2148
        %v2187 = vpop.f32.mrf.mxu0
        %v2188 = vadd.f32 0.0, %v2187
        %v2189 = vpop.f32.mrf.mxu0
        %v2190 = vpop.f32.mrf.mxu0
        %v2191 = vpop.f32.mrf.mxu0
        %2192 = vdwg.mxu0
        %v2193 = vpack.c.bf16 %v2188, %v2188
        %v2195 = vunpack.c.l.b16 %v2193
        %v2196 = vpack.c.b16 %v2195, %v2195
        %2197 = vrot.lane.b32.xlu0 %v2196, 96
        %v2198 = vpop.permute.xlu0 %2197
        %2200 = vst.msk [vmem:[#allocation3 + $0x4] sm:$0xf] %vm1696, %v2198
        %v2201 = vld [vmem:[#allocation3] sm:$0xf]
        %v2202 = vld [vmem:[#allocation3 + $0x4] sm:$0xf]
        %v2203 = vld [vmem:[%s663] sm:$0xf]
        %v2204 = vld [vmem:[%s663 + $0x4] sm:$0xf]
        %v2205 = vld [vmem:[%s663 + $0x8] sm:$0xf]
        %v2206 = vld [vmem:[%s663 + $0xc] sm:$0xf]
        %v2207 = vld [vmem:[%s663 + $0x10] sm:$0xf]
        %v2208 = vld [vmem:[%s663 + $0x14] sm:$0xf]
        %v2209 = vld [vmem:[%s663 + $0x18] sm:$0xf]
        %v2210 = vld [vmem:[%s663 + $0x1c] sm:$0xf]
        %v2211 = vld [vmem:[%s663 + $0x20] sm:$0xf]
        %v2212 = vld [vmem:[%s663 + $0x24] sm:$0xf]
        %v2213 = vld [vmem:[%s663 + $0x28] sm:$0xf]
        %v2214 = vld [vmem:[%s663 + $0x2c] sm:$0xf]
        %v2215 = vld [vmem:[%s663 + $0x30] sm:$0xf]
        %v2216 = vld [vmem:[%s663 + $0x34] sm:$0xf]
        %v2217 = vld [vmem:[%s663 + $0x38] sm:$0xf]
        %v2218 = vld [vmem:[%s663 + $0x3c] sm:$0xf]
        %v2221 = vunpack.c.l.b16 %v2201
        %v2222 = vunpack.c.l.b16 %v2202
        %v2223 = vpack.c.b16 %v2222, %v2221
        %v2241 = vunpack.c.l.b16 %v2203
        %v2242 = vunpack.c.l.b16 %v2204
        %v2243 = vunpack.c.l.b16 %v2205
        %v2244 = vunpack.c.l.b16 %v2206
        %v2245 = vunpack.c.l.b16 %v2207
        %v2246 = vunpack.c.l.b16 %v2208
        %v2247 = vunpack.c.l.b16 %v2209
        %v2248 = vunpack.c.l.b16 %v2210
        %v2249 = vunpack.c.l.b16 %v2211
        %v2250 = vunpack.c.l.b16 %v2212
        %v2251 = vunpack.c.l.b16 %v2213
        %v2252 = vunpack.c.l.b16 %v2214
        %v2253 = vunpack.c.l.b16 %v2215
        %v2254 = vunpack.c.l.b16 %v2216
        %v2255 = vunpack.c.l.b16 %v2217
        %v2256 = vunpack.c.l.b16 %v2218
        %v2257 = vpack.c.b16 %v2242, %v2241
        %v2258 = vpack.c.b16 %v2244, %v2243
        %v2259 = vpack.c.b16 %v2246, %v2245
        %v2260 = vpack.c.b16 %v2248, %v2247
        %v2261 = vpack.c.b16 %v2250, %v2249
        %v2262 = vpack.c.b16 %v2252, %v2251
        %v2263 = vpack.c.b16 %v2254, %v2253
        %v2264 = vpack.c.b16 %v2256, %v2255
        %2273 = vmatprep.subr.bf16.mxu0 0
        %2274 = vmatpush1.bf16.msra.mxu0 %v2264
        %2275 = vmatprep.subr.bf16.mxu0 0
        %2276 = vmatpush1.bf16.msra.mxu0 %v2263
        %2277 = vmatprep.subr.bf16.mxu0 0
        %2278 = vmatpush1.bf16.msra.mxu0 %v2262
        %2279 = vmatprep.subr.bf16.mxu0 0
        %2280 = vmatpush1.bf16.msra.mxu0 %v2261
        %2281 = vmatprep.subr.bf16.mxu0 0
        %2282 = vmatpush1.bf16.msra.mxu0 %v2260
        %2283 = vmatprep.subr.bf16.mxu0 0
        %2284 = vmatpush1.bf16.msra.mxu0 %v2259
        %2285 = vmatprep.subr.bf16.mxu0 0
        %2286 = vmatpush1.bf16.msra.mxu0 %v2258
        %2287 = vmatprep.subr.bf16.mxu0 0
        %2288 = vmatpush1.bf16.msra.mxu0 %v2257
        %2289 = vmatprep.subr.bf16.mxu0 0
        %2290 = vmatpush2.bf16.msra.mxu0 0
        %2291 = vmatprep.subr.bf16.mxu0 0
        %2292 = vmatpush2.bf16.msra.mxu0 0
        %2293 = vmatprep.subr.bf16.mxu0 0
        %2294 = vmatpush2.bf16.msra.mxu0 0
        %2295 = vmatprep.subr.bf16.mxu0 0
        %2296 = vmatpush2.bf16.msra.mxu0 0
        %2297 = vmatprep.subr.bf16.mxu0 0
        %2298 = vmatpush2.bf16.msra.mxu0 0
        %2299 = vmatprep.subr.bf16.mxu0 0
        %2300 = vmatpush2.bf16.msra.mxu0 0
        %2301 = vmatprep.subr.bf16.mxu0 0
        %2302 = vmatpush2.bf16.msra.mxu0 0
        %2303 = vmatprep.subr.bf16.mxu0 0
        %2304 = vmatpush2.bf16.msra.mxu0 0
        %2305 = vmatprep.mubr.bf16.mxu0 0
        %2306 = vmatmul.mubr.bf16.gmra.mxu0 %v2223
        %v2307 = vpop.f32.mrf.mxu0
        %v2308 = vadd.f32 0.0, %v2307
        %v2309 = vpop.f32.mrf.mxu0
        %v2310 = vpop.f32.mrf.mxu0
        %v2311 = vadd.f32 0.0, %v2310
        %v2312 = vpop.f32.mrf.mxu0
        %2313 = vdwg.mxu0
        %v2314 = vadd.f32 %v873, %v2308
        %v2315 = vadd.f32 %v874, %v2311
        %v2316 = vld [vmem:[%s765] sm:$0x1]
        %v2318 = vlaneseq
        %v2319 = vshrl.u32 %v2318, 7
        %v2320 = vsub.s32 0, %v2319
        %v2321 = vrot.slane %v2316, %v2320
        %v2323 = vadd.f32 %v2314, %v2321
        %v2324 = vadd.f32 %v2315, %v2321
        %v2325 = vld [vmem:[%s768] sm:$0x1]
        %v2326 = vld [vmem:[%s771] sm:$0x1]
        %2327 = vadd.xlane.f32.xlu0 %v2323
        %v2328 = vpop.xlane.xlu0 %2327
        %2329 = vadd.xlane.f32.xlu0 %v2324
        %v2330 = vpop.xlane.xlu0 %2329
        %v2331 = vmul.f32 %v2328, %v881
        %v2332 = vmul.f32 %v2330, %v881
        %v2333 = vsub.f32 %v2323, %v2331
        %v2334 = vsub.f32 %v2324, %v2332
        %v2335 = vmul.f32 %v2333, %v2333
        %v2336 = vmul.f32 %v2334, %v2334
        %2337 = vadd.xlane.f32.xlu0 %v2335
        %v2338 = vpop.xlane.xlu0 %2337
        %2339 = vadd.xlane.f32.xlu0 %v2336
        %v2340 = vpop.xlane.xlu0 %2339
        %v2341 = vmul.f32 %v2338, %v881
        %v2342 = vmul.f32 %v2340, %v881
        %v2343 = vadd.f32 %v2341, 1e-05
        %v2344 = vadd.f32 %v2342, 1e-05
        %v2345 = vrsqrt.pop %v2343
        %v2346 = vrsqrt.pop %v2344
        %v2347 = vmul.f32 %v2333, %v2345
        %v2348 = vmul.f32 %v2334, %v2346
        %v2350 = vlaneseq
        %v2351 = vshrl.u32 %v2350, 7
        %v2352 = vsub.s32 0, %v2351
        %v2353 = vrot.slane %v2325, %v2352
        %v2355 = vmul.f32 %v2347, %v2353
        %v2356 = vmul.f32 %v2348, %v2353
        %v2358 = vlaneseq
        %v2359 = vshrl.u32 %v2358, 7
        %v2360 = vsub.s32 0, %v2359
        %v2361 = vrot.slane %v2326, %v2360
        %v2363 = vadd.f32 %v2355, %v2361
        %v2364 = vadd.f32 %v2356, %v2361
        %v2365 = vpack.c.bf16 %v2364, %v2363
        %v2366 = vld [vmem:[%s672] sm:$0xff]
        %v2367 = vld [vmem:[%s672 + $0x8] sm:$0xff]
        %v2368 = vld [vmem:[%s672 + $0x10] sm:$0xff]
        %v2369 = vld [vmem:[%s672 + $0x18] sm:$0xff]
        %v2370 = vld [vmem:[%s672 + $0x20] sm:$0xff]
        %v2371 = vld [vmem:[%s672 + $0x28] sm:$0xff]
        %v2372 = vld [vmem:[%s672 + $0x30] sm:$0xff]
        %v2373 = vld [vmem:[%s672 + $0x38] sm:$0xff]
        %v2374 = vld [vmem:[%s672 + $0x40] sm:$0xff]
        %v2375 = vld [vmem:[%s672 + $0x48] sm:$0xff]
        %v2376 = vld [vmem:[%s672 + $0x50] sm:$0xff]
        %v2377 = vld [vmem:[%s672 + $0x58] sm:$0xff]
        %v2378 = vld [vmem:[%s672 + $0x60] sm:$0xff]
        %v2379 = vld [vmem:[%s672 + $0x68] sm:$0xff]
        %v2380 = vld [vmem:[%s672 + $0x70] sm:$0xff]
        %v2381 = vld [vmem:[%s672 + $0x78] sm:$0xff]
        %v2382 = vld [vmem:[%s775] sm:$0x3]
        %v2384 = vlaneseq
        %v2385 = vshrl.u32 %v2384, 7
        %v2386 = vsub.s32 0, %v2385
        %v2387 = vrot.slane %v2382, %v2386
        %v2388 = vlaneseq
        %v2389 = vshrl.u32 %v2388, 7
        %v2390 = vsub.s32 1, %v2389
        %v2391 = vrot.slane %v2382, %v2390
        %v2410 = vunpack.c.l.b16 %v2366
        %v2411 = vunpack.c.h.b16 %v2366
        %v2412 = vunpack.c.l.b16 %v2367
        %v2413 = vunpack.c.h.b16 %v2367
        %v2414 = vunpack.c.l.b16 %v2368
        %v2415 = vunpack.c.h.b16 %v2368
        %v2416 = vunpack.c.l.b16 %v2369
        %v2417 = vunpack.c.h.b16 %v2369
        %v2418 = vunpack.c.l.b16 %v2370
        %v2419 = vunpack.c.h.b16 %v2370
        %v2420 = vunpack.c.l.b16 %v2371
        %v2421 = vunpack.c.h.b16 %v2371
        %v2422 = vunpack.c.l.b16 %v2372
        %v2423 = vunpack.c.h.b16 %v2372
        %v2424 = vunpack.c.l.b16 %v2373
        %v2425 = vunpack.c.h.b16 %v2373
        %v2426 = vunpack.c.l.b16 %v2374
        %v2427 = vunpack.c.h.b16 %v2374
        %v2428 = vunpack.c.l.b16 %v2375
        %v2429 = vunpack.c.h.b16 %v2375
        %v2430 = vunpack.c.l.b16 %v2376
        %v2431 = vunpack.c.h.b16 %v2376
        %v2432 = vunpack.c.l.b16 %v2377
        %v2433 = vunpack.c.h.b16 %v2377
        %v2434 = vunpack.c.l.b16 %v2378
        %v2435 = vunpack.c.h.b16 %v2378
        %v2436 = vunpack.c.l.b16 %v2379
        %v2437 = vunpack.c.h.b16 %v2379
        %v2438 = vunpack.c.l.b16 %v2380
        %v2439 = vunpack.c.h.b16 %v2380
        %v2440 = vunpack.c.l.b16 %v2381
        %v2441 = vunpack.c.h.b16 %v2381
        %v2442 = vpack.c.b16 %v2412, %v2410
        %v2443 = vpack.c.b16 %v2413, %v2411
        %v2444 = vpack.c.b16 %v2416, %v2414
        %v2445 = vpack.c.b16 %v2417, %v2415
        %v2446 = vpack.c.b16 %v2420, %v2418
        %v2447 = vpack.c.b16 %v2421, %v2419
        %v2448 = vpack.c.b16 %v2424, %v2422
        %v2449 = vpack.c.b16 %v2425, %v2423
        %v2450 = vpack.c.b16 %v2428, %v2426
        %v2451 = vpack.c.b16 %v2429, %v2427
        %v2452 = vpack.c.b16 %v2432, %v2430
        %v2453 = vpack.c.b16 %v2433, %v2431
        %v2454 = vpack.c.b16 %v2436, %v2434
        %v2455 = vpack.c.b16 %v2437, %v2435
        %v2456 = vpack.c.b16 %v2440, %v2438
        %v2457 = vpack.c.b16 %v2441, %v2439
        %2474 = vmatprep.subr.bf16.mxu0 %v2457
        %2475 = vmatpush1.bf16.msra.mxu0 %v2456
        %2476 = vmatprep.subr.bf16.mxu0 %v2455
        %2477 = vmatpush1.bf16.msra.mxu0 %v2454
        %2478 = vmatprep.subr.bf16.mxu0 %v2453
        %2479 = vmatpush1.bf16.msra.mxu0 %v2452
        %2480 = vmatprep.subr.bf16.mxu0 %v2451
        %2481 = vmatpush1.bf16.msra.mxu0 %v2450
        %2482 = vmatprep.subr.bf16.mxu0 %v2449
        %2483 = vmatpush1.bf16.msra.mxu0 %v2448
        %2484 = vmatprep.subr.bf16.mxu0 %v2447
        %2485 = vmatpush1.bf16.msra.mxu0 %v2446
        %2486 = vmatprep.subr.bf16.mxu0 %v2445
        %2487 = vmatpush1.bf16.msra.mxu0 %v2444
        %2488 = vmatprep.subr.bf16.mxu0 %v2443
        %2489 = vmatpush1.bf16.msra.mxu0 %v2442
        %2490 = vmatprep.subr.bf16.mxu0 0
        %2491 = vmatpush2.bf16.msra.mxu0 0
        %2492 = vmatprep.subr.bf16.mxu0 0
        %2493 = vmatpush2.bf16.msra.mxu0 0
        %2494 = vmatprep.subr.bf16.mxu0 0
        %2495 = vmatpush2.bf16.msra.mxu0 0
        %2496 = vmatprep.subr.bf16.mxu0 0
        %2497 = vmatpush2.bf16.msra.mxu0 0
        %2498 = vmatprep.subr.bf16.mxu0 0
        %2499 = vmatpush2.bf16.msra.mxu0 0
        %2500 = vmatprep.subr.bf16.mxu0 0
        %2501 = vmatpush2.bf16.msra.mxu0 0
        %2502 = vmatprep.subr.bf16.mxu0 0
        %2503 = vmatpush2.bf16.msra.mxu0 0
        %2504 = vmatprep.subr.bf16.mxu0 0
        %2505 = vmatpush2.bf16.msra.mxu0 0
        %2506 = vmatprep.mubr.bf16.mxu0 0
        %2507 = vmatmul.mubr.bf16.gmra.mxu0 %v2365
        %v2508 = vpop.f32.mrf.mxu0
        %v2509 = vadd.f32 %v2387, %v2508
        %v2510 = vpop.f32.mrf.mxu0
        %v2511 = vadd.f32 %v2391, %v2510
        %v2512 = vpop.f32.mrf.mxu0
        %v2513 = vadd.f32 %v2387, %v2512
        %v2514 = vpop.f32.mrf.mxu0
        %v2515 = vadd.f32 %v2391, %v2514
        %2516 = vdwg.mxu0
        %v2517 = vmul.f32 %v2509, 0.5
        %v2518 = vmul.f32 %v2511, 0.5
        %v2519 = vmul.f32 %v2513, 0.5
        %v2520 = vmul.f32 %v2515, 0.5
        %v2521 = vmul.f32 %v2509, 0.044715
        %v2522 = vmul.f32 %v2511, 0.044715
        %v2523 = vmul.f32 %v2513, 0.044715
        %v2524 = vmul.f32 %v2515, 0.044715
        %v2525 = vmul.f32 %v2521, %v2509
        %v2526 = vmul.f32 %v2522, %v2511
        %v2527 = vmul.f32 %v2523, %v2513
        %v2528 = vmul.f32 %v2524, %v2515
        %v2529 = vmul.f32 %v2525, %v2509
        %v2530 = vmul.f32 %v2526, %v2511
        %v2531 = vmul.f32 %v2527, %v2513
        %v2532 = vmul.f32 %v2528, %v2515
        %v2533 = vadd.f32 %v2509, %v2529
        %v2534 = vadd.f32 %v2511, %v2530
        %v2535 = vadd.f32 %v2513, %v2531
        %v2536 = vadd.f32 %v2515, %v2532
        %v2537 = vmul.f32 %v2533, 0.7978846
        %v2538 = vmul.f32 %v2534, 0.7978846
        %v2539 = vmul.f32 %v2535, 0.7978846
        %v2540 = vmul.f32 %v2536, 0.7978846
        %v2541 = vtanh.pop %v2537
        %v2542 = vtanh.pop %v2538
        %v2543 = vtanh.pop %v2539
        %v2544 = vtanh.pop %v2540
        %v2545 = vadd.f32 %v2541, 1.0
        %v2546 = vadd.f32 %v2542, 1.0
        %v2547 = vadd.f32 %v2543, 1.0
        %v2548 = vadd.f32 %v2544, 1.0
        %v2549 = vmul.f32 %v2517, %v2545
        %v2550 = vmul.f32 %v2518, %v2546
        %v2551 = vmul.f32 %v2519, %v2547
        %v2552 = vmul.f32 %v2520, %v2548
        %v2553 = vpack.c.bf16 %v2551, %v2549
        %v2554 = vpack.c.bf16 %v2552, %v2550
        %v2555 = vld [vmem:[%s681] sm:$0xf]
        %v2556 = vld [vmem:[%s681 + $0x4] sm:$0xf]
        %v2557 = vld [vmem:[%s681 + $0x8] sm:$0xf]
        %v2558 = vld [vmem:[%s681 + $0xc] sm:$0xf]
        %v2559 = vld [vmem:[%s681 + $0x10] sm:$0xf]
        %v2560 = vld [vmem:[%s681 + $0x14] sm:$0xf]
        %v2561 = vld [vmem:[%s681 + $0x18] sm:$0xf]
        %v2562 = vld [vmem:[%s681 + $0x1c] sm:$0xf]
        %v2563 = vld [vmem:[%s681 + $0x20] sm:$0xf]
        %v2564 = vld [vmem:[%s681 + $0x24] sm:$0xf]
        %v2565 = vld [vmem:[%s681 + $0x28] sm:$0xf]
        %v2566 = vld [vmem:[%s681 + $0x2c] sm:$0xf]
        %v2567 = vld [vmem:[%s681 + $0x30] sm:$0xf]
        %v2568 = vld [vmem:[%s681 + $0x34] sm:$0xf]
        %v2569 = vld [vmem:[%s681 + $0x38] sm:$0xf]
        %v2570 = vld [vmem:[%s681 + $0x3c] sm:$0xf]
        %v2571 = vld [vmem:[%s681 + $0x40] sm:$0xf]
        %v2572 = vld [vmem:[%s681 + $0x44] sm:$0xf]
        %v2573 = vld [vmem:[%s681 + $0x48] sm:$0xf]
        %v2574 = vld [vmem:[%s681 + $0x4c] sm:$0xf]
        %v2575 = vld [vmem:[%s681 + $0x50] sm:$0xf]
        %v2576 = vld [vmem:[%s681 + $0x54] sm:$0xf]
        %v2577 = vld [vmem:[%s681 + $0x58] sm:$0xf]
        %v2578 = vld [vmem:[%s681 + $0x5c] sm:$0xf]
        %v2579 = vld [vmem:[%s681 + $0x60] sm:$0xf]
        %v2580 = vld [vmem:[%s681 + $0x64] sm:$0xf]
        %v2581 = vld [vmem:[%s681 + $0x68] sm:$0xf]
        %v2582 = vld [vmem:[%s681 + $0x6c] sm:$0xf]
        %v2583 = vld [vmem:[%s681 + $0x70] sm:$0xf]
        %v2584 = vld [vmem:[%s681 + $0x74] sm:$0xf]
        %v2585 = vld [vmem:[%s681 + $0x78] sm:$0xf]
        %v2586 = vld [vmem:[%s681 + $0x7c] sm:$0xf]
        %v2587 = vld [vmem:[%s778] sm:$0x1]
        %v2589 = vlaneseq
        %v2590 = vshrl.u32 %v2589, 7
        %v2591 = vsub.s32 0, %v2590
        %v2592 = vrot.slane %v2587, %v2591
        %v2626 = vunpack.c.l.b16 %v2555
        %v2627 = vunpack.c.l.b16 %v2556
        %v2628 = vunpack.c.l.b16 %v2557
        %v2629 = vunpack.c.l.b16 %v2558
        %v2630 = vunpack.c.l.b16 %v2559
        %v2631 = vunpack.c.l.b16 %v2560
        %v2632 = vunpack.c.l.b16 %v2561
        %v2633 = vunpack.c.l.b16 %v2562
        %v2634 = vunpack.c.l.b16 %v2563
        %v2635 = vunpack.c.l.b16 %v2564
        %v2636 = vunpack.c.l.b16 %v2565
        %v2637 = vunpack.c.l.b16 %v2566
        %v2638 = vunpack.c.l.b16 %v2567
        %v2639 = vunpack.c.l.b16 %v2568
        %v2640 = vunpack.c.l.b16 %v2569
        %v2641 = vunpack.c.l.b16 %v2570
        %v2642 = vunpack.c.l.b16 %v2571
        %v2643 = vunpack.c.l.b16 %v2572
        %v2644 = vunpack.c.l.b16 %v2573
        %v2645 = vunpack.c.l.b16 %v2574
        %v2646 = vunpack.c.l.b16 %v2575
        %v2647 = vunpack.c.l.b16 %v2576
        %v2648 = vunpack.c.l.b16 %v2577
        %v2649 = vunpack.c.l.b16 %v2578
        %v2650 = vunpack.c.l.b16 %v2579
        %v2651 = vunpack.c.l.b16 %v2580
        %v2652 = vunpack.c.l.b16 %v2581
        %v2653 = vunpack.c.l.b16 %v2582
        %v2654 = vunpack.c.l.b16 %v2583
        %v2655 = vunpack.c.l.b16 %v2584
        %v2656 = vunpack.c.l.b16 %v2585
        %v2657 = vunpack.c.l.b16 %v2586
        %v2658 = vpack.c.b16 %v2627, %v2626
        %v2659 = vpack.c.b16 %v2629, %v2628
        %v2660 = vpack.c.b16 %v2631, %v2630
        %v2661 = vpack.c.b16 %v2633, %v2632
        %v2662 = vpack.c.b16 %v2635, %v2634
        %v2663 = vpack.c.b16 %v2637, %v2636
        %v2664 = vpack.c.b16 %v2639, %v2638
        %v2665 = vpack.c.b16 %v2641, %v2640
        %v2666 = vpack.c.b16 %v2643, %v2642
        %v2667 = vpack.c.b16 %v2645, %v2644
        %v2668 = vpack.c.b16 %v2647, %v2646
        %v2669 = vpack.c.b16 %v2649, %v2648
        %v2670 = vpack.c.b16 %v2651, %v2650
        %v2671 = vpack.c.b16 %v2653, %v2652
        %v2672 = vpack.c.b16 %v2655, %v2654
        %v2673 = vpack.c.b16 %v2657, %v2656
        %2690 = vmatprep.subr.bf16.mxu0 0
        %2691 = vmatpush1.bf16.msra.mxu0 %v2665
        %2692 = vmatprep.subr.bf16.mxu0 0
        %2693 = vmatpush1.bf16.msra.mxu0 %v2664
        %2694 = vmatprep.subr.bf16.mxu0 0
        %2695 = vmatpush1.bf16.msra.mxu0 %v2663
        %2696 = vmatprep.subr.bf16.mxu0 0
        %2697 = vmatpush1.bf16.msra.mxu0 %v2662
        %2698 = vmatprep.subr.bf16.mxu0 0
        %2699 = vmatpush1.bf16.msra.mxu0 %v2661
        %2700 = vmatprep.subr.bf16.mxu0 0
        %2701 = vmatpush1.bf16.msra.mxu0 %v2660
        %2702 = vmatprep.subr.bf16.mxu0 0
        %2703 = vmatpush1.bf16.msra.mxu0 %v2659
        %2704 = vmatprep.subr.bf16.mxu0 0
        %2705 = vmatpush1.bf16.msra.mxu0 %v2658
        %2706 = vmatprep.subr.bf16.mxu0 0
        %2707 = vmatpush2.bf16.msra.mxu0 %v2673
        %2708 = vmatprep.subr.bf16.mxu0 0
        %2709 = vmatpush2.bf16.msra.mxu0 %v2672
        %2710 = vmatprep.subr.bf16.mxu0 0
        %2711 = vmatpush2.bf16.msra.mxu0 %v2671
        %2712 = vmatprep.subr.bf16.mxu0 0
        %2713 = vmatpush2.bf16.msra.mxu0 %v2670
        %2714 = vmatprep.subr.bf16.mxu0 0
        %2715 = vmatpush2.bf16.msra.mxu0 %v2669
        %2716 = vmatprep.subr.bf16.mxu0 0
        %2717 = vmatpush2.bf16.msra.mxu0 %v2668
        %2718 = vmatprep.subr.bf16.mxu0 0
        %2719 = vmatpush2.bf16.msra.mxu0 %v2667
        %2720 = vmatprep.subr.bf16.mxu0 0
        %2721 = vmatpush2.bf16.msra.mxu0 %v2666
        %2722 = vmatprep.mubr.bf16.mxu0 %v2554
        %2723 = vmatmul.mubr.bf16.gmra.mxu0 %v2553
        %v2724 = vpop.f32.mrf.mxu0
        %v2725 = vadd.f32 %v2592, %v2724
        %v2726 = vpop.f32.mrf.mxu0
        %v2727 = vpop.f32.mrf.mxu0
        %v2728 = vadd.f32 %v2592, %v2727
        %v2729 = vpop.f32.mrf.mxu0
        %2730 = vdwg.mxu0
        %v2731 = vadd.f32 %v2323, %v2725
        %v2732 = vadd.f32 %v2324, %v2728
        %2733 = vst [vmem:[#allocation18] sm:$0xff] %v2731
        %2734 = vst [vmem:[#allocation18 + $0x8] sm:$0xff] %v2732
        // Predicated region
        $region113: #{tpu_custom_call.1} parent=75 // pred_check
          %p2735 = pneg %p421
        $region114: #{tpu_custom_call.1} parent=75 // pred_check_branch
          %2737 = sbr.rel (%p2735) target = $region116
        $region115: #{tpu_custom_call.1} parent=75 // pred_region
          %s2738 = smul.u32 2, %s41
          %s2740 = ssub.s32 256, 256
          %2741 = vsyncadd [#allocation6], %s2740
          %s2742 = smul.addr %s2738, 128
          %s2743 = scalar_lea.hbm %s14, %s2742
          %s2744 = sshll.u32 [#allocation18], 4
          %s2745 = int_to_ptr.vmem [resolvable:$true] %s2744
          %2750 = dma.vmem_to_hbm [thread:$0]  %s2745, 256, %s2743, [#allocation6], 128, 128, 8
        $region116: #{tpu_custom_call.1} parent=75 // pred_fallthru
          _
        // Predicated region
        $region117: #{tpu_custom_call.1} parent=75 // pred_check
          %p2751 = pneg %p421
        $region118: #{tpu_custom_call.1} parent=75 // pred_check_branch
          %2753 = sbr.rel (%p2751) target = $region120
        $region119: #{tpu_custom_call.1} parent=75 // pred_region
          %2754 = dma.done [#allocation6], 256
        $region120: #{tpu_custom_call.1} parent=75 // pred_fallthru
          _
      $region76: #{tpu_custom_call.1} parent=5 // pred_fallthru
        _
      %p2755 = scmp.le.s32.totalorder 2, %s32
      // Predicated region
      $region121: #{tpu_custom_call.1} parent=5 // pred_check
        %p2756 = pneg %p2755
      $region122: #{tpu_custom_call.1} parent=5 // pred_check_branch
        %2758 = sbr.rel (%p2756) target = $region124
      $region123: #{tpu_custom_call.1} parent=5 // pred_region
        %s2759 = ssub.s32 %s32, 2
      $region124: #{tpu_custom_call.1} parent=5 // pred_fallthru
        _
    $region6: #{tpu_custom_call.1} parent=1 // loop_footer
      %s36 = sadd.s32 1, %s32
    $region7: #{tpu_custom_call.1} parent=1 // loop_footer_branch
      %31 = sbr.rel target = $region3
    $region8: #{tpu_custom_call.1} parent=1 // loop_exit
      _
    %2760 = vsyncpa [#allocation5], 1
    %s2761 = scalar_lea.sflag [#allocation5], 1
    %2762 = vsyncpa %s2761, 1
    %2763 = vsyncpa [#allocation8], 1
    %2764 = vsyncpa [#allocation11], 1
    %s2765 = scalar_lea.sflag [#allocation11], 1
    %2766 = vsyncpa %s2765, 1
    %2767 = vsyncpa [#allocation14], 1
    %s2768 = scalar_lea.sflag [#allocation14], 1
    %2769 = vsyncpa %s2768, 1
    %2770 = vsyncpa [#allocation17], 1
    %s2771 = scalar_lea.sflag [#allocation17], 1
    %2772 = vsyncpa %s2771, 1
    %2773 = vsyncpa [#allocation6], 1
    %s2774 = scalar_lea.sflag [#allocation6], 1
    %2775 = vsyncpa %s2774, 1

</llo_original>
